<compile_context>
chip_gen: v7x
topology: tpu7x:2x2x1
jax: 0.10.0
libtpu: 0.0.40
codegen_flags: <defaults>
</compile_context>

<pallas_src>
from functools import partial

import jax
import jax.numpy as jnp
from jax.experimental import pallas as pl
from jax.experimental.pallas import tpu as pltpu


# ----------------------------- config -----------------------------
VOCAB = 100
MAX_POS = 16          # >= L + PAD_IDX + 1 (RoBERTa position offset)
TYPE_VOCAB = 1
HIDDEN = 32
N_HEADS = 2
HEAD_DIM = HIDDEN // N_HEADS
INTERMEDIATE = 64
N_LAYERS = 2
LN_EPS = 1e-5
PAD_IDX = 1


def _gelu(x):
    # TODO(synk): HF RoBERTa default is erf-based GELU; tanh approximation used here.
    return 0.5 * x * (1.0 + jnp.tanh(0.7978845608028654 * (x + 0.044715 * x * x * x)))


def _ln(x, g, b):
    mean = jnp.mean(x, axis=-1, keepdims=True)
    var = jnp.mean((x - mean) ** 2, axis=-1, keepdims=True)
    return (x - mean) * jax.lax.rsqrt(var + LN_EPS) * g + b


# ----------------------------- fused kernel -----------------------------
def roberta_kernel(
    # scalar prefetch (SMEM)
    ids_ref,                                   # (B, L) int32
    # VMEM inputs
    mask_ref,                                  # (1, 1, L) int32 block
    word_emb_ref, pos_emb_ref,                 # (VOCAB,1,H) / (MAX_POS,1,H) f32
    emb_ln_g_ref, emb_ln_b_ref,                # (1, H) f32
    qkv_w_ref, qkv_b_ref,                      # (NL,3,NH,H,Dh) bf16 / (NL,3,NH,1,Dh) f32
    o_w_ref, o_b_ref,                          # (NL,H,H) bf16 / (NL,1,H) f32
    ln1_g_ref, ln1_b_ref,                      # (NL,1,H) f32
    ff1_w_ref, ff1_b_ref,                      # (NL,H,I) bf16 / (NL,1,I) f32
    ff2_w_ref, ff2_b_ref,                      # (NL,I,H) bf16 / (NL,1,H) f32
    ln2_g_ref, ln2_b_ref,                      # (NL,1,H) f32
    pool_w_ref, pool_b_ref,                    # (H,H) bf16 / (1,H) f32
    cls_w_ref, cls_b_ref,                      # (1,H) f32 / (1,1) f32
    # outputs
    out_ref,                                   # (1, 1, 1) f32
    # scratch
    x_scratch,                                 # (L, H) f32
    *, seq,
):
    f32, bf16 = jnp.float32, jnp.bfloat16
    b = pl.program_id(0)

    # ---- fused embeddings: word(+type) / position gather, all in-kernel ----
    # positions = cumsum(not_pad) * not_pad + PAD_IDX   (HF create_position_ids_from_input_ids)
    cnt = jnp.int32(0)
    for t in range(seq):
        tok = ids_ref[b, t]                                   # SMEM scalar
        not_pad = (tok != PAD_IDX).astype(jnp.int32)
        cnt = cnt + not_pad
        posid = cnt * not_pad + PAD_IDX
        # word_emb already has the (single) token-type embedding folded in.
        x_scratch[pl.ds(t, 1), :] = word_emb_ref[tok] + pos_emb_ref[posid]

    h = _ln(x_scratch[...], emb_ln_g_ref[...], emb_ln_b_ref[...])          # (L, H) f32
    add_mask = (1.0 - mask_ref[0].astype(f32)) * -1e9                      # (1, L)

    # ---- encoder layers (weights fully VMEM-resident at this toy size) ----
    for l in range(N_LAYERS):
        hb = h.astype(bf16)
        ctx_heads = []
        for hd in range(N_HEADS):
            # zero-cost static *weight-ref* slices -> no lane-slicing of computed QKV
            qh = jnp.dot(hb, qkv_w_ref[l, 0, hd], preferred_element_type=f32) + qkv_b_ref[l, 0, hd]
            kh = jnp.dot(hb, qkv_w_ref[l, 1, hd], preferred_element_type=f32) + qkv_b_ref[l, 1, hd]
            vh = jnp.dot(hb, qkv_w_ref[l, 2, hd], preferred_element_type=f32) + qkv_b_ref[l, 2, hd]
            # softmax 1/sqrt(d) scale is pre-folded into W_q / b_q
            s = jnp.einsum("qd,kd->qk", qh.astype(bf16), kh.astype(bf16),
                           preferred_element_type=f32) + add_mask          # (L, L)
            s = s - jnp.max(s, axis=-1, keepdims=True)
            p = jnp.exp(s)
            p = p * pl.reciprocal(jnp.sum(p, axis=-1, keepdims=True), approx=True)
            ctx_heads.append(
                jnp.einsum("qk,kd->qd", p.astype(bf16), vh.astype(bf16),
                           preferred_element_type=f32))                    # (L, Dh)
        # single output projection on the lane-concatenated heads
        ctx = jnp.concatenate(ctx_heads, axis=-1)                          # (L, H)
        attn = jnp.dot(ctx.astype(bf16), o_w_ref[l], preferred_element_type=f32) + o_b_ref[l]
        h = _ln(h + attn, ln1_g_ref[l], ln1_b_ref[l])

        hb = h.astype(bf16)
        ff = _gelu(jnp.dot(hb, ff1_w_ref[l], preferred_element_type=f32) + ff1_b_ref[l])
        ff = jnp.dot(ff.astype(bf16), ff2_w_ref[l], preferred_element_type=f32) + ff2_b_ref[l]
        h = _ln(h + ff, ln2_g_ref[l], ln2_b_ref[l])

    # ---- pooler (tanh dense on CLS token) + classifier Linear(H, 1) ----
    cls_tok = h[0:1, :]                                                    # (1, H)
    pooled = jnp.tanh(jnp.dot(cls_tok.astype(bf16), pool_w_ref[...],
                              preferred_element_type=f32) + pool_b_ref[...])
    # dropout: identity in eval mode
    logit = jnp.sum(pooled * cls_w_ref[...], axis=-1, keepdims=True) + cls_b_ref[...]
    out_ref[...] = logit.reshape(1, 1, 1).astype(out_ref.dtype)


# ----------------------------- params -----------------------------
def init_params(key):
    ks = iter(jax.random.split(key, 64))

    def w(shape, scale=0.02):
        return jax.random.normal(next(ks), shape, jnp.float32) * scale

    params = {
        "word_emb": w((VOCAB, HIDDEN)),
        "pos_emb": w((MAX_POS, HIDDEN)),
        "type_emb": w((TYPE_VOCAB, HIDDEN)),
        "emb_ln_g": jnp.ones((HIDDEN,), jnp.float32),
        "emb_ln_b": jnp.zeros((HIDDEN,), jnp.float32),
        "layers": [],
        "pool_w": w((HIDDEN, HIDDEN)),
        "pool_b": jnp.zeros((HIDDEN,), jnp.float32),
        "cls_w": w((HIDDEN, 1)),
        "cls_b": jnp.zeros((1,), jnp.float32),
    }
    for _ in range(N_LAYERS):
        params["layers"].append({
            "q_w": w((HIDDEN, HIDDEN)), "q_b": jnp.zeros((HIDDEN,), jnp.float32),
            "k_w": w((HIDDEN, HIDDEN)), "k_b": jnp.zeros((HIDDEN,), jnp.float32),
            "v_w": w((HIDDEN, HIDDEN)), "v_b": jnp.zeros((HIDDEN,), jnp.float32),
            "o_w": w((HIDDEN, HIDDEN)), "o_b": jnp.zeros((HIDDEN,), jnp.float32),
            "ln1_g": jnp.ones((HIDDEN,), jnp.float32),
            "ln1_b": jnp.zeros((HIDDEN,), jnp.float32),
            "ff1_w": w((HIDDEN, INTERMEDIATE)),
            "ff1_b": jnp.zeros((INTERMEDIATE,), jnp.float32),
            "ff2_w": w((INTERMEDIATE, HIDDEN)),
            "ff2_b": jnp.zeros((HIDDEN,), jnp.float32),
            "ln2_g": jnp.ones((HIDDEN,), jnp.float32),
            "ln2_b": jnp.zeros((HIDDEN,), jnp.float32),
        })
    return params


def prepare_params(params):
    """One-time weight prep (stack / per-head relayout / bf16 cast). Run once, NOT per call."""
    bf16 = jnp.bfloat16
    layers = params["layers"]
    scale = 1.0 / (HEAD_DIM ** 0.5)

    def stack(name):
        return jnp.stack([lyr[name] for lyr in layers], axis=0)

    # QKV weights laid out (NL, 3, N_HEADS, H, HEAD_DIM) for zero-cost in-kernel ref
    # slicing; the softmax scale is folded into the query projection.
    qkv_w = jnp.stack([stack("q_w") * scale, stack("k_w"), stack("v_w")], axis=1)  # (NL,3,H,H)
    qkv_w = qkv_w.reshape(N_LAYERS, 3, HIDDEN, N_HEADS, HEAD_DIM).transpose(0, 1, 3, 2, 4)
    qkv_b = jnp.stack([stack("q_b") * scale, stack("k_b"), stack("v_b")], axis=1)  # (NL,3,H)
    qkv_b = qkv_b.reshape(N_LAYERS, 3, N_HEADS, 1, HEAD_DIM)

    return {
        # single token-type embedding folded into the word table; tables stored as
        # (rows, 1, H) so every row is an independently addressable leading-dim slab.
        "word_emb": (params["word_emb"] + params["type_emb"][0][None, :]
                     ).reshape(VOCAB, 1, HIDDEN),
        "pos_emb": params["pos_emb"].reshape(MAX_POS, 1, HIDDEN),
        "emb_ln_g": params["emb_ln_g"].reshape(1, HIDDEN),
        "emb_ln_b": params["emb_ln_b"].reshape(1, HIDDEN),
        "qkv_w": qkv_w.astype(bf16),
        "qkv_b": qkv_b,
        "o_w": stack("o_w").astype(bf16),
        "o_b": stack("o_b")[:, None, :],
        "ln1_g": stack("ln1_g")[:, None, :],
        "ln1_b": stack("ln1_b")[:, None, :],
        "ff1_w": stack("ff1_w").astype(bf16),
        "ff1_b": stack("ff1_b")[:, None, :],
        "ff2_w": stack("ff2_w").astype(bf16),
        "ff2_b": stack("ff2_b")[:, None, :],
        "ln2_g": stack("ln2_g")[:, None, :],
        "ln2_b": stack("ln2_b")[:, None, :],
        "pool_w": params["pool_w"].astype(bf16),
        "pool_b": params["pool_b"].reshape(1, HIDDEN),
        "cls_w": params["cls_w"].reshape(1, HIDDEN),
        "cls_b": params["cls_b"].reshape(1, 1),
    }


# ----------------------------- forward -----------------------------
def roberta_forward(prep, input_ids, attention_mask):
    """Equivalent of RoBERTa.forward with args.cl == False (eval mode) -> logits (B, 1)."""
    L = input_ids.shape[-1]
    input_ids = input_ids.reshape(-1, L).astype(jnp.int32)        # input_ids.view(-1, size(-1))
    B = input_ids.shape[0]
    attention_mask = attention_mask.reshape(B, 1, L).astype(jnp.int32)
    assert L + PAD_IDX + 1 <= MAX_POS, "sequence too long for position table"

    def rep(shape):   # whole-array block, constant index_map (weights DMA'd once)
        nd = len(shape)
        return pl.BlockSpec(shape, lambda b, ids, _nd=nd: (0,) * _nd)

    in_specs = [
        pl.BlockSpec((1, 1, L), lambda b, ids: (b, 0, 0)),        # attention mask
        rep(prep["word_emb"].shape), rep(prep["pos_emb"].shape),
        rep(prep["emb_ln_g"].shape), rep(prep["emb_ln_b"].shape),
        rep(prep["qkv_w"].shape), rep(prep["qkv_b"].shape),
        rep(prep["o_w"].shape), rep(prep["o_b"].shape),
        rep(prep["ln1_g"].shape), rep(prep["ln1_b"].shape),
        rep(prep["ff1_w"].shape), rep(prep["ff1_b"].shape),
        rep(prep["ff2_w"].shape), rep(prep["ff2_b"].shape),
        rep(prep["ln2_g"].shape), rep(prep["ln2_b"].shape),
        rep(prep["pool_w"].shape), rep(prep["pool_b"].shape),
        rep(prep["cls_w"].shape), rep(prep["cls_b"].shape),
    ]

    # Rough cost estimate so XLA schedules the surrounding ops sensibly.
    flops_layer = (2 * L * HIDDEN * 3 * HIDDEN + 4 * L * L * HIDDEN
                   + 2 * L * HIDDEN * HIDDEN + 4 * L * HIDDEN * INTERMEDIATE)
    weight_bytes = sum(int(a.size) * a.dtype.itemsize
                       for a in jax.tree_util.tree_leaves(prep))
    cost = pl.CostEstimate(
        flops=B * (N_LAYERS * flops_layer + 2 * HIDDEN * HIDDEN + 2 * HIDDEN),
        transcendentals=B * (N_LAYERS * (N_HEADS * L * L + L * INTERMEDIATE) + HIDDEN),
        bytes_accessed=weight_bytes + 4 * int(input_ids.size)
                       + 4 * int(attention_mask.size) + 4 * B,
    )

    grid_spec = pltpu.PrefetchScalarGridSpec(
        num_scalar_prefetch=1,                       # input_ids -> SMEM
        grid=(B,),
        in_specs=in_specs,
        out_specs=pl.BlockSpec((1, 1, 1), lambda b, ids: (b, 0, 0)),
        scratch_shapes=[pltpu.VMEM((L, HIDDEN), jnp.float32)],
    )

    logits = pl.pallas_call(
        partial(roberta_kernel, seq=L),
        out_shape=jax.ShapeDtypeStruct((B, 1, 1), jnp.float32),
        grid_spec=grid_spec,
        compiler_params=pltpu.CompilerParams(
            dimension_semantics=("parallel",),       # batch across TensorCores on v7x
            vmem_limit_bytes=32 * 1024 * 1024),
        cost_estimate=cost,
    )(
        input_ids, attention_mask,
        prep["word_emb"], prep["pos_emb"], prep["emb_ln_g"], prep["emb_ln_b"],
        prep["qkv_w"], prep["qkv_b"], prep["o_w"], prep["o_b"],
        prep["ln1_g"], prep["ln1_b"],
        prep["ff1_w"], prep["ff1_b"], prep["ff2_w"], prep["ff2_b"],
        prep["ln2_g"], prep["ln2_b"],
        prep["pool_w"], prep["pool_b"], prep["cls_w"], prep["cls_b"],
    )
    return logits.reshape(B, 1)


# ----------------------------- main -----------------------------
if __name__ == "__main__":
    key = jax.random.PRNGKey(0)
    k_param, k_ids = jax.random.split(key)

    B, L = 2, 8
    params = init_params(k_param)
    prep = prepare_params(params)      # one-time weight prep, outside the per-call path

    input_ids = jax.random.randint(k_ids, (B, L), 0, VOCAB, dtype=jnp.int32)
    attention_mask = jnp.array(
        [[1, 1, 1, 1, 1, 1, 1, 1],
         [1, 1, 1, 1, 1, 1, 0, 0]], dtype=jnp.int32)

    logits = jax.jit(roberta_forward)(prep, input_ids, attention_mask)
    logits = jax.block_until_ready(logits)
    assert logits.shape == (B, 1) and logits.dtype == jnp.float32
    assert bool(jnp.all(jnp.isfinite(logits)))
    print("KERNEL_OK")
</pallas_src>

<mosaic_0001>
module attributes {stable_mosaic.version = 11 : i64} {
  func.func @roberta_kernel(%arg0: i32, %arg1: memref<2x8xi32, #tpu.memory_space<smem>>, %arg2: memref<1x1x8xi32, #tpu.memory_space<vmem>>, %arg3: memref<100x1x32xf32, #tpu.memory_space<vmem>>, %arg4: memref<16x1x32xf32, #tpu.memory_space<vmem>>, %arg5: memref<1x32xf32, #tpu.memory_space<vmem>>, %arg6: memref<1x32xf32, #tpu.memory_space<vmem>>, %arg7: memref<2x3x2x32x16xbf16, #tpu.memory_space<vmem>>, %arg8: memref<2x3x2x1x16xf32, #tpu.memory_space<vmem>>, %arg9: memref<2x32x32xbf16, #tpu.memory_space<vmem>>, %arg10: memref<2x1x32xf32, #tpu.memory_space<vmem>>, %arg11: memref<2x1x32xf32, #tpu.memory_space<vmem>>, %arg12: memref<2x1x32xf32, #tpu.memory_space<vmem>>, %arg13: memref<2x32x64xbf16, #tpu.memory_space<vmem>>, %arg14: memref<2x1x64xf32, #tpu.memory_space<vmem>>, %arg15: memref<2x64x32xbf16, #tpu.memory_space<vmem>>, %arg16: memref<2x1x32xf32, #tpu.memory_space<vmem>>, %arg17: memref<2x1x32xf32, #tpu.memory_space<vmem>>, %arg18: memref<2x1x32xf32, #tpu.memory_space<vmem>>, %arg19: memref<32x32xbf16, #tpu.memory_space<vmem>>, %arg20: memref<1x32xf32, #tpu.memory_space<vmem>>, %arg21: memref<1x32xf32, #tpu.memory_space<vmem>>, %arg22: memref<1x1xf32, #tpu.memory_space<vmem>>, %arg23: memref<1x1x1xf32, #tpu.memory_space<vmem>>, %arg24: memref<8x32xf32, #tpu.memory_space<vmem>>) attributes {dimension_semantics = [#tpu.dimension_semantics<parallel>], iteration_bounds = array<i64: 2>, scalar_prefetch = 1 : i64, scratch_operands = 1 : i64, tpu.core_type = #tpu.core_type<tc>, window_params = [{transform_indices = @transform_0, window_bounds = array<i64: 1, 1, 8>}, {pipeline_mode = #tpu.pipeline_mode<synchronous>, transform_indices = @transform_1, window_bounds = array<i64: 100, 1, 32>}, {pipeline_mode = #tpu.pipeline_mode<synchronous>, transform_indices = @transform_2, window_bounds = array<i64: 16, 1, 32>}, {pipeline_mode = #tpu.pipeline_mode<synchronous>, transform_indices = @transform_3, window_bounds = array<i64: 1, 32>}, {pipeline_mode = #tpu.pipeline_mode<synchronous>, transform_indices = @transform_4, window_bounds = array<i64: 1, 32>}, {pipeline_mode = #tpu.pipeline_mode<synchronous>, transform_indices = @transform_5, window_bounds = array<i64: 2, 3, 2, 32, 16>}, {pipeline_mode = #tpu.pipeline_mode<synchronous>, transform_indices = @transform_6, window_bounds = array<i64: 2, 3, 2, 1, 16>}, {pipeline_mode = #tpu.pipeline_mode<synchronous>, transform_indices = @transform_7, window_bounds = array<i64: 2, 32, 32>}, {pipeline_mode = #tpu.pipeline_mode<synchronous>, transform_indices = @transform_8, window_bounds = array<i64: 2, 1, 32>}, {pipeline_mode = #tpu.pipeline_mode<synchronous>, transform_indices = @transform_9, window_bounds = array<i64: 2, 1, 32>}, {pipeline_mode = #tpu.pipeline_mode<synchronous>, transform_indices = @transform_10, window_bounds = array<i64: 2, 1, 32>}, {pipeline_mode = #tpu.pipeline_mode<synchronous>, transform_indices = @transform_11, window_bounds = array<i64: 2, 32, 64>}, {pipeline_mode = #tpu.pipeline_mode<synchronous>, transform_indices = @transform_12, window_bounds = array<i64: 2, 1, 64>}, {pipeline_mode = #tpu.pipeline_mode<synchronous>, transform_indices = @transform_13, window_bounds = array<i64: 2, 64, 32>}, {pipeline_mode = #tpu.pipeline_mode<synchronous>, transform_indices = @transform_14, window_bounds = array<i64: 2, 1, 32>}, {pipeline_mode = #tpu.pipeline_mode<synchronous>, transform_indices = @transform_15, window_bounds = array<i64: 2, 1, 32>}, {pipeline_mode = #tpu.pipeline_mode<synchronous>, transform_indices = @transform_16, window_bounds = array<i64: 2, 1, 32>}, {pipeline_mode = #tpu.pipeline_mode<synchronous>, transform_indices = @transform_17, window_bounds = array<i64: 32, 32>}, {pipeline_mode = #tpu.pipeline_mode<synchronous>, transform_indices = @transform_18, window_bounds = array<i64: 1, 32>}, {pipeline_mode = #tpu.pipeline_mode<synchronous>, transform_indices = @transform_19, window_bounds = array<i64: 1, 32>}, {pipeline_mode = #tpu.pipeline_mode<synchronous>, transform_indices = @transform_20, window_bounds = array<i64: 1, 1>}, {transform_indices = @transform_21, window_bounds = array<i64: 1, 1, 1>}]} {
    %0 = arith.index_cast %arg0 : i32 to index
    %c0 = arith.constant 0 : index
    %1 = memref.load %arg1[%0, %c0] : memref<2x8xi32, #tpu.memory_space<smem>>
    %c1_i32 = arith.constant 1 : i32
    %2 = arith.cmpi ne, %1, %c1_i32 : i32
    %3 = arith.extui %2 : i1 to i32
    %c0_i32 = arith.constant 0 : i32
    %4 = arith.addi %c0_i32, %3 : i32
    %5 = arith.muli %4, %3 : i32
    %c1_i32_0 = arith.constant 1 : i32
    %6 = arith.addi %5, %c1_i32_0 : i32
    %7 = arith.index_cast %1 : i32 to index
    %c0_1 = arith.constant 0 : index
    %c0_2 = arith.constant 0 : index
    %8 = vector.load %arg3[%7, %c0_1, %c0_2] : memref<100x1x32xf32, #tpu.memory_space<vmem>>, vector<1x1x32xf32>
    %9 = vector.shape_cast %8 : vector<1x1x32xf32> to vector<1x32xf32>
    %10 = arith.index_cast %6 : i32 to index
    %c0_3 = arith.constant 0 : index
    %c0_4 = arith.constant 0 : index
    %11 = vector.load %arg4[%10, %c0_3, %c0_4] : memref<16x1x32xf32, #tpu.memory_space<vmem>>, vector<1x1x32xf32>
    %12 = vector.shape_cast %11 : vector<1x1x32xf32> to vector<1x32xf32>
    %13 = arith.addf %9, %12 : vector<1x32xf32>
    %c0_5 = arith.constant 0 : index
    %c0_6 = arith.constant 0 : index
    %14 = vector.load %arg24[%c0_5, %c0_6] : memref<8x32xf32, #tpu.memory_space<vmem>>, vector<1x32xf32>
    tpu.vector_store %arg24[%c0_5, %c0_6], %13 {strides = array<i32>} : memref<8x32xf32, #tpu.memory_space<vmem>>, vector<1x32xf32>,
    %15 = arith.index_cast %arg0 : i32 to index
    %c1 = arith.constant 1 : index
    %16 = memref.load %arg1[%15, %c1] : memref<2x8xi32, #tpu.memory_space<smem>>
    %c1_i32_7 = arith.constant 1 : i32
    %17 = arith.cmpi ne, %16, %c1_i32_7 : i32
    %18 = arith.extui %17 : i1 to i32
    %19 = arith.addi %4, %18 : i32
    %20 = arith.muli %19, %18 : i32
    %c1_i32_8 = arith.constant 1 : i32
    %21 = arith.addi %20, %c1_i32_8 : i32
    %22 = arith.index_cast %16 : i32 to index
    %c0_9 = arith.constant 0 : index
    %c0_10 = arith.constant 0 : index
    %23 = vector.load %arg3[%22, %c0_9, %c0_10] : memref<100x1x32xf32, #tpu.memory_space<vmem>>, vector<1x1x32xf32>
    %24 = vector.shape_cast %23 : vector<1x1x32xf32> to vector<1x32xf32>
    %25 = arith.index_cast %21 : i32 to index
    %c0_11 = arith.constant 0 : index
    %c0_12 = arith.constant 0 : index
    %26 = vector.load %arg4[%25, %c0_11, %c0_12] : memref<16x1x32xf32, #tpu.memory_space<vmem>>, vector<1x1x32xf32>
    %27 = vector.shape_cast %26 : vector<1x1x32xf32> to vector<1x32xf32>
    %28 = arith.addf %24, %27 : vector<1x32xf32>
    %c1_13 = arith.constant 1 : index
    %c0_14 = arith.constant 0 : index
    %29 = vector.load %arg24[%c1_13, %c0_14] : memref<8x32xf32, #tpu.memory_space<vmem>>, vector<1x32xf32>
    tpu.vector_store %arg24[%c1_13, %c0_14], %28 {strides = array<i32>} : memref<8x32xf32, #tpu.memory_space<vmem>>, vector<1x32xf32>,
    %30 = arith.index_cast %arg0 : i32 to index
    %c2 = arith.constant 2 : index
    %31 = memref.load %arg1[%30, %c2] : memref<2x8xi32, #tpu.memory_space<smem>>
    %c1_i32_15 = arith.constant 1 : i32
    %32 = arith.cmpi ne, %31, %c1_i32_15 : i32
    %33 = arith.extui %32 : i1 to i32
    %34 = arith.addi %19, %33 : i32
    %35 = arith.muli %34, %33 : i32
    %c1_i32_16 = arith.constant 1 : i32
    %36 = arith.addi %35, %c1_i32_16 : i32
    %37 = arith.index_cast %31 : i32 to index
    %c0_17 = arith.constant 0 : index
    %c0_18 = arith.constant 0 : index
    %38 = vector.load %arg3[%37, %c0_17, %c0_18] : memref<100x1x32xf32, #tpu.memory_space<vmem>>, vector<1x1x32xf32>
    %39 = vector.shape_cast %38 : vector<1x1x32xf32> to vector<1x32xf32>
    %40 = arith.index_cast %36 : i32 to index
    %c0_19 = arith.constant 0 : index
    %c0_20 = arith.constant 0 : index
    %41 = vector.load %arg4[%40, %c0_19, %c0_20] : memref<16x1x32xf32, #tpu.memory_space<vmem>>, vector<1x1x32xf32>
    %42 = vector.shape_cast %41 : vector<1x1x32xf32> to vector<1x32xf32>
    %43 = arith.addf %39, %42 : vector<1x32xf32>
    %c2_21 = arith.constant 2 : index
    %c0_22 = arith.constant 0 : index
    %44 = vector.load %arg24[%c2_21, %c0_22] : memref<8x32xf32, #tpu.memory_space<vmem>>, vector<1x32xf32>
    tpu.vector_store %arg24[%c2_21, %c0_22], %43 {strides = array<i32>} : memref<8x32xf32, #tpu.memory_space<vmem>>, vector<1x32xf32>,
    %45 = arith.index_cast %arg0 : i32 to index
    %c3 = arith.constant 3 : index
    %46 = memref.load %arg1[%45, %c3] : memref<2x8xi32, #tpu.memory_space<smem>>
    %c1_i32_23 = arith.constant 1 : i32
    %47 = arith.cmpi ne, %46, %c1_i32_23 : i32
    %48 = arith.extui %47 : i1 to i32
    %49 = arith.addi %34, %48 : i32
    %50 = arith.muli %49, %48 : i32
    %c1_i32_24 = arith.constant 1 : i32
    %51 = arith.addi %50, %c1_i32_24 : i32
    %52 = arith.index_cast %46 : i32 to index
    %c0_25 = arith.constant 0 : index
    %c0_26 = arith.constant 0 : index
    %53 = vector.load %arg3[%52, %c0_25, %c0_26] : memref<100x1x32xf32, #tpu.memory_space<vmem>>, vector<1x1x32xf32>
    %54 = vector.shape_cast %53 : vector<1x1x32xf32> to vector<1x32xf32>
    %55 = arith.index_cast %51 : i32 to index
    %c0_27 = arith.constant 0 : index
    %c0_28 = arith.constant 0 : index
    %56 = vector.load %arg4[%55, %c0_27, %c0_28] : memref<16x1x32xf32, #tpu.memory_space<vmem>>, vector<1x1x32xf32>
    %57 = vector.shape_cast %56 : vector<1x1x32xf32> to vector<1x32xf32>
    %58 = arith.addf %54, %57 : vector<1x32xf32>
    %c3_29 = arith.constant 3 : index
    %c0_30 = arith.constant 0 : index
    %59 = vector.load %arg24[%c3_29, %c0_30] : memref<8x32xf32, #tpu.memory_space<vmem>>, vector<1x32xf32>
    tpu.vector_store %arg24[%c3_29, %c0_30], %58 {strides = array<i32>} : memref<8x32xf32, #tpu.memory_space<vmem>>, vector<1x32xf32>,
    %60 = arith.index_cast %arg0 : i32 to index
    %c4 = arith.constant 4 : index
    %61 = memref.load %arg1[%60, %c4] : memref<2x8xi32, #tpu.memory_space<smem>>
    %c1_i32_31 = arith.constant 1 : i32
    %62 = arith.cmpi ne, %61, %c1_i32_31 : i32
    %63 = arith.extui %62 : i1 to i32
    %64 = arith.addi %49, %63 : i32
    %65 = arith.muli %64, %63 : i32
    %c1_i32_32 = arith.constant 1 : i32
    %66 = arith.addi %65, %c1_i32_32 : i32
    %67 = arith.index_cast %61 : i32 to index
    %c0_33 = arith.constant 0 : index
    %c0_34 = arith.constant 0 : index
    %68 = vector.load %arg3[%67, %c0_33, %c0_34] : memref<100x1x32xf32, #tpu.memory_space<vmem>>, vector<1x1x32xf32>
    %69 = vector.shape_cast %68 : vector<1x1x32xf32> to vector<1x32xf32>
    %70 = arith.index_cast %66 : i32 to index
    %c0_35 = arith.constant 0 : index
    %c0_36 = arith.constant 0 : index
    %71 = vector.load %arg4[%70, %c0_35, %c0_36] : memref<16x1x32xf32, #tpu.memory_space<vmem>>, vector<1x1x32xf32>
    %72 = vector.shape_cast %71 : vector<1x1x32xf32> to vector<1x32xf32>
    %73 = arith.addf %69, %72 : vector<1x32xf32>
    %c4_37 = arith.constant 4 : index
    %c0_38 = arith.constant 0 : index
    %74 = vector.load %arg24[%c4_37, %c0_38] : memref<8x32xf32, #tpu.memory_space<vmem>>, vector<1x32xf32>
    tpu.vector_store %arg24[%c4_37, %c0_38], %73 {strides = array<i32>} : memref<8x32xf32, #tpu.memory_space<vmem>>, vector<1x32xf32>,
    %75 = arith.index_cast %arg0 : i32 to index
    %c5 = arith.constant 5 : index
    %76 = memref.load %arg1[%75, %c5] : memref<2x8xi32, #tpu.memory_space<smem>>
    %c1_i32_39 = arith.constant 1 : i32
    %77 = arith.cmpi ne, %76, %c1_i32_39 : i32
    %78 = arith.extui %77 : i1 to i32
    %79 = arith.addi %64, %78 : i32
    %80 = arith.muli %79, %78 : i32
    %c1_i32_40 = arith.constant 1 : i32
    %81 = arith.addi %80, %c1_i32_40 : i32
    %82 = arith.index_cast %76 : i32 to index
    %c0_41 = arith.constant 0 : index
    %c0_42 = arith.constant 0 : index
    %83 = vector.load %arg3[%82, %c0_41, %c0_42] : memref<100x1x32xf32, #tpu.memory_space<vmem>>, vector<1x1x32xf32>
    %84 = vector.shape_cast %83 : vector<1x1x32xf32> to vector<1x32xf32>
    %85 = arith.index_cast %81 : i32 to index
    %c0_43 = arith.constant 0 : index
    %c0_44 = arith.constant 0 : index
    %86 = vector.load %arg4[%85, %c0_43, %c0_44] : memref<16x1x32xf32, #tpu.memory_space<vmem>>, vector<1x1x32xf32>
    %87 = vector.shape_cast %86 : vector<1x1x32xf32> to vector<1x32xf32>
    %88 = arith.addf %84, %87 : vector<1x32xf32>
    %c5_45 = arith.constant 5 : index
    %c0_46 = arith.constant 0 : index
    %89 = vector.load %arg24[%c5_45, %c0_46] : memref<8x32xf32, #tpu.memory_space<vmem>>, vector<1x32xf32>
    tpu.vector_store %arg24[%c5_45, %c0_46], %88 {strides = array<i32>} : memref<8x32xf32, #tpu.memory_space<vmem>>, vector<1x32xf32>,
    %90 = arith.index_cast %arg0 : i32 to index
    %c6 = arith.constant 6 : index
    %91 = memref.load %arg1[%90, %c6] : memref<2x8xi32, #tpu.memory_space<smem>>
    %c1_i32_47 = arith.constant 1 : i32
    %92 = arith.cmpi ne, %91, %c1_i32_47 : i32
    %93 = arith.extui %92 : i1 to i32
    %94 = arith.addi %79, %93 : i32
    %95 = arith.muli %94, %93 : i32
    %c1_i32_48 = arith.constant 1 : i32
    %96 = arith.addi %95, %c1_i32_48 : i32
    %97 = arith.index_cast %91 : i32 to index
    %c0_49 = arith.constant 0 : index
    %c0_50 = arith.constant 0 : index
    %98 = vector.load %arg3[%97, %c0_49, %c0_50] : memref<100x1x32xf32, #tpu.memory_space<vmem>>, vector<1x1x32xf32>
    %99 = vector.shape_cast %98 : vector<1x1x32xf32> to vector<1x32xf32>
    %100 = arith.index_cast %96 : i32 to index
    %c0_51 = arith.constant 0 : index
    %c0_52 = arith.constant 0 : index
    %101 = vector.load %arg4[%100, %c0_51, %c0_52] : memref<16x1x32xf32, #tpu.memory_space<vmem>>, vector<1x1x32xf32>
    %102 = vector.shape_cast %101 : vector<1x1x32xf32> to vector<1x32xf32>
    %103 = arith.addf %99, %102 : vector<1x32xf32>
    %c6_53 = arith.constant 6 : index
    %c0_54 = arith.constant 0 : index
    %104 = vector.load %arg24[%c6_53, %c0_54] : memref<8x32xf32, #tpu.memory_space<vmem>>, vector<1x32xf32>
    tpu.vector_store %arg24[%c6_53, %c0_54], %103 {strides = array<i32>} : memref<8x32xf32, #tpu.memory_space<vmem>>, vector<1x32xf32>,
    %105 = arith.index_cast %arg0 : i32 to index
    %c7 = arith.constant 7 : index
    %106 = memref.load %arg1[%105, %c7] : memref<2x8xi32, #tpu.memory_space<smem>>
    %c1_i32_55 = arith.constant 1 : i32
    %107 = arith.cmpi ne, %106, %c1_i32_55 : i32
    %108 = arith.extui %107 : i1 to i32
    %109 = arith.addi %94, %108 : i32
    %110 = arith.muli %109, %108 : i32
    %c1_i32_56 = arith.constant 1 : i32
    %111 = arith.addi %110, %c1_i32_56 : i32
    %112 = arith.index_cast %106 : i32 to index
    %c0_57 = arith.constant 0 : index
    %c0_58 = arith.constant 0 : index
    %113 = vector.load %arg3[%112, %c0_57, %c0_58] : memref<100x1x32xf32, #tpu.memory_space<vmem>>, vector<1x1x32xf32>
    %114 = vector.shape_cast %113 : vector<1x1x32xf32> to vector<1x32xf32>
    %115 = arith.index_cast %111 : i32 to index
    %c0_59 = arith.constant 0 : index
    %c0_60 = arith.constant 0 : index
    %116 = vector.load %arg4[%115, %c0_59, %c0_60] : memref<16x1x32xf32, #tpu.memory_space<vmem>>, vector<1x1x32xf32>
    %117 = vector.shape_cast %116 : vector<1x1x32xf32> to vector<1x32xf32>
    %118 = arith.addf %114, %117 : vector<1x32xf32>
    %c7_61 = arith.constant 7 : index
    %c0_62 = arith.constant 0 : index
    %119 = vector.load %arg24[%c7_61, %c0_62] : memref<8x32xf32, #tpu.memory_space<vmem>>, vector<1x32xf32>
    tpu.vector_store %arg24[%c7_61, %c0_62], %118 {strides = array<i32>} : memref<8x32xf32, #tpu.memory_space<vmem>>, vector<1x32xf32>,
    %c0_63 = arith.constant 0 : index
    %c0_64 = arith.constant 0 : index
    %120 = vector.load %arg24[%c0_63, %c0_64] : memref<8x32xf32, #tpu.memory_space<vmem>>, vector<8x32xf32>
    %c0_65 = arith.constant 0 : index
    %c0_66 = arith.constant 0 : index
    %121 = vector.load %arg5[%c0_65, %c0_66] : memref<1x32xf32, #tpu.memory_space<vmem>>, vector<1x32xf32>
    %c0_67 = arith.constant 0 : index
    %c0_68 = arith.constant 0 : index
    %122 = vector.load %arg6[%c0_67, %c0_68] : memref<1x32xf32, #tpu.memory_space<vmem>>, vector<1x32xf32>
    %cst = arith.constant dense<0.000000e+00> : vector<8xf32>
    %123 = vector.multi_reduction <add>, %120, %cst [1] : vector<8x32xf32> to vector<8xf32>
    %124 = vector.shape_cast %123 : vector<8xf32> to vector<8x1xf32>
    %cst_69 = arith.constant 3.200000e+01 : f32
    %125 = vector.broadcast %cst_69 : f32 to vector<8x1xf32>
    %126 = arith.divf %124, %125 : vector<8x1xf32>
    %127 = vector.broadcast %126 : vector<8x1xf32> to vector<8x32xf32>
    %128 = arith.subf %120, %127 : vector<8x32xf32>
    %129 = arith.mulf %128, %128 : vector<8x32xf32>
    %cst_70 = arith.constant dense<0.000000e+00> : vector<8xf32>
    %130 = vector.multi_reduction <add>, %129, %cst_70 [1] : vector<8x32xf32> to vector<8xf32>
    %131 = vector.shape_cast %130 : vector<8xf32> to vector<8x1xf32>
    %cst_71 = arith.constant 3.200000e+01 : f32
    %132 = vector.broadcast %cst_71 : f32 to vector<8x1xf32>
    %133 = arith.divf %131, %132 : vector<8x1xf32>
    %134 = vector.broadcast %126 : vector<8x1xf32> to vector<8x32xf32>
    %135 = arith.subf %120, %134 : vector<8x32xf32>
    %cst_72 = arith.constant 9.99999974E-6 : f32
    %136 = vector.broadcast %cst_72 : f32 to vector<8x1xf32>
    %137 = arith.addf %133, %136 : vector<8x1xf32>
    %138 = math.rsqrt %137 : vector<8x1xf32>
    %139 = vector.broadcast %138 : vector<8x1xf32> to vector<8x32xf32>
    %140 = arith.mulf %135, %139 : vector<8x32xf32>
    %141 = vector.broadcast %121 : vector<1x32xf32> to vector<8x32xf32>
    %142 = arith.mulf %140, %141 : vector<8x32xf32>
    %143 = vector.broadcast %122 : vector<1x32xf32> to vector<8x32xf32>
    %144 = arith.addf %142, %143 : vector<8x32xf32>
    %c0_73 = arith.constant 0 : index
    %c0_74 = arith.constant 0 : index
    %c0_75 = arith.constant 0 : index
    %145 = vector.load %arg2[%c0_73, %c0_74, %c0_75] : memref<1x1x8xi32, #tpu.memory_space<vmem>>, vector<1x1x8xi32>
    %146 = vector.shape_cast %145 : vector<1x1x8xi32> to vector<1x8xi32>
    %147 = arith.sitofp %146 : vector<1x8xi32> to vector<1x8xf32>
    %cst_76 = arith.constant 1.000000e+00 : f32
    %148 = vector.broadcast %cst_76 : f32 to vector<1x8xf32>
    %149 = arith.subf %148, %147 : vector<1x8xf32>
    %cst_77 = arith.constant -1.000000e+09 : f32
    %150 = vector.broadcast %cst_77 : f32 to vector<1x8xf32>
    %151 = arith.mulf %149, %150 : vector<1x8xf32>
    %152 = arith.truncf %144 : vector<8x32xf32> to vector<8x32xbf16>
    %c0_78 = arith.constant 0 : index
    %c0_79 = arith.constant 0 : index
    %c0_80 = arith.constant 0 : index
    %c0_81 = arith.constant 0 : index
    %c0_82 = arith.constant 0 : index
    %153 = vector.load %arg7[%c0_78, %c0_79, %c0_80, %c0_81, %c0_82] : memref<2x3x2x32x16xbf16, #tpu.memory_space<vmem>>, vector<1x1x1x32x16xbf16>
    %154 = vector.shape_cast %153 : vector<1x1x1x32x16xbf16> to vector<32x16xbf16>
    %cst_83 = arith.constant dense<0.000000e+00> : vector<8x16xf32>
    %155 = tpu.matmul %152, %154, %cst_83 {dimension_numbers = #tpu.dot_dimension_numbers<[1], [0], [0], [1], [0, 0, 1, 1], [], []>} : vector<8x32xbf16>, vector<32x16xbf16>, vector<8x16xf32> -> vector<8x16xf32>
    %c0_84 = arith.constant 0 : index
    %c0_85 = arith.constant 0 : index
    %c0_86 = arith.constant 0 : index
    %c0_87 = arith.constant 0 : index
    %c0_88 = arith.constant 0 : index
    %156 = vector.load %arg8[%c0_84, %c0_85, %c0_86, %c0_87, %c0_88] : memref<2x3x2x1x16xf32, #tpu.memory_space<vmem>>, vector<1x1x1x1x16xf32>
    %157 = vector.shape_cast %156 : vector<1x1x1x1x16xf32> to vector<1x16xf32>
    %158 = vector.broadcast %157 : vector<1x16xf32> to vector<8x16xf32>
    %159 = arith.addf %155, %158 : vector<8x16xf32>
    %c0_89 = arith.constant 0 : index
    %c1_90 = arith.constant 1 : index
    %c0_91 = arith.constant 0 : index
    %c0_92 = arith.constant 0 : index
    %c0_93 = arith.constant 0 : index
    %160 = vector.load %arg7[%c0_89, %c1_90, %c0_91, %c0_92, %c0_93] : memref<2x3x2x32x16xbf16, #tpu.memory_space<vmem>>, vector<1x1x1x32x16xbf16>
    %161 = vector.shape_cast %160 : vector<1x1x1x32x16xbf16> to vector<32x16xbf16>
    %cst_94 = arith.constant dense<0.000000e+00> : vector<8x16xf32>
    %162 = tpu.matmul %152, %161, %cst_94 {dimension_numbers = #tpu.dot_dimension_numbers<[1], [0], [0], [1], [0, 0, 1, 1], [], []>} : vector<8x32xbf16>, vector<32x16xbf16>, vector<8x16xf32> -> vector<8x16xf32>
    %c0_95 = arith.constant 0 : index
    %c1_96 = arith.constant 1 : index
    %c0_97 = arith.constant 0 : index
    %c0_98 = arith.constant 0 : index
    %c0_99 = arith.constant 0 : index
    %163 = vector.load %arg8[%c0_95, %c1_96, %c0_97, %c0_98, %c0_99] : memref<2x3x2x1x16xf32, #tpu.memory_space<vmem>>, vector<1x1x1x1x16xf32>
    %164 = vector.shape_cast %163 : vector<1x1x1x1x16xf32> to vector<1x16xf32>
    %165 = vector.broadcast %164 : vector<1x16xf32> to vector<8x16xf32>
    %166 = arith.addf %162, %165 : vector<8x16xf32>
    %c0_100 = arith.constant 0 : index
    %c2_101 = arith.constant 2 : index
    %c0_102 = arith.constant 0 : index
    %c0_103 = arith.constant 0 : index
    %c0_104 = arith.constant 0 : index
    %167 = vector.load %arg7[%c0_100, %c2_101, %c0_102, %c0_103, %c0_104] : memref<2x3x2x32x16xbf16, #tpu.memory_space<vmem>>, vector<1x1x1x32x16xbf16>
    %168 = vector.shape_cast %167 : vector<1x1x1x32x16xbf16> to vector<32x16xbf16>
    %cst_105 = arith.constant dense<0.000000e+00> : vector<8x16xf32>
    %169 = tpu.matmul %152, %168, %cst_105 {dimension_numbers = #tpu.dot_dimension_numbers<[1], [0], [0], [1], [0, 0, 1, 1], [], []>} : vector<8x32xbf16>, vector<32x16xbf16>, vector<8x16xf32> -> vector<8x16xf32>
    %c0_106 = arith.constant 0 : index
    %c2_107 = arith.constant 2 : index
    %c0_108 = arith.constant 0 : index
    %c0_109 = arith.constant 0 : index
    %c0_110 = arith.constant 0 : index
    %170 = vector.load %arg8[%c0_106, %c2_107, %c0_108, %c0_109, %c0_110] : memref<2x3x2x1x16xf32, #tpu.memory_space<vmem>>, vector<1x1x1x1x16xf32>
    %171 = vector.shape_cast %170 : vector<1x1x1x1x16xf32> to vector<1x16xf32>
    %172 = vector.broadcast %171 : vector<1x16xf32> to vector<8x16xf32>
    %173 = arith.addf %169, %172 : vector<8x16xf32>
    %174 = arith.truncf %159 : vector<8x16xf32> to vector<8x16xbf16>
    %175 = arith.truncf %166 : vector<8x16xf32> to vector<8x16xbf16>
    "tpu.trace_start"() <{level = 10 : i32, message = "qd,kd->qk"}> : () -> ()
    %cst_111 = arith.constant dense<0.000000e+00> : vector<8x8xf32>
    %176 = tpu.matmul %174, %175, %cst_111 {dimension_numbers = #tpu.dot_dimension_numbers<[1], [1], [0], [0], [0, 0, 1, 0], [], []>} : vector<8x16xbf16>, vector<8x16xbf16>, vector<8x8xf32> -> vector<8x8xf32>
    "tpu.trace_stop"() : () -> ()
    %177 = vector.broadcast %151 : vector<1x8xf32> to vector<8x8xf32>
    %178 = arith.addf %176, %177 : vector<8x8xf32>
    %cst_112 = arith.constant dense<0xFF800000> : vector<8xf32>
    %179 = vector.multi_reduction <maximumf>, %178, %cst_112 [1] : vector<8x8xf32> to vector<8xf32>
    %180 = vector.shape_cast %179 : vector<8xf32> to vector<8x1xf32>
    %181 = vector.broadcast %180 : vector<8x1xf32> to vector<8x8xf32>
    %182 = arith.subf %178, %181 : vector<8x8xf32>
    %183 = math.exp %182 : vector<8x8xf32>
    %cst_113 = arith.constant dense<0.000000e+00> : vector<8xf32>
    %184 = vector.multi_reduction <add>, %183, %cst_113 [1] : vector<8x8xf32> to vector<8xf32>
    %185 = vector.shape_cast %184 : vector<8xf32> to vector<8x1xf32>
    %186 = tpu.reciprocal %185 {approx = true} : vector<8x1xf32> -> vector<8x1xf32>
    %187 = vector.broadcast %186 : vector<8x1xf32> to vector<8x8xf32>
    %188 = arith.mulf %183, %187 : vector<8x8xf32>
    %189 = arith.truncf %188 : vector<8x8xf32> to vector<8x8xbf16>
    %190 = arith.truncf %173 : vector<8x16xf32> to vector<8x16xbf16>
    "tpu.trace_start"() <{level = 10 : i32, message = "qk,kd->qd"}> : () -> ()
    %cst_114 = arith.constant dense<0.000000e+00> : vector<8x16xf32>
    %191 = tpu.matmul %189, %190, %cst_114 {dimension_numbers = #tpu.dot_dimension_numbers<[1], [0], [0], [1], [0, 0, 1, 1], [], []>} : vector<8x8xbf16>, vector<8x16xbf16>, vector<8x16xf32> -> vector<8x16xf32>
    "tpu.trace_stop"() : () -> ()
    %c0_115 = arith.constant 0 : index
    %c0_116 = arith.constant 0 : index
    %c1_117 = arith.constant 1 : index
    %c0_118 = arith.constant 0 : index
    %c0_119 = arith.constant 0 : index
    %192 = vector.load %arg7[%c0_115, %c0_116, %c1_117, %c0_118, %c0_119] : memref<2x3x2x32x16xbf16, #tpu.memory_space<vmem>>, vector<1x1x1x32x16xbf16>
    %193 = vector.shape_cast %192 : vector<1x1x1x32x16xbf16> to vector<32x16xbf16>
    %cst_120 = arith.constant dense<0.000000e+00> : vector<8x16xf32>
    %194 = tpu.matmul %152, %193, %cst_120 {dimension_numbers = #tpu.dot_dimension_numbers<[1], [0], [0], [1], [0, 0, 1, 1], [], []>} : vector<8x32xbf16>, vector<32x16xbf16>, vector<8x16xf32> -> vector<8x16xf32>
    %c0_121 = arith.constant 0 : index
    %c0_122 = arith.constant 0 : index
    %c1_123 = arith.constant 1 : index
    %c0_124 = arith.constant 0 : index
    %c0_125 = arith.constant 0 : index
    %195 = vector.load %arg8[%c0_121, %c0_122, %c1_123, %c0_124, %c0_125] : memref<2x3x2x1x16xf32, #tpu.memory_space<vmem>>, vector<1x1x1x1x16xf32>
    %196 = vector.shape_cast %195 : vector<1x1x1x1x16xf32> to vector<1x16xf32>
    %197 = vector.broadcast %196 : vector<1x16xf32> to vector<8x16xf32>
    %198 = arith.addf %194, %197 : vector<8x16xf32>
    %c0_126 = arith.constant 0 : index
    %c1_127 = arith.constant 1 : index
    %c1_128 = arith.constant 1 : index
    %c0_129 = arith.constant 0 : index
    %c0_130 = arith.constant 0 : index
    %199 = vector.load %arg7[%c0_126, %c1_127, %c1_128, %c0_129, %c0_130] : memref<2x3x2x32x16xbf16, #tpu.memory_space<vmem>>, vector<1x1x1x32x16xbf16>
    %200 = vector.shape_cast %199 : vector<1x1x1x32x16xbf16> to vector<32x16xbf16>
    %cst_131 = arith.constant dense<0.000000e+00> : vector<8x16xf32>
    %201 = tpu.matmul %152, %200, %cst_131 {dimension_numbers = #tpu.dot_dimension_numbers<[1], [0], [0], [1], [0, 0, 1, 1], [], []>} : vector<8x32xbf16>, vector<32x16xbf16>, vector<8x16xf32> -> vector<8x16xf32>
    %c0_132 = arith.constant 0 : index
    %c1_133 = arith.constant 1 : index
    %c1_134 = arith.constant 1 : index
    %c0_135 = arith.constant 0 : index
    %c0_136 = arith.constant 0 : index
    %202 = vector.load %arg8[%c0_132, %c1_133, %c1_134, %c0_135, %c0_136] : memref<2x3x2x1x16xf32, #tpu.memory_space<vmem>>, vector<1x1x1x1x16xf32>
    %203 = vector.shape_cast %202 : vector<1x1x1x1x16xf32> to vector<1x16xf32>
    %204 = vector.broadcast %203 : vector<1x16xf32> to vector<8x16xf32>
    %205 = arith.addf %201, %204 : vector<8x16xf32>
    %c0_137 = arith.constant 0 : index
    %c2_138 = arith.constant 2 : index
    %c1_139 = arith.constant 1 : index
    %c0_140 = arith.constant 0 : index
    %c0_141 = arith.constant 0 : index
    %206 = vector.load %arg7[%c0_137, %c2_138, %c1_139, %c0_140, %c0_141] : memref<2x3x2x32x16xbf16, #tpu.memory_space<vmem>>, vector<1x1x1x32x16xbf16>
    %207 = vector.shape_cast %206 : vector<1x1x1x32x16xbf16> to vector<32x16xbf16>
    %cst_142 = arith.constant dense<0.000000e+00> : vector<8x16xf32>
    %208 = tpu.matmul %152, %207, %cst_142 {dimension_numbers = #tpu.dot_dimension_numbers<[1], [0], [0], [1], [0, 0, 1, 1], [], []>} : vector<8x32xbf16>, vector<32x16xbf16>, vector<8x16xf32> -> vector<8x16xf32>
    %c0_143 = arith.constant 0 : index
    %c2_144 = arith.constant 2 : index
    %c1_145 = arith.constant 1 : index
    %c0_146 = arith.constant 0 : index
    %c0_147 = arith.constant 0 : index
    %209 = vector.load %arg8[%c0_143, %c2_144, %c1_145, %c0_146, %c0_147] : memref<2x3x2x1x16xf32, #tpu.memory_space<vmem>>, vector<1x1x1x1x16xf32>
    %210 = vector.shape_cast %209 : vector<1x1x1x1x16xf32> to vector<1x16xf32>
    %211 = vector.broadcast %210 : vector<1x16xf32> to vector<8x16xf32>
    %212 = arith.addf %208, %211 : vector<8x16xf32>
    %213 = arith.truncf %198 : vector<8x16xf32> to vector<8x16xbf16>
    %214 = arith.truncf %205 : vector<8x16xf32> to vector<8x16xbf16>
    "tpu.trace_start"() <{level = 10 : i32, message = "qd,kd->qk"}> : () -> ()
    %cst_148 = arith.constant dense<0.000000e+00> : vector<8x8xf32>
    %215 = tpu.matmul %213, %214, %cst_148 {dimension_numbers = #tpu.dot_dimension_numbers<[1], [1], [0], [0], [0, 0, 1, 0], [], []>} : vector<8x16xbf16>, vector<8x16xbf16>, vector<8x8xf32> -> vector<8x8xf32>
    "tpu.trace_stop"() : () -> ()
    %216 = vector.broadcast %151 : vector<1x8xf32> to vector<8x8xf32>
    %217 = arith.addf %215, %216 : vector<8x8xf32>
    %cst_149 = arith.constant dense<0xFF800000> : vector<8xf32>
    %218 = vector.multi_reduction <maximumf>, %217, %cst_149 [1] : vector<8x8xf32> to vector<8xf32>
    %219 = vector.shape_cast %218 : vector<8xf32> to vector<8x1xf32>
    %220 = vector.broadcast %219 : vector<8x1xf32> to vector<8x8xf32>
    %221 = arith.subf %217, %220 : vector<8x8xf32>
    %222 = math.exp %221 : vector<8x8xf32>
    %cst_150 = arith.constant dense<0.000000e+00> : vector<8xf32>
    %223 = vector.multi_reduction <add>, %222, %cst_150 [1] : vector<8x8xf32> to vector<8xf32>
    %224 = vector.shape_cast %223 : vector<8xf32> to vector<8x1xf32>
    %225 = tpu.reciprocal %224 {approx = true} : vector<8x1xf32> -> vector<8x1xf32>
    %226 = vector.broadcast %225 : vector<8x1xf32> to vector<8x8xf32>
    %227 = arith.mulf %222, %226 : vector<8x8xf32>
    %228 = arith.truncf %227 : vector<8x8xf32> to vector<8x8xbf16>
    %229 = arith.truncf %212 : vector<8x16xf32> to vector<8x16xbf16>
    "tpu.trace_start"() <{level = 10 : i32, message = "qk,kd->qd"}> : () -> ()
    %cst_151 = arith.constant dense<0.000000e+00> : vector<8x16xf32>
    %230 = tpu.matmul %228, %229, %cst_151 {dimension_numbers = #tpu.dot_dimension_numbers<[1], [0], [0], [1], [0, 0, 1, 1], [], []>} : vector<8x8xbf16>, vector<8x16xbf16>, vector<8x16xf32> -> vector<8x16xf32>
    "tpu.trace_stop"() : () -> ()
    %231 = tpu.concatenate %191, %230 in 1 : vector<8x16xf32>, vector<8x16xf32> -> vector<8x32xf32>
    %232 = arith.truncf %231 : vector<8x32xf32> to vector<8x32xbf16>
    %c0_152 = arith.constant 0 : index
    %c0_153 = arith.constant 0 : index
    %c0_154 = arith.constant 0 : index
    %233 = vector.load %arg9[%c0_152, %c0_153, %c0_154] : memref<2x32x32xbf16, #tpu.memory_space<vmem>>, vector<1x32x32xbf16>
    %234 = vector.shape_cast %233 : vector<1x32x32xbf16> to vector<32x32xbf16>
    %cst_155 = arith.constant dense<0.000000e+00> : vector<8x32xf32>
    %235 = tpu.matmul %232, %234, %cst_155 {dimension_numbers = #tpu.dot_dimension_numbers<[1], [0], [0], [1], [0, 0, 1, 1], [], []>} : vector<8x32xbf16>, vector<32x32xbf16>, vector<8x32xf32> -> vector<8x32xf32>
    %c0_156 = arith.constant 0 : index
    %c0_157 = arith.constant 0 : index
    %c0_158 = arith.constant 0 : index
    %236 = vector.load %arg10[%c0_156, %c0_157, %c0_158] : memref<2x1x32xf32, #tpu.memory_space<vmem>>, vector<1x1x32xf32>
    %237 = vector.shape_cast %236 : vector<1x1x32xf32> to vector<1x32xf32>
    %238 = vector.broadcast %237 : vector<1x32xf32> to vector<8x32xf32>
    %239 = arith.addf %235, %238 : vector<8x32xf32>
    %240 = arith.addf %144, %239 : vector<8x32xf32>
    %c0_159 = arith.constant 0 : index
    %c0_160 = arith.constant 0 : index
    %c0_161 = arith.constant 0 : index
    %241 = vector.load %arg11[%c0_159, %c0_160, %c0_161] : memref<2x1x32xf32, #tpu.memory_space<vmem>>, vector<1x1x32xf32>
    %242 = vector.shape_cast %241 : vector<1x1x32xf32> to vector<1x32xf32>
    %c0_162 = arith.constant 0 : index
    %c0_163 = arith.constant 0 : index
    %c0_164 = arith.constant 0 : index
    %243 = vector.load %arg12[%c0_162, %c0_163, %c0_164] : memref<2x1x32xf32, #tpu.memory_space<vmem>>, vector<1x1x32xf32>
    %244 = vector.shape_cast %243 : vector<1x1x32xf32> to vector<1x32xf32>
    %cst_165 = arith.constant dense<0.000000e+00> : vector<8xf32>
    %245 = vector.multi_reduction <add>, %240, %cst_165 [1] : vector<8x32xf32> to vector<8xf32>
    %246 = vector.shape_cast %245 : vector<8xf32> to vector<8x1xf32>
    %cst_166 = arith.constant 3.200000e+01 : f32
    %247 = vector.broadcast %cst_166 : f32 to vector<8x1xf32>
    %248 = arith.divf %246, %247 : vector<8x1xf32>
    %249 = vector.broadcast %248 : vector<8x1xf32> to vector<8x32xf32>
    %250 = arith.subf %240, %249 : vector<8x32xf32>
    %251 = arith.mulf %250, %250 : vector<8x32xf32>
    %cst_167 = arith.constant dense<0.000000e+00> : vector<8xf32>
    %252 = vector.multi_reduction <add>, %251, %cst_167 [1] : vector<8x32xf32> to vector<8xf32>
    %253 = vector.shape_cast %252 : vector<8xf32> to vector<8x1xf32>
    %cst_168 = arith.constant 3.200000e+01 : f32
    %254 = vector.broadcast %cst_168 : f32 to vector<8x1xf32>
    %255 = arith.divf %253, %254 : vector<8x1xf32>
    %256 = vector.broadcast %248 : vector<8x1xf32> to vector<8x32xf32>
    %257 = arith.subf %240, %256 : vector<8x32xf32>
    %cst_169 = arith.constant 9.99999974E-6 : f32
    %258 = vector.broadcast %cst_169 : f32 to vector<8x1xf32>
    %259 = arith.addf %255, %258 : vector<8x1xf32>
    %260 = math.rsqrt %259 : vector<8x1xf32>
    %261 = vector.broadcast %260 : vector<8x1xf32> to vector<8x32xf32>
    %262 = arith.mulf %257, %261 : vector<8x32xf32>
    %263 = vector.broadcast %242 : vector<1x32xf32> to vector<8x32xf32>
    %264 = arith.mulf %262, %263 : vector<8x32xf32>
    %265 = vector.broadcast %244 : vector<1x32xf32> to vector<8x32xf32>
    %266 = arith.addf %264, %265 : vector<8x32xf32>
    %267 = arith.truncf %266 : vector<8x32xf32> to vector<8x32xbf16>
    %c0_170 = arith.constant 0 : index
    %c0_171 = arith.constant 0 : index
    %c0_172 = arith.constant 0 : index
    %268 = vector.load %arg13[%c0_170, %c0_171, %c0_172] : memref<2x32x64xbf16, #tpu.memory_space<vmem>>, vector<1x32x64xbf16>
    %269 = vector.shape_cast %268 : vector<1x32x64xbf16> to vector<32x64xbf16>
    %cst_173 = arith.constant dense<0.000000e+00> : vector<8x64xf32>
    %270 = tpu.matmul %267, %269, %cst_173 {dimension_numbers = #tpu.dot_dimension_numbers<[1], [0], [0], [1], [0, 0, 1, 1], [], []>} : vector<8x32xbf16>, vector<32x64xbf16>, vector<8x64xf32> -> vector<8x64xf32>
    %c0_174 = arith.constant 0 : index
    %c0_175 = arith.constant 0 : index
    %c0_176 = arith.constant 0 : index
    %271 = vector.load %arg14[%c0_174, %c0_175, %c0_176] : memref<2x1x64xf32, #tpu.memory_space<vmem>>, vector<1x1x64xf32>
    %272 = vector.shape_cast %271 : vector<1x1x64xf32> to vector<1x64xf32>
    %273 = vector.broadcast %272 : vector<1x64xf32> to vector<8x64xf32>
    %274 = arith.addf %270, %273 : vector<8x64xf32>
    %cst_177 = arith.constant 5.000000e-01 : f32
    %275 = vector.broadcast %cst_177 : f32 to vector<8x64xf32>
    %276 = arith.mulf %275, %274 : vector<8x64xf32>
    %cst_178 = arith.constant 4.471500e-02 : f32
    %277 = vector.broadcast %cst_178 : f32 to vector<8x64xf32>
    %278 = arith.mulf %277, %274 : vector<8x64xf32>
    %279 = arith.mulf %278, %274 : vector<8x64xf32>
    %280 = arith.mulf %279, %274 : vector<8x64xf32>
    %281 = arith.addf %274, %280 : vector<8x64xf32>
    %cst_179 = arith.constant 0.797884583 : f32
    %282 = vector.broadcast %cst_179 : f32 to vector<8x64xf32>
    %283 = arith.mulf %282, %281 : vector<8x64xf32>
    %284 = math.tanh %283 : vector<8x64xf32>
    %cst_180 = arith.constant 1.000000e+00 : f32
    %285 = vector.broadcast %cst_180 : f32 to vector<8x64xf32>
    %286 = arith.addf %285, %284 : vector<8x64xf32>
    %287 = arith.mulf %276, %286 : vector<8x64xf32>
    %288 = arith.truncf %287 : vector<8x64xf32> to vector<8x64xbf16>
    %c0_181 = arith.constant 0 : index
    %c0_182 = arith.constant 0 : index
    %c0_183 = arith.constant 0 : index
    %289 = vector.load %arg15[%c0_181, %c0_182, %c0_183] : memref<2x64x32xbf16, #tpu.memory_space<vmem>>, vector<1x64x32xbf16>
    %290 = vector.shape_cast %289 : vector<1x64x32xbf16> to vector<64x32xbf16>
    %cst_184 = arith.constant dense<0.000000e+00> : vector<8x32xf32>
    %291 = tpu.matmul %288, %290, %cst_184 {dimension_numbers = #tpu.dot_dimension_numbers<[1], [0], [0], [1], [0, 0, 1, 1], [], []>} : vector<8x64xbf16>, vector<64x32xbf16>, vector<8x32xf32> -> vector<8x32xf32>
    %c0_185 = arith.constant 0 : index
    %c0_186 = arith.constant 0 : index
    %c0_187 = arith.constant 0 : index
    %292 = vector.load %arg16[%c0_185, %c0_186, %c0_187] : memref<2x1x32xf32, #tpu.memory_space<vmem>>, vector<1x1x32xf32>
    %293 = vector.shape_cast %292 : vector<1x1x32xf32> to vector<1x32xf32>
    %294 = vector.broadcast %293 : vector<1x32xf32> to vector<8x32xf32>
    %295 = arith.addf %291, %294 : vector<8x32xf32>
    %296 = arith.addf %266, %295 : vector<8x32xf32>
    %c0_188 = arith.constant 0 : index
    %c0_189 = arith.constant 0 : index
    %c0_190 = arith.constant 0 : index
    %297 = vector.load %arg17[%c0_188, %c0_189, %c0_190] : memref<2x1x32xf32, #tpu.memory_space<vmem>>, vector<1x1x32xf32>
    %298 = vector.shape_cast %297 : vector<1x1x32xf32> to vector<1x32xf32>
    %c0_191 = arith.constant 0 : index
    %c0_192 = arith.constant 0 : index
    %c0_193 = arith.constant 0 : index
    %299 = vector.load %arg18[%c0_191, %c0_192, %c0_193] : memref<2x1x32xf32, #tpu.memory_space<vmem>>, vector<1x1x32xf32>
    %300 = vector.shape_cast %299 : vector<1x1x32xf32> to vector<1x32xf32>
    %cst_194 = arith.constant dense<0.000000e+00> : vector<8xf32>
    %301 = vector.multi_reduction <add>, %296, %cst_194 [1] : vector<8x32xf32> to vector<8xf32>
    %302 = vector.shape_cast %301 : vector<8xf32> to vector<8x1xf32>
    %cst_195 = arith.constant 3.200000e+01 : f32
    %303 = vector.broadcast %cst_195 : f32 to vector<8x1xf32>
    %304 = arith.divf %302, %303 : vector<8x1xf32>
    %305 = vector.broadcast %304 : vector<8x1xf32> to vector<8x32xf32>
    %306 = arith.subf %296, %305 : vector<8x32xf32>
    %307 = arith.mulf %306, %306 : vector<8x32xf32>
    %cst_196 = arith.constant dense<0.000000e+00> : vector<8xf32>
    %308 = vector.multi_reduction <add>, %307, %cst_196 [1] : vector<8x32xf32> to vector<8xf32>
    %309 = vector.shape_cast %308 : vector<8xf32> to vector<8x1xf32>
    %cst_197 = arith.constant 3.200000e+01 : f32
    %310 = vector.broadcast %cst_197 : f32 to vector<8x1xf32>
    %311 = arith.divf %309, %310 : vector<8x1xf32>
    %312 = vector.broadcast %304 : vector<8x1xf32> to vector<8x32xf32>
    %313 = arith.subf %296, %312 : vector<8x32xf32>
    %cst_198 = arith.constant 9.99999974E-6 : f32
    %314 = vector.broadcast %cst_198 : f32 to vector<8x1xf32>
    %315 = arith.addf %311, %314 : vector<8x1xf32>
    %316 = math.rsqrt %315 : vector<8x1xf32>
    %317 = vector.broadcast %316 : vector<8x1xf32> to vector<8x32xf32>
    %318 = arith.mulf %313, %317 : vector<8x32xf32>
    %319 = vector.broadcast %298 : vector<1x32xf32> to vector<8x32xf32>
    %320 = arith.mulf %318, %319 : vector<8x32xf32>
    %321 = vector.broadcast %300 : vector<1x32xf32> to vector<8x32xf32>
    %322 = arith.addf %320, %321 : vector<8x32xf32>
    %323 = arith.truncf %322 : vector<8x32xf32> to vector<8x32xbf16>
    %c1_199 = arith.constant 1 : index
    %c0_200 = arith.constant 0 : index
    %c0_201 = arith.constant 0 : index
    %c0_202 = arith.constant 0 : index
    %c0_203 = arith.constant 0 : index
    %324 = vector.load %arg7[%c1_199, %c0_200, %c0_201, %c0_202, %c0_203] : memref<2x3x2x32x16xbf16, #tpu.memory_space<vmem>>, vector<1x1x1x32x16xbf16>
    %325 = vector.shape_cast %324 : vector<1x1x1x32x16xbf16> to vector<32x16xbf16>
    %cst_204 = arith.constant dense<0.000000e+00> : vector<8x16xf32>
    %326 = tpu.matmul %323, %325, %cst_204 {dimension_numbers = #tpu.dot_dimension_numbers<[1], [0], [0], [1], [0, 0, 1, 1], [], []>} : vector<8x32xbf16>, vector<32x16xbf16>, vector<8x16xf32> -> vector<8x16xf32>
    %c1_205 = arith.constant 1 : index
    %c0_206 = arith.constant 0 : index
    %c0_207 = arith.constant 0 : index
    %c0_208 = arith.constant 0 : index
    %c0_209 = arith.constant 0 : index
    %327 = vector.load %arg8[%c1_205, %c0_206, %c0_207, %c0_208, %c0_209] : memref<2x3x2x1x16xf32, #tpu.memory_space<vmem>>, vector<1x1x1x1x16xf32>
    %328 = vector.shape_cast %327 : vector<1x1x1x1x16xf32> to vector<1x16xf32>
    %329 = vector.broadcast %328 : vector<1x16xf32> to vector<8x16xf32>
    %330 = arith.addf %326, %329 : vector<8x16xf32>
    %c1_210 = arith.constant 1 : index
    %c1_211 = arith.constant 1 : index
    %c0_212 = arith.constant 0 : index
    %c0_213 = arith.constant 0 : index
    %c0_214 = arith.constant 0 : index
    %331 = vector.load %arg7[%c1_210, %c1_211, %c0_212, %c0_213, %c0_214] : memref<2x3x2x32x16xbf16, #tpu.memory_space<vmem>>, vector<1x1x1x32x16xbf16>
    %332 = vector.shape_cast %331 : vector<1x1x1x32x16xbf16> to vector<32x16xbf16>
    %cst_215 = arith.constant dense<0.000000e+00> : vector<8x16xf32>
    %333 = tpu.matmul %323, %332, %cst_215 {dimension_numbers = #tpu.dot_dimension_numbers<[1], [0], [0], [1], [0, 0, 1, 1], [], []>} : vector<8x32xbf16>, vector<32x16xbf16>, vector<8x16xf32> -> vector<8x16xf32>
    %c1_216 = arith.constant 1 : index
    %c1_217 = arith.constant 1 : index
    %c0_218 = arith.constant 0 : index
    %c0_219 = arith.constant 0 : index
    %c0_220 = arith.constant 0 : index
    %334 = vector.load %arg8[%c1_216, %c1_217, %c0_218, %c0_219, %c0_220] : memref<2x3x2x1x16xf32, #tpu.memory_space<vmem>>, vector<1x1x1x1x16xf32>
    %335 = vector.shape_cast %334 : vector<1x1x1x1x16xf32> to vector<1x16xf32>
    %336 = vector.broadcast %335 : vector<1x16xf32> to vector<8x16xf32>
    %337 = arith.addf %333, %336 : vector<8x16xf32>
    %c1_221 = arith.constant 1 : index
    %c2_222 = arith.constant 2 : index
    %c0_223 = arith.constant 0 : index
    %c0_224 = arith.constant 0 : index
    %c0_225 = arith.constant 0 : index
    %338 = vector.load %arg7[%c1_221, %c2_222, %c0_223, %c0_224, %c0_225] : memref<2x3x2x32x16xbf16, #tpu.memory_space<vmem>>, vector<1x1x1x32x16xbf16>
    %339 = vector.shape_cast %338 : vector<1x1x1x32x16xbf16> to vector<32x16xbf16>
    %cst_226 = arith.constant dense<0.000000e+00> : vector<8x16xf32>
    %340 = tpu.matmul %323, %339, %cst_226 {dimension_numbers = #tpu.dot_dimension_numbers<[1], [0], [0], [1], [0, 0, 1, 1], [], []>} : vector<8x32xbf16>, vector<32x16xbf16>, vector<8x16xf32> -> vector<8x16xf32>
    %c1_227 = arith.constant 1 : index
    %c2_228 = arith.constant 2 : index
    %c0_229 = arith.constant 0 : index
    %c0_230 = arith.constant 0 : index
    %c0_231 = arith.constant 0 : index
    %341 = vector.load %arg8[%c1_227, %c2_228, %c0_229, %c0_230, %c0_231] : memref<2x3x2x1x16xf32, #tpu.memory_space<vmem>>, vector<1x1x1x1x16xf32>
    %342 = vector.shape_cast %341 : vector<1x1x1x1x16xf32> to vector<1x16xf32>
    %343 = vector.broadcast %342 : vector<1x16xf32> to vector<8x16xf32>
    %344 = arith.addf %340, %343 : vector<8x16xf32>
    %345 = arith.truncf %330 : vector<8x16xf32> to vector<8x16xbf16>
    %346 = arith.truncf %337 : vector<8x16xf32> to vector<8x16xbf16>
    "tpu.trace_start"() <{level = 10 : i32, message = "qd,kd->qk"}> : () -> ()
    %cst_232 = arith.constant dense<0.000000e+00> : vector<8x8xf32>
    %347 = tpu.matmul %345, %346, %cst_232 {dimension_numbers = #tpu.dot_dimension_numbers<[1], [1], [0], [0], [0, 0, 1, 0], [], []>} : vector<8x16xbf16>, vector<8x16xbf16>, vector<8x8xf32> -> vector<8x8xf32>
    "tpu.trace_stop"() : () -> ()
    %348 = vector.broadcast %151 : vector<1x8xf32> to vector<8x8xf32>
    %349 = arith.addf %347, %348 : vector<8x8xf32>
    %cst_233 = arith.constant dense<0xFF800000> : vector<8xf32>
    %350 = vector.multi_reduction <maximumf>, %349, %cst_233 [1] : vector<8x8xf32> to vector<8xf32>
    %351 = vector.shape_cast %350 : vector<8xf32> to vector<8x1xf32>
    %352 = vector.broadcast %351 : vector<8x1xf32> to vector<8x8xf32>
    %353 = arith.subf %349, %352 : vector<8x8xf32>
    %354 = math.exp %353 : vector<8x8xf32>
    %cst_234 = arith.constant dense<0.000000e+00> : vector<8xf32>
    %355 = vector.multi_reduction <add>, %354, %cst_234 [1] : vector<8x8xf32> to vector<8xf32>
    %356 = vector.shape_cast %355 : vector<8xf32> to vector<8x1xf32>
    %357 = tpu.reciprocal %356 {approx = true} : vector<8x1xf32> -> vector<8x1xf32>
    %358 = vector.broadcast %357 : vector<8x1xf32> to vector<8x8xf32>
    %359 = arith.mulf %354, %358 : vector<8x8xf32>
    %360 = arith.truncf %359 : vector<8x8xf32> to vector<8x8xbf16>
    %361 = arith.truncf %344 : vector<8x16xf32> to vector<8x16xbf16>
    "tpu.trace_start"() <{level = 10 : i32, message = "qk,kd->qd"}> : () -> ()
    %cst_235 = arith.constant dense<0.000000e+00> : vector<8x16xf32>
    %362 = tpu.matmul %360, %361, %cst_235 {dimension_numbers = #tpu.dot_dimension_numbers<[1], [0], [0], [1], [0, 0, 1, 1], [], []>} : vector<8x8xbf16>, vector<8x16xbf16>, vector<8x16xf32> -> vector<8x16xf32>
    "tpu.trace_stop"() : () -> ()
    %c1_236 = arith.constant 1 : index
    %c0_237 = arith.constant 0 : index
    %c1_238 = arith.constant 1 : index
    %c0_239 = arith.constant 0 : index
    %c0_240 = arith.constant 0 : index
    %363 = vector.load %arg7[%c1_236, %c0_237, %c1_238, %c0_239, %c0_240] : memref<2x3x2x32x16xbf16, #tpu.memory_space<vmem>>, vector<1x1x1x32x16xbf16>
    %364 = vector.shape_cast %363 : vector<1x1x1x32x16xbf16> to vector<32x16xbf16>
    %cst_241 = arith.constant dense<0.000000e+00> : vector<8x16xf32>
    %365 = tpu.matmul %323, %364, %cst_241 {dimension_numbers = #tpu.dot_dimension_numbers<[1], [0], [0], [1], [0, 0, 1, 1], [], []>} : vector<8x32xbf16>, vector<32x16xbf16>, vector<8x16xf32> -> vector<8x16xf32>
    %c1_242 = arith.constant 1 : index
    %c0_243 = arith.constant 0 : index
    %c1_244 = arith.constant 1 : index
    %c0_245 = arith.constant 0 : index
    %c0_246 = arith.constant 0 : index
    %366 = vector.load %arg8[%c1_242, %c0_243, %c1_244, %c0_245, %c0_246] : memref<2x3x2x1x16xf32, #tpu.memory_space<vmem>>, vector<1x1x1x1x16xf32>
    %367 = vector.shape_cast %366 : vector<1x1x1x1x16xf32> to vector<1x16xf32>
    %368 = vector.broadcast %367 : vector<1x16xf32> to vector<8x16xf32>
    %369 = arith.addf %365, %368 : vector<8x16xf32>
    %c1_247 = arith.constant 1 : index
    %c1_248 = arith.constant 1 : index
    %c1_249 = arith.constant 1 : index
    %c0_250 = arith.constant 0 : index
    %c0_251 = arith.constant 0 : index
    %370 = vector.load %arg7[%c1_247, %c1_248, %c1_249, %c0_250, %c0_251] : memref<2x3x2x32x16xbf16, #tpu.memory_space<vmem>>, vector<1x1x1x32x16xbf16>
    %371 = vector.shape_cast %370 : vector<1x1x1x32x16xbf16> to vector<32x16xbf16>
    %cst_252 = arith.constant dense<0.000000e+00> : vector<8x16xf32>
    %372 = tpu.matmul %323, %371, %cst_252 {dimension_numbers = #tpu.dot_dimension_numbers<[1], [0], [0], [1], [0, 0, 1, 1], [], []>} : vector<8x32xbf16>, vector<32x16xbf16>, vector<8x16xf32> -> vector<8x16xf32>
    %c1_253 = arith.constant 1 : index
    %c1_254 = arith.constant 1 : index
    %c1_255 = arith.constant 1 : index
    %c0_256 = arith.constant 0 : index
    %c0_257 = arith.constant 0 : index
    %373 = vector.load %arg8[%c1_253, %c1_254, %c1_255, %c0_256, %c0_257] : memref<2x3x2x1x16xf32, #tpu.memory_space<vmem>>, vector<1x1x1x1x16xf32>
    %374 = vector.shape_cast %373 : vector<1x1x1x1x16xf32> to vector<1x16xf32>
    %375 = vector.broadcast %374 : vector<1x16xf32> to vector<8x16xf32>
    %376 = arith.addf %372, %375 : vector<8x16xf32>
    %c1_258 = arith.constant 1 : index
    %c2_259 = arith.constant 2 : index
    %c1_260 = arith.constant 1 : index
    %c0_261 = arith.constant 0 : index
    %c0_262 = arith.constant 0 : index
    %377 = vector.load %arg7[%c1_258, %c2_259, %c1_260, %c0_261, %c0_262] : memref<2x3x2x32x16xbf16, #tpu.memory_space<vmem>>, vector<1x1x1x32x16xbf16>
    %378 = vector.shape_cast %377 : vector<1x1x1x32x16xbf16> to vector<32x16xbf16>
    %cst_263 = arith.constant dense<0.000000e+00> : vector<8x16xf32>
    %379 = tpu.matmul %323, %378, %cst_263 {dimension_numbers = #tpu.dot_dimension_numbers<[1], [0], [0], [1], [0, 0, 1, 1], [], []>} : vector<8x32xbf16>, vector<32x16xbf16>, vector<8x16xf32> -> vector<8x16xf32>
    %c1_264 = arith.constant 1 : index
    %c2_265 = arith.constant 2 : index
    %c1_266 = arith.constant 1 : index
    %c0_267 = arith.constant 0 : index
    %c0_268 = arith.constant 0 : index
    %380 = vector.load %arg8[%c1_264, %c2_265, %c1_266, %c0_267, %c0_268] : memref<2x3x2x1x16xf32, #tpu.memory_space<vmem>>, vector<1x1x1x1x16xf32>
    %381 = vector.shape_cast %380 : vector<1x1x1x1x16xf32> to vector<1x16xf32>
    %382 = vector.broadcast %381 : vector<1x16xf32> to vector<8x16xf32>
    %383 = arith.addf %379, %382 : vector<8x16xf32>
    %384 = arith.truncf %369 : vector<8x16xf32> to vector<8x16xbf16>
    %385 = arith.truncf %376 : vector<8x16xf32> to vector<8x16xbf16>
    "tpu.trace_start"() <{level = 10 : i32, message = "qd,kd->qk"}> : () -> ()
    %cst_269 = arith.constant dense<0.000000e+00> : vector<8x8xf32>
    %386 = tpu.matmul %384, %385, %cst_269 {dimension_numbers = #tpu.dot_dimension_numbers<[1], [1], [0], [0], [0, 0, 1, 0], [], []>} : vector<8x16xbf16>, vector<8x16xbf16>, vector<8x8xf32> -> vector<8x8xf32>
    "tpu.trace_stop"() : () -> ()
    %387 = vector.broadcast %151 : vector<1x8xf32> to vector<8x8xf32>
    %388 = arith.addf %386, %387 : vector<8x8xf32>
    %cst_270 = arith.constant dense<0xFF800000> : vector<8xf32>
    %389 = vector.multi_reduction <maximumf>, %388, %cst_270 [1] : vector<8x8xf32> to vector<8xf32>
    %390 = vector.shape_cast %389 : vector<8xf32> to vector<8x1xf32>
    %391 = vector.broadcast %390 : vector<8x1xf32> to vector<8x8xf32>
    %392 = arith.subf %388, %391 : vector<8x8xf32>
    %393 = math.exp %392 : vector<8x8xf32>
    %cst_271 = arith.constant dense<0.000000e+00> : vector<8xf32>
    %394 = vector.multi_reduction <add>, %393, %cst_271 [1] : vector<8x8xf32> to vector<8xf32>
    %395 = vector.shape_cast %394 : vector<8xf32> to vector<8x1xf32>
    %396 = tpu.reciprocal %395 {approx = true} : vector<8x1xf32> -> vector<8x1xf32>
    %397 = vector.broadcast %396 : vector<8x1xf32> to vector<8x8xf32>
    %398 = arith.mulf %393, %397 : vector<8x8xf32>
    %399 = arith.truncf %398 : vector<8x8xf32> to vector<8x8xbf16>
    %400 = arith.truncf %383 : vector<8x16xf32> to vector<8x16xbf16>
    "tpu.trace_start"() <{level = 10 : i32, message = "qk,kd->qd"}> : () -> ()
    %cst_272 = arith.constant dense<0.000000e+00> : vector<8x16xf32>
    %401 = tpu.matmul %399, %400, %cst_272 {dimension_numbers = #tpu.dot_dimension_numbers<[1], [0], [0], [1], [0, 0, 1, 1], [], []>} : vector<8x8xbf16>, vector<8x16xbf16>, vector<8x16xf32> -> vector<8x16xf32>
    "tpu.trace_stop"() : () -> ()
    %402 = tpu.concatenate %362, %401 in 1 : vector<8x16xf32>, vector<8x16xf32> -> vector<8x32xf32>
    %403 = arith.truncf %402 : vector<8x32xf32> to vector<8x32xbf16>
    %c1_273 = arith.constant 1 : index
    %c0_274 = arith.constant 0 : index
    %c0_275 = arith.constant 0 : index
    %404 = vector.load %arg9[%c1_273, %c0_274, %c0_275] : memref<2x32x32xbf16, #tpu.memory_space<vmem>>, vector<1x32x32xbf16>
    %405 = vector.shape_cast %404 : vector<1x32x32xbf16> to vector<32x32xbf16>
    %cst_276 = arith.constant dense<0.000000e+00> : vector<8x32xf32>
    %406 = tpu.matmul %403, %405, %cst_276 {dimension_numbers = #tpu.dot_dimension_numbers<[1], [0], [0], [1], [0, 0, 1, 1], [], []>} : vector<8x32xbf16>, vector<32x32xbf16>, vector<8x32xf32> -> vector<8x32xf32>
    %c1_277 = arith.constant 1 : index
    %c0_278 = arith.constant 0 : index
    %c0_279 = arith.constant 0 : index
    %407 = vector.load %arg10[%c1_277, %c0_278, %c0_279] : memref<2x1x32xf32, #tpu.memory_space<vmem>>, vector<1x1x32xf32>
    %408 = vector.shape_cast %407 : vector<1x1x32xf32> to vector<1x32xf32>
    %409 = vector.broadcast %408 : vector<1x32xf32> to vector<8x32xf32>
    %410 = arith.addf %406, %409 : vector<8x32xf32>
    %411 = arith.addf %322, %410 : vector<8x32xf32>
    %c1_280 = arith.constant 1 : index
    %c0_281 = arith.constant 0 : index
    %c0_282 = arith.constant 0 : index
    %412 = vector.load %arg11[%c1_280, %c0_281, %c0_282] : memref<2x1x32xf32, #tpu.memory_space<vmem>>, vector<1x1x32xf32>
    %413 = vector.shape_cast %412 : vector<1x1x32xf32> to vector<1x32xf32>
    %c1_283 = arith.constant 1 : index
    %c0_284 = arith.constant 0 : index
    %c0_285 = arith.constant 0 : index
    %414 = vector.load %arg12[%c1_283, %c0_284, %c0_285] : memref<2x1x32xf32, #tpu.memory_space<vmem>>, vector<1x1x32xf32>
    %415 = vector.shape_cast %414 : vector<1x1x32xf32> to vector<1x32xf32>
    %cst_286 = arith.constant dense<0.000000e+00> : vector<8xf32>
    %416 = vector.multi_reduction <add>, %411, %cst_286 [1] : vector<8x32xf32> to vector<8xf32>
    %417 = vector.shape_cast %416 : vector<8xf32> to vector<8x1xf32>
    %cst_287 = arith.constant 3.200000e+01 : f32
    %418 = vector.broadcast %cst_287 : f32 to vector<8x1xf32>
    %419 = arith.divf %417, %418 : vector<8x1xf32>
    %420 = vector.broadcast %419 : vector<8x1xf32> to vector<8x32xf32>
    %421 = arith.subf %411, %420 : vector<8x32xf32>
    %422 = arith.mulf %421, %421 : vector<8x32xf32>
    %cst_288 = arith.constant dense<0.000000e+00> : vector<8xf32>
    %423 = vector.multi_reduction <add>, %422, %cst_288 [1] : vector<8x32xf32> to vector<8xf32>
    %424 = vector.shape_cast %423 : vector<8xf32> to vector<8x1xf32>
    %cst_289 = arith.constant 3.200000e+01 : f32
    %425 = vector.broadcast %cst_289 : f32 to vector<8x1xf32>
    %426 = arith.divf %424, %425 : vector<8x1xf32>
    %427 = vector.broadcast %419 : vector<8x1xf32> to vector<8x32xf32>
    %428 = arith.subf %411, %427 : vector<8x32xf32>
    %cst_290 = arith.constant 9.99999974E-6 : f32
    %429 = vector.broadcast %cst_290 : f32 to vector<8x1xf32>
    %430 = arith.addf %426, %429 : vector<8x1xf32>
    %431 = math.rsqrt %430 : vector<8x1xf32>
    %432 = vector.broadcast %431 : vector<8x1xf32> to vector<8x32xf32>
    %433 = arith.mulf %428, %432 : vector<8x32xf32>
    %434 = vector.broadcast %413 : vector<1x32xf32> to vector<8x32xf32>
    %435 = arith.mulf %433, %434 : vector<8x32xf32>
    %436 = vector.broadcast %415 : vector<1x32xf32> to vector<8x32xf32>
    %437 = arith.addf %435, %436 : vector<8x32xf32>
    %438 = arith.truncf %437 : vector<8x32xf32> to vector<8x32xbf16>
    %c1_291 = arith.constant 1 : index
    %c0_292 = arith.constant 0 : index
    %c0_293 = arith.constant 0 : index
    %439 = vector.load %arg13[%c1_291, %c0_292, %c0_293] : memref<2x32x64xbf16, #tpu.memory_space<vmem>>, vector<1x32x64xbf16>
    %440 = vector.shape_cast %439 : vector<1x32x64xbf16> to vector<32x64xbf16>
    %cst_294 = arith.constant dense<0.000000e+00> : vector<8x64xf32>
    %441 = tpu.matmul %438, %440, %cst_294 {dimension_numbers = #tpu.dot_dimension_numbers<[1], [0], [0], [1], [0, 0, 1, 1], [], []>} : vector<8x32xbf16>, vector<32x64xbf16>, vector<8x64xf32> -> vector<8x64xf32>
    %c1_295 = arith.constant 1 : index
    %c0_296 = arith.constant 0 : index
    %c0_297 = arith.constant 0 : index
    %442 = vector.load %arg14[%c1_295, %c0_296, %c0_297] : memref<2x1x64xf32, #tpu.memory_space<vmem>>, vector<1x1x64xf32>
    %443 = vector.shape_cast %442 : vector<1x1x64xf32> to vector<1x64xf32>
    %444 = vector.broadcast %443 : vector<1x64xf32> to vector<8x64xf32>
    %445 = arith.addf %441, %444 : vector<8x64xf32>
    %cst_298 = arith.constant 5.000000e-01 : f32
    %446 = vector.broadcast %cst_298 : f32 to vector<8x64xf32>
    %447 = arith.mulf %446, %445 : vector<8x64xf32>
    %cst_299 = arith.constant 4.471500e-02 : f32
    %448 = vector.broadcast %cst_299 : f32 to vector<8x64xf32>
    %449 = arith.mulf %448, %445 : vector<8x64xf32>
    %450 = arith.mulf %449, %445 : vector<8x64xf32>
    %451 = arith.mulf %450, %445 : vector<8x64xf32>
    %452 = arith.addf %445, %451 : vector<8x64xf32>
    %cst_300 = arith.constant 0.797884583 : f32
    %453 = vector.broadcast %cst_300 : f32 to vector<8x64xf32>
    %454 = arith.mulf %453, %452 : vector<8x64xf32>
    %455 = math.tanh %454 : vector<8x64xf32>
    %cst_301 = arith.constant 1.000000e+00 : f32
    %456 = vector.broadcast %cst_301 : f32 to vector<8x64xf32>
    %457 = arith.addf %456, %455 : vector<8x64xf32>
    %458 = arith.mulf %447, %457 : vector<8x64xf32>
    %459 = arith.truncf %458 : vector<8x64xf32> to vector<8x64xbf16>
    %c1_302 = arith.constant 1 : index
    %c0_303 = arith.constant 0 : index
    %c0_304 = arith.constant 0 : index
    %460 = vector.load %arg15[%c1_302, %c0_303, %c0_304] : memref<2x64x32xbf16, #tpu.memory_space<vmem>>, vector<1x64x32xbf16>
    %461 = vector.shape_cast %460 : vector<1x64x32xbf16> to vector<64x32xbf16>
    %cst_305 = arith.constant dense<0.000000e+00> : vector<8x32xf32>
    %462 = tpu.matmul %459, %461, %cst_305 {dimension_numbers = #tpu.dot_dimension_numbers<[1], [0], [0], [1], [0, 0, 1, 1], [], []>} : vector<8x64xbf16>, vector<64x32xbf16>, vector<8x32xf32> -> vector<8x32xf32>
    %c1_306 = arith.constant 1 : index
    %c0_307 = arith.constant 0 : index
    %c0_308 = arith.constant 0 : index
    %463 = vector.load %arg16[%c1_306, %c0_307, %c0_308] : memref<2x1x32xf32, #tpu.memory_space<vmem>>, vector<1x1x32xf32>
    %464 = vector.shape_cast %463 : vector<1x1x32xf32> to vector<1x32xf32>
    %465 = vector.broadcast %464 : vector<1x32xf32> to vector<8x32xf32>
    %466 = arith.addf %462, %465 : vector<8x32xf32>
    %467 = arith.addf %437, %466 : vector<8x32xf32>
    %c1_309 = arith.constant 1 : index
    %c0_310 = arith.constant 0 : index
    %c0_311 = arith.constant 0 : index
    %468 = vector.load %arg17[%c1_309, %c0_310, %c0_311] : memref<2x1x32xf32, #tpu.memory_space<vmem>>, vector<1x1x32xf32>
    %469 = vector.shape_cast %468 : vector<1x1x32xf32> to vector<1x32xf32>
    %c1_312 = arith.constant 1 : index
    %c0_313 = arith.constant 0 : index
    %c0_314 = arith.constant 0 : index
    %470 = vector.load %arg18[%c1_312, %c0_313, %c0_314] : memref<2x1x32xf32, #tpu.memory_space<vmem>>, vector<1x1x32xf32>
    %471 = vector.shape_cast %470 : vector<1x1x32xf32> to vector<1x32xf32>
    %cst_315 = arith.constant dense<0.000000e+00> : vector<8xf32>
    %472 = vector.multi_reduction <add>, %467, %cst_315 [1] : vector<8x32xf32> to vector<8xf32>
    %473 = vector.shape_cast %472 : vector<8xf32> to vector<8x1xf32>
    %cst_316 = arith.constant 3.200000e+01 : f32
    %474 = vector.broadcast %cst_316 : f32 to vector<8x1xf32>
    %475 = arith.divf %473, %474 : vector<8x1xf32>
    %476 = vector.broadcast %475 : vector<8x1xf32> to vector<8x32xf32>
    %477 = arith.subf %467, %476 : vector<8x32xf32>
    %478 = arith.mulf %477, %477 : vector<8x32xf32>
    %cst_317 = arith.constant dense<0.000000e+00> : vector<8xf32>
    %479 = vector.multi_reduction <add>, %478, %cst_317 [1] : vector<8x32xf32> to vector<8xf32>
    %480 = vector.shape_cast %479 : vector<8xf32> to vector<8x1xf32>
    %cst_318 = arith.constant 3.200000e+01 : f32
    %481 = vector.broadcast %cst_318 : f32 to vector<8x1xf32>
    %482 = arith.divf %480, %481 : vector<8x1xf32>
    %483 = vector.broadcast %475 : vector<8x1xf32> to vector<8x32xf32>
    %484 = arith.subf %467, %483 : vector<8x32xf32>
    %cst_319 = arith.constant 9.99999974E-6 : f32
    %485 = vector.broadcast %cst_319 : f32 to vector<8x1xf32>
    %486 = arith.addf %482, %485 : vector<8x1xf32>
    %487 = math.rsqrt %486 : vector<8x1xf32>
    %488 = vector.broadcast %487 : vector<8x1xf32> to vector<8x32xf32>
    %489 = arith.mulf %484, %488 : vector<8x32xf32>
    %490 = vector.broadcast %469 : vector<1x32xf32> to vector<8x32xf32>
    %491 = arith.mulf %489, %490 : vector<8x32xf32>
    %492 = vector.broadcast %471 : vector<1x32xf32> to vector<8x32xf32>
    %493 = arith.addf %491, %492 : vector<8x32xf32>
    %494 = vector.extract_strided_slice %493 {offsets = [0, 0], sizes = [1, 32], strides = [1, 1]} : vector<8x32xf32> to vector<1x32xf32>
    %495 = arith.truncf %494 : vector<1x32xf32> to vector<1x32xbf16>
    %c0_320 = arith.constant 0 : index
    %c0_321 = arith.constant 0 : index
    %496 = vector.load %arg19[%c0_320, %c0_321] : memref<32x32xbf16, #tpu.memory_space<vmem>>, vector<32x32xbf16>
    %cst_322 = arith.constant dense<0.000000e+00> : vector<1x32xf32>
    %497 = tpu.matmul %495, %496, %cst_322 {dimension_numbers = #tpu.dot_dimension_numbers<[1], [0], [0], [1], [0, 0, 1, 1], [], []>} : vector<1x32xbf16>, vector<32x32xbf16>, vector<1x32xf32> -> vector<1x32xf32>
    %c0_323 = arith.constant 0 : index
    %c0_324 = arith.constant 0 : index
    %498 = vector.load %arg20[%c0_323, %c0_324] : memref<1x32xf32, #tpu.memory_space<vmem>>, vector<1x32xf32>
    %499 = arith.addf %497, %498 : vector<1x32xf32>
    %500 = math.tanh %499 : vector<1x32xf32>
    %c0_325 = arith.constant 0 : index
    %c0_326 = arith.constant 0 : index
    %501 = vector.load %arg21[%c0_325, %c0_326] : memref<1x32xf32, #tpu.memory_space<vmem>>, vector<1x32xf32>
    %502 = arith.mulf %500, %501 : vector<1x32xf32>
    %cst_327 = arith.constant dense<0.000000e+00> : vector<1xf32>
    %503 = vector.multi_reduction <add>, %502, %cst_327 [1] : vector<1x32xf32> to vector<1xf32>
    %504 = vector.shape_cast %503 : vector<1xf32> to vector<1x1xf32>
    %c0_328 = arith.constant 0 : index
    %c0_329 = arith.constant 0 : index
    %505 = vector.load %arg22[%c0_328, %c0_329] : memref<1x1xf32, #tpu.memory_space<vmem>>, vector<1x1xf32>
    %506 = arith.addf %504, %505 : vector<1x1xf32>
    %507 = vector.shape_cast %506 : vector<1x1xf32> to vector<1x1x1xf32>
    %c0_330 = arith.constant 0 : index
    %c0_331 = arith.constant 0 : index
    %c0_332 = arith.constant 0 : index
    %508 = vector.load %arg23[%c0_330, %c0_331, %c0_332] : memref<1x1x1xf32, #tpu.memory_space<vmem>>, vector<1x1x1xf32>
    tpu.vector_store %arg23[%c0_330, %c0_331, %c0_332], %507 {strides = array<i32>} : memref<1x1x1xf32, #tpu.memory_space<vmem>>, vector<1x1x1xf32>,
    return
  }
  func.func @transform_0(%arg0: i32, %arg1: memref<2x8xi32, #tpu.memory_space<smem>>) -> (i32, i32, i32) {
    %c0_i32 = arith.constant 0 : i32
    %c0_i32_0 = arith.constant 0 : i32
    %c0_i32_1 = arith.constant 0 : i32
    return %arg0, %c0_i32, %c0_i32_0 : i32, i32, i32
  }
  func.func @transform_1(%arg0: i32, %arg1: memref<2x8xi32, #tpu.memory_space<smem>>) -> (i32, i32, i32) {
    %c0_i32 = arith.constant 0 : i32
    %c0_i32_0 = arith.constant 0 : i32
    %c0_i32_1 = arith.constant 0 : i32
    %c0_i32_2 = arith.constant 0 : i32
    return %c0_i32, %c0_i32_0, %c0_i32_1 : i32, i32, i32
  }
  func.func @transform_2(%arg0: i32, %arg1: memref<2x8xi32, #tpu.memory_space<smem>>) -> (i32, i32, i32) {
    %c0_i32 = arith.constant 0 : i32
    %c0_i32_0 = arith.constant 0 : i32
    %c0_i32_1 = arith.constant 0 : i32
    %c0_i32_2 = arith.constant 0 : i32
    return %c0_i32, %c0_i32_0, %c0_i32_1 : i32, i32, i32
  }
  func.func @transform_3(%arg0: i32, %arg1: memref<2x8xi32, #tpu.memory_space<smem>>) -> (i32, i32) {
    %c0_i32 = arith.constant 0 : i32
    %c0_i32_0 = arith.constant 0 : i32
    %c0_i32_1 = arith.constant 0 : i32
    return %c0_i32, %c0_i32_0 : i32, i32
  }
  func.func @transform_4(%arg0: i32, %arg1: memref<2x8xi32, #tpu.memory_space<smem>>) -> (i32, i32) {
    %c0_i32 = arith.constant 0 : i32
    %c0_i32_0 = arith.constant 0 : i32
    %c0_i32_1 = arith.constant 0 : i32
    return %c0_i32, %c0_i32_0 : i32, i32
  }
  func.func @transform_5(%arg0: i32, %arg1: memref<2x8xi32, #tpu.memory_space<smem>>) -> (i32, i32, i32, i32, i32) {
    %c0_i32 = arith.constant 0 : i32
    %c0_i32_0 = arith.constant 0 : i32
    %c0_i32_1 = arith.constant 0 : i32
    %c0_i32_2 = arith.constant 0 : i32
    %c0_i32_3 = arith.constant 0 : i32
    %c0_i32_4 = arith.constant 0 : i32
    return %c0_i32, %c0_i32_0, %c0_i32_1, %c0_i32_2, %c0_i32_3 : i32, i32, i32, i32, i32
  }
  func.func @transform_6(%arg0: i32, %arg1: memref<2x8xi32, #tpu.memory_space<smem>>) -> (i32, i32, i32, i32, i32) {
    %c0_i32 = arith.constant 0 : i32
    %c0_i32_0 = arith.constant 0 : i32
    %c0_i32_1 = arith.constant 0 : i32
    %c0_i32_2 = arith.constant 0 : i32
    %c0_i32_3 = arith.constant 0 : i32
    %c0_i32_4 = arith.constant 0 : i32
    return %c0_i32, %c0_i32_0, %c0_i32_1, %c0_i32_2, %c0_i32_3 : i32, i32, i32, i32, i32
  }
  func.func @transform_7(%arg0: i32, %arg1: memref<2x8xi32, #tpu.memory_space<smem>>) -> (i32, i32, i32) {
    %c0_i32 = arith.constant 0 : i32
    %c0_i32_0 = arith.constant 0 : i32
    %c0_i32_1 = arith.constant 0 : i32
    %c0_i32_2 = arith.constant 0 : i32
    return %c0_i32, %c0_i32_0, %c0_i32_1 : i32, i32, i32
  }
  func.func @transform_8(%arg0: i32, %arg1: memref<2x8xi32, #tpu.memory_space<smem>>) -> (i32, i32, i32) {
    %c0_i32 = arith.constant 0 : i32
    %c0_i32_0 = arith.constant 0 : i32
    %c0_i32_1 = arith.constant 0 : i32
    %c0_i32_2 = arith.constant 0 : i32
    return %c0_i32, %c0_i32_0, %c0_i32_1 : i32, i32, i32
  }
  func.func @transform_9(%arg0: i32, %arg1: memref<2x8xi32, #tpu.memory_space<smem>>) -> (i32, i32, i32) {
    %c0_i32 = arith.constant 0 : i32
    %c0_i32_0 = arith.constant 0 : i32
    %c0_i32_1 = arith.constant 0 : i32
    %c0_i32_2 = arith.constant 0 : i32
    return %c0_i32, %c0_i32_0, %c0_i32_1 : i32, i32, i32
  }
  func.func @transform_10(%arg0: i32, %arg1: memref<2x8xi32, #tpu.memory_space<smem>>) -> (i32, i32, i32) {
    %c0_i32 = arith.constant 0 : i32
    %c0_i32_0 = arith.constant 0 : i32
    %c0_i32_1 = arith.constant 0 : i32
    %c0_i32_2 = arith.constant 0 : i32
    return %c0_i32, %c0_i32_0, %c0_i32_1 : i32, i32, i32
  }
  func.func @transform_11(%arg0: i32, %arg1: memref<2x8xi32, #tpu.memory_space<smem>>) -> (i32, i32, i32) {
    %c0_i32 = arith.constant 0 : i32
    %c0_i32_0 = arith.constant 0 : i32
    %c0_i32_1 = arith.constant 0 : i32
    %c0_i32_2 = arith.constant 0 : i32
    return %c0_i32, %c0_i32_0, %c0_i32_1 : i32, i32, i32
  }
  func.func @transform_12(%arg0: i32, %arg1: memref<2x8xi32, #tpu.memory_space<smem>>) -> (i32, i32, i32) {
    %c0_i32 = arith.constant 0 : i32
    %c0_i32_0 = arith.constant 0 : i32
    %c0_i32_1 = arith.constant 0 : i32
    %c0_i32_2 = arith.constant 0 : i32
    return %c0_i32, %c0_i32_0, %c0_i32_1 : i32, i32, i32
  }
  func.func @transform_13(%arg0: i32, %arg1: memref<2x8xi32, #tpu.memory_space<smem>>) -> (i32, i32, i32) {
    %c0_i32 = arith.constant 0 : i32
    %c0_i32_0 = arith.constant 0 : i32
    %c0_i32_1 = arith.constant 0 : i32
    %c0_i32_2 = arith.constant 0 : i32
    return %c0_i32, %c0_i32_0, %c0_i32_1 : i32, i32, i32
  }
  func.func @transform_14(%arg0: i32, %arg1: memref<2x8xi32, #tpu.memory_space<smem>>) -> (i32, i32, i32) {
    %c0_i32 = arith.constant 0 : i32
    %c0_i32_0 = arith.constant 0 : i32
    %c0_i32_1 = arith.constant 0 : i32
    %c0_i32_2 = arith.constant 0 : i32
    return %c0_i32, %c0_i32_0, %c0_i32_1 : i32, i32, i32
  }
  func.func @transform_15(%arg0: i32, %arg1: memref<2x8xi32, #tpu.memory_space<smem>>) -> (i32, i32, i32) {
    %c0_i32 = arith.constant 0 : i32
    %c0_i32_0 = arith.constant 0 : i32
    %c0_i32_1 = arith.constant 0 : i32
    %c0_i32_2 = arith.constant 0 : i32
    return %c0_i32, %c0_i32_0, %c0_i32_1 : i32, i32, i32
  }
  func.func @transform_16(%arg0: i32, %arg1: memref<2x8xi32, #tpu.memory_space<smem>>) -> (i32, i32, i32) {
    %c0_i32 = arith.constant 0 : i32
    %c0_i32_0 = arith.constant 0 : i32
    %c0_i32_1 = arith.constant 0 : i32
    %c0_i32_2 = arith.constant 0 : i32
    return %c0_i32, %c0_i32_0, %c0_i32_1 : i32, i32, i32
  }
  func.func @transform_17(%arg0: i32, %arg1: memref<2x8xi32, #tpu.memory_space<smem>>) -> (i32, i32) {
    %c0_i32 = arith.constant 0 : i32
    %c0_i32_0 = arith.constant 0 : i32
    %c0_i32_1 = arith.constant 0 : i32
    return %c0_i32, %c0_i32_0 : i32, i32
  }
  func.func @transform_18(%arg0: i32, %arg1: memref<2x8xi32, #tpu.memory_space<smem>>) -> (i32, i32) {
    %c0_i32 = arith.constant 0 : i32
    %c0_i32_0 = arith.constant 0 : i32
    %c0_i32_1 = arith.constant 0 : i32
    return %c0_i32, %c0_i32_0 : i32, i32
  }
  func.func @transform_19(%arg0: i32, %arg1: memref<2x8xi32, #tpu.memory_space<smem>>) -> (i32, i32) {
    %c0_i32 = arith.constant 0 : i32
    %c0_i32_0 = arith.constant 0 : i32
    %c0_i32_1 = arith.constant 0 : i32
    return %c0_i32, %c0_i32_0 : i32, i32
  }
  func.func @transform_20(%arg0: i32, %arg1: memref<2x8xi32, #tpu.memory_space<smem>>) -> (i32, i32) {
    %c0_i32 = arith.constant 0 : i32
    %c0_i32_0 = arith.constant 0 : i32
    %c0_i32_1 = arith.constant 0 : i32
    return %c0_i32, %c0_i32_0 : i32, i32
  }
  func.func @transform_21(%arg0: i32, %arg1: memref<2x8xi32, #tpu.memory_space<smem>>) -> (i32, i32, i32) {
    %c0_i32 = arith.constant 0 : i32
    %c0_i32_0 = arith.constant 0 : i32
    %c0_i32_1 = arith.constant 0 : i32
    return %arg0, %c0_i32, %c0_i32_0 : i32, i32, i32
  }
}

</mosaic_0001>

<llo_original>
// kernel: roberta_forward.1
$region0: #{roberta_forward.1}
  #allocation0 [shape = 'u32[]', space=smem, size = 0x4, offset = 0x4, fixed_abs, tag = 'smem constant byte address 0x4 - core index']
  #allocation1 [shape = 'u32[144,128]{1,0:T(1,128)}', space=vmem, size = 0x12000, scoped, tag = 'internal scratch']
  #allocation2 [shape = 'f32[8,32]{1,0:T(8,128)}', space=vmem, size = 0x1000, scoped, tag = 'scratch operand']
  #allocation3 [shape = 's32[1]{0}', space=sflag, size = 0x4, scoped, tag = 'scoped memory for roberta_forward.1']
  #allocation4 [shape = 'u8[1024]{0}', space=smem, size = 0x400, scoped, tag = 'prefetched SMEM operand 0']
  #allocation5 [shape = 'f32[1,1]{1,0:T(1,128)S(1)}', space=vmem, size = 0x200, scoped, tag = 'scoped memory for roberta_forward.1']
  %s0 = inlined_call_operand.vmem [shape: s32[2,8], index: 0, kind: input, shape index: {}]
  %s1 = inlined_call_operand.vmem [shape: s32[2,1,8], index: 1, kind: input, shape index: {}]
  %s2 = inlined_call_operand.vmem [shape: f32[100,1,32], index: 2, kind: input, shape index: {}]
  %s3 = inlined_call_operand.vmem [shape: f32[16,1,32], index: 3, kind: input, shape index: {}]
  %s4 = inlined_call_operand.vmem [shape: f32[1,32], index: 4, kind: input, shape index: {}]
  %s5 = inlined_call_operand.vmem [shape: f32[1,32], index: 5, kind: input, shape index: {}]
  %s6 = inlined_call_operand.vmem [shape: bf16[2,3,2,32,16], index: 6, kind: input, shape index: {}]
  %s7 = inlined_call_operand.vmem [shape: f32[2,3,2,1,16], index: 7, kind: input, shape index: {}]
  %s8 = inlined_call_operand.vmem [shape: bf16[2,32,32], index: 8, kind: input, shape index: {}]
  %s9 = inlined_call_operand.vmem [shape: f32[2,1,32], index: 9, kind: input, shape index: {}]
  %s10 = inlined_call_operand.vmem [shape: f32[2,1,32], index: 10, kind: input, shape index: {}]
  %s11 = inlined_call_operand.vmem [shape: f32[2,1,32], index: 11, kind: input, shape index: {}]
  %s12 = inlined_call_operand.vmem [shape: bf16[2,32,64], index: 12, kind: input, shape index: {}]
  %s13 = inlined_call_operand.vmem [shape: f32[2,1,64], index: 13, kind: input, shape index: {}]
  %s14 = inlined_call_operand.vmem [shape: bf16[2,64,32], index: 14, kind: input, shape index: {}]
  %s15 = inlined_call_operand.vmem [shape: f32[2,1,32], index: 15, kind: input, shape index: {}]
  %s16 = inlined_call_operand.vmem [shape: f32[2,1,32], index: 16, kind: input, shape index: {}]
  %s17 = inlined_call_operand.vmem [shape: f32[2,1,32], index: 17, kind: input, shape index: {}]
  %s18 = inlined_call_operand.vmem [shape: bf16[32,32], index: 18, kind: input, shape index: {}]
  %s19 = inlined_call_operand.vmem [shape: f32[1,32], index: 19, kind: input, shape index: {}]
  %s20 = inlined_call_operand.vmem [shape: f32[1,32], index: 20, kind: input, shape index: {}]
  %s21 = inlined_call_operand.<no memory space> [shape: f32[1,1], index: 21, kind: input, shape index: {}]
  %s22 = inlined_call_operand.vmem [shape: f32[2,1,1], index: 22, kind: output, shape index: {}]
  %s23 = sld [smem:[#allocation0]]
  $region117: #{roberta_forward.1} parent=0
    _
  %s25 = ssub.s32 1, %s23
  %s26 = scalar_select 0, %s25, %s23
  %s27 = sshll.u32 %s0, 4
  %s28 = int_to_ptr.vmem [resolvable:$true] %s27
  %30 = dma.vmem_to_smem %s28, 32, [#allocation4], [#allocation3]
  %v31 = vstv %s21
  %32 = vst [vmem:[#allocation5] sm:$0x1] %v31
  %33 = dma.done [#allocation3], 32
  %34 = sfence
  loop: start=0, step=1, limit=4
  $region2: #{roberta_forward.1} parent=0 // loop_pre_header
    _
  $region3: #{roberta_forward.1} parent=0 // loop_header
    %s36 = sphi 0, %s40
    %p37 = scmp.ge.s32.totalorder %s36, 4
    %s46 = sphi 0, %s48
    %s49 = sphi 0, %s46
    %s50 = sphi 0, %s49
    %s66 = sphi 0, %s50
    %s70 = sphi 0, %s70
    %s72 = sphi 0, %s70
    %s73 = sphi 0, %s72
    %s87 = sphi 0, %s73
    %s91 = sphi 0, %s91
    %s93 = sphi 0, %s91
    %s94 = sphi 0, %s93
    %s108 = sphi 0, %s94
    %s112 = sphi 0, %s112
    %s114 = sphi 0, %s112
    %s115 = sphi 0, %s114
    %s129 = sphi 0, %s115
    %s133 = sphi 0, %s133
    %s135 = sphi 0, %s133
    %s136 = sphi 0, %s135
    %s150 = sphi 0, %s136
    %s154 = sphi 0, %s154
    %s156 = sphi 0, %s154
    %s157 = sphi 0, %s156
    %s171 = sphi 0, %s157
    %s175 = sphi 0, %s175
    %s177 = sphi 0, %s175
    %s178 = sphi 0, %s177
    %s192 = sphi 0, %s178
    %s196 = sphi 0, %s196
    %s198 = sphi 0, %s196
    %s199 = sphi 0, %s198
    %s213 = sphi 0, %s199
    %s217 = sphi 0, %s217
    %s219 = sphi 0, %s217
    %s220 = sphi 0, %s219
    %s234 = sphi 0, %s220
    %s238 = sphi 0, %s238
    %s240 = sphi 0, %s238
    %s241 = sphi 0, %s240
    %s255 = sphi 0, %s241
    %s259 = sphi 0, %s259
    %s261 = sphi 0, %s259
    %s262 = sphi 0, %s261
    %s276 = sphi 0, %s262
    %s280 = sphi 0, %s280
    %s282 = sphi 0, %s280
    %s283 = sphi 0, %s282
    %s297 = sphi 0, %s283
    %s301 = sphi 0, %s301
    %s303 = sphi 0, %s301
    %s304 = sphi 0, %s303
    %s318 = sphi 0, %s304
    %s322 = sphi 0, %s322
    %s324 = sphi 0, %s322
    %s325 = sphi 0, %s324
    %s339 = sphi 0, %s325
    %s343 = sphi 0, %s343
    %s345 = sphi 0, %s343
    %s346 = sphi 0, %s345
    %s360 = sphi 0, %s346
    %s364 = sphi 0, %s364
    %s366 = sphi 0, %s364
    %s367 = sphi 0, %s366
    %s381 = sphi 0, %s367
    %s385 = sphi 0, %s385
    %s387 = sphi 0, %s385
    %s388 = sphi 0, %s387
    %s402 = sphi 0, %s388
    %s406 = sphi 0, %s406
    %s408 = sphi 0, %s406
    %s409 = sphi 0, %s408
    %s423 = sphi 0, %s409
    %s427 = sphi 0, %s427
    %s429 = sphi 0, %s427
    %s430 = sphi 0, %s429
    %s444 = sphi 0, %s430
    %s448 = sphi 0, %s448
    %s450 = sphi 0, %s448
    %s451 = sphi 0, %s450
    %s465 = sphi 0, %s451
    %s469 = sphi 0, %s469
    %s471 = sphi 0, %s469
    %s472 = sphi 0, %s471
    %s486 = sphi 0, %s472
    %s492 = sphi 0, %s494
    %s495 = sphi 0, %s492
    %s496 = sphi 0, %s495
    %s512 = sphi 0, %s496
  $region4: #{roberta_forward.1} parent=0 // loop_header_branch
    %39 = sbr.rel (%p37) target = $region8
  $region5: #{roberta_forward.1} parent=0 // loop_body
    %s41 = ssub.s32 %s36, 1
    %s42 = ssub.s32 %s36, 2
    %s43 = sadd.s32 %s36, 1
    %s44 = ssub.s32 %s36, %s43
    %p45 = scmp.eq.s32.totalorder %s44, 0
    %s47 = sadd.s32 %s46, 1
    %s48 = scalar_select %p45, %s46, %s47
    %p51 = pneg %p45
    %p52 = scmp.eq.s32.totalorder %s36, 1
    %p53 = por %p51, %p52
    %p54 = scmp.ne.s32.totalorder %s46, %s49
    %p55 = scmp.eq.s32.totalorder %s36, 0
    %p56 = por %p54, %p55
    %p57 = scmp.ne.s32.totalorder %s46, %s49
    %p58 = scmp.eq.s32.totalorder %s41, 1
    %p59 = por %p57, %p58
    %p60 = scmp.ne.s32.totalorder %s49, %s50
    %p61 = scmp.eq.s32.totalorder %s41, 0
    %p62 = por %p60, %p61
    %p63 = scmp.ne.s32.totalorder %s49, %s50
    %p64 = scmp.eq.s32.totalorder %s42, 1
    %p65 = por %p63, %p64
    %p67 = scmp.ne.s32.totalorder %s50, %s66
    %p68 = scmp.eq.s32.totalorder %s42, 0
    %p69 = por %p67, %p68
    %s71 = sadd.s32 %s70, 1
    %p74 = scmp.eq.s32.totalorder %s36, 1
    %p75 = scmp.ne.s32.totalorder %s70, %s72
    %p76 = scmp.eq.s32.totalorder %s36, 0
    %p77 = por %p75, %p76
    %p78 = scmp.ne.s32.totalorder %s70, %s72
    %p79 = scmp.eq.s32.totalorder %s41, 1
    %p80 = por %p78, %p79
    %p81 = scmp.ne.s32.totalorder %s72, %s73
    %p82 = scmp.eq.s32.totalorder %s41, 0
    %p83 = por %p81, %p82
    %p84 = scmp.ne.s32.totalorder %s72, %s73
    %p85 = scmp.eq.s32.totalorder %s42, 1
    %p86 = por %p84, %p85
    %p88 = scmp.ne.s32.totalorder %s73, %s87
    %p89 = scmp.eq.s32.totalorder %s42, 0
    %p90 = por %p88, %p89
    %s92 = sadd.s32 %s91, 1
    %p95 = scmp.eq.s32.totalorder %s36, 1
    %p96 = scmp.ne.s32.totalorder %s91, %s93
    %p97 = scmp.eq.s32.totalorder %s36, 0
    %p98 = por %p96, %p97
    %p99 = scmp.ne.s32.totalorder %s91, %s93
    %p100 = scmp.eq.s32.totalorder %s41, 1
    %p101 = por %p99, %p100
    %p102 = scmp.ne.s32.totalorder %s93, %s94
    %p103 = scmp.eq.s32.totalorder %s41, 0
    %p104 = por %p102, %p103
    %p105 = scmp.ne.s32.totalorder %s93, %s94
    %p106 = scmp.eq.s32.totalorder %s42, 1
    %p107 = por %p105, %p106
    %p109 = scmp.ne.s32.totalorder %s94, %s108
    %p110 = scmp.eq.s32.totalorder %s42, 0
    %p111 = por %p109, %p110
    %s113 = sadd.s32 %s112, 1
    %p116 = scmp.eq.s32.totalorder %s36, 1
    %p117 = scmp.ne.s32.totalorder %s112, %s114
    %p118 = scmp.eq.s32.totalorder %s36, 0
    %p119 = por %p117, %p118
    %p120 = scmp.ne.s32.totalorder %s112, %s114
    %p121 = scmp.eq.s32.totalorder %s41, 1
    %p122 = por %p120, %p121
    %p123 = scmp.ne.s32.totalorder %s114, %s115
    %p124 = scmp.eq.s32.totalorder %s41, 0
    %p125 = por %p123, %p124
    %p126 = scmp.ne.s32.totalorder %s114, %s115
    %p127 = scmp.eq.s32.totalorder %s42, 1
    %p128 = por %p126, %p127
    %p130 = scmp.ne.s32.totalorder %s115, %s129
    %p131 = scmp.eq.s32.totalorder %s42, 0
    %p132 = por %p130, %p131
    %s134 = sadd.s32 %s133, 1
    %p137 = scmp.eq.s32.totalorder %s36, 1
    %p138 = scmp.ne.s32.totalorder %s133, %s135
    %p139 = scmp.eq.s32.totalorder %s36, 0
    %p140 = por %p138, %p139
    %p141 = scmp.ne.s32.totalorder %s133, %s135
    %p142 = scmp.eq.s32.totalorder %s41, 1
    %p143 = por %p141, %p142
    %p144 = scmp.ne.s32.totalorder %s135, %s136
    %p145 = scmp.eq.s32.totalorder %s41, 0
    %p146 = por %p144, %p145
    %p147 = scmp.ne.s32.totalorder %s135, %s136
    %p148 = scmp.eq.s32.totalorder %s42, 1
    %p149 = por %p147, %p148
    %p151 = scmp.ne.s32.totalorder %s136, %s150
    %p152 = scmp.eq.s32.totalorder %s42, 0
    %p153 = por %p151, %p152
    %s155 = sadd.s32 %s154, 1
    %p158 = scmp.eq.s32.totalorder %s36, 1
    %p159 = scmp.ne.s32.totalorder %s154, %s156
    %p160 = scmp.eq.s32.totalorder %s36, 0
    %p161 = por %p159, %p160
    %p162 = scmp.ne.s32.totalorder %s154, %s156
    %p163 = scmp.eq.s32.totalorder %s41, 1
    %p164 = por %p162, %p163
    %p165 = scmp.ne.s32.totalorder %s156, %s157
    %p166 = scmp.eq.s32.totalorder %s41, 0
    %p167 = por %p165, %p166
    %p168 = scmp.ne.s32.totalorder %s156, %s157
    %p169 = scmp.eq.s32.totalorder %s42, 1
    %p170 = por %p168, %p169
    %p172 = scmp.ne.s32.totalorder %s157, %s171
    %p173 = scmp.eq.s32.totalorder %s42, 0
    %p174 = por %p172, %p173
    %s176 = sadd.s32 %s175, 1
    %p179 = scmp.eq.s32.totalorder %s36, 1
    %p180 = scmp.ne.s32.totalorder %s175, %s177
    %p181 = scmp.eq.s32.totalorder %s36, 0
    %p182 = por %p180, %p181
    %p183 = scmp.ne.s32.totalorder %s175, %s177
    %p184 = scmp.eq.s32.totalorder %s41, 1
    %p185 = por %p183, %p184
    %p186 = scmp.ne.s32.totalorder %s177, %s178
    %p187 = scmp.eq.s32.totalorder %s41, 0
    %p188 = por %p186, %p187
    %p189 = scmp.ne.s32.totalorder %s177, %s178
    %p190 = scmp.eq.s32.totalorder %s42, 1
    %p191 = por %p189, %p190
    %p193 = scmp.ne.s32.totalorder %s178, %s192
    %p194 = scmp.eq.s32.totalorder %s42, 0
    %p195 = por %p193, %p194
    %s197 = sadd.s32 %s196, 1
    %p200 = scmp.eq.s32.totalorder %s36, 1
    %p201 = scmp.ne.s32.totalorder %s196, %s198
    %p202 = scmp.eq.s32.totalorder %s36, 0
    %p203 = por %p201, %p202
    %p204 = scmp.ne.s32.totalorder %s196, %s198
    %p205 = scmp.eq.s32.totalorder %s41, 1
    %p206 = por %p204, %p205
    %p207 = scmp.ne.s32.totalorder %s198, %s199
    %p208 = scmp.eq.s32.totalorder %s41, 0
    %p209 = por %p207, %p208
    %p210 = scmp.ne.s32.totalorder %s198, %s199
    %p211 = scmp.eq.s32.totalorder %s42, 1
    %p212 = por %p210, %p211
    %p214 = scmp.ne.s32.totalorder %s199, %s213
    %p215 = scmp.eq.s32.totalorder %s42, 0
    %p216 = por %p214, %p215
    %s218 = sadd.s32 %s217, 1
    %p221 = scmp.eq.s32.totalorder %s36, 1
    %p222 = scmp.ne.s32.totalorder %s217, %s219
    %p223 = scmp.eq.s32.totalorder %s36, 0
    %p224 = por %p222, %p223
    %p225 = scmp.ne.s32.totalorder %s217, %s219
    %p226 = scmp.eq.s32.totalorder %s41, 1
    %p227 = por %p225, %p226
    %p228 = scmp.ne.s32.totalorder %s219, %s220
    %p229 = scmp.eq.s32.totalorder %s41, 0
    %p230 = por %p228, %p229
    %p231 = scmp.ne.s32.totalorder %s219, %s220
    %p232 = scmp.eq.s32.totalorder %s42, 1
    %p233 = por %p231, %p232
    %p235 = scmp.ne.s32.totalorder %s220, %s234
    %p236 = scmp.eq.s32.totalorder %s42, 0
    %p237 = por %p235, %p236
    %s239 = sadd.s32 %s238, 1
    %p242 = scmp.eq.s32.totalorder %s36, 1
    %p243 = scmp.ne.s32.totalorder %s238, %s240
    %p244 = scmp.eq.s32.totalorder %s36, 0
    %p245 = por %p243, %p244
    %p246 = scmp.ne.s32.totalorder %s238, %s240
    %p247 = scmp.eq.s32.totalorder %s41, 1
    %p248 = por %p246, %p247
    %p249 = scmp.ne.s32.totalorder %s240, %s241
    %p250 = scmp.eq.s32.totalorder %s41, 0
    %p251 = por %p249, %p250
    %p252 = scmp.ne.s32.totalorder %s240, %s241
    %p253 = scmp.eq.s32.totalorder %s42, 1
    %p254 = por %p252, %p253
    %p256 = scmp.ne.s32.totalorder %s241, %s255
    %p257 = scmp.eq.s32.totalorder %s42, 0
    %p258 = por %p256, %p257
    %s260 = sadd.s32 %s259, 1
    %p263 = scmp.eq.s32.totalorder %s36, 1
    %p264 = scmp.ne.s32.totalorder %s259, %s261
    %p265 = scmp.eq.s32.totalorder %s36, 0
    %p266 = por %p264, %p265
    %p267 = scmp.ne.s32.totalorder %s259, %s261
    %p268 = scmp.eq.s32.totalorder %s41, 1
    %p269 = por %p267, %p268
    %p270 = scmp.ne.s32.totalorder %s261, %s262
    %p271 = scmp.eq.s32.totalorder %s41, 0
    %p272 = por %p270, %p271
    %p273 = scmp.ne.s32.totalorder %s261, %s262
    %p274 = scmp.eq.s32.totalorder %s42, 1
    %p275 = por %p273, %p274
    %p277 = scmp.ne.s32.totalorder %s262, %s276
    %p278 = scmp.eq.s32.totalorder %s42, 0
    %p279 = por %p277, %p278
    %s281 = sadd.s32 %s280, 1
    %p284 = scmp.eq.s32.totalorder %s36, 1
    %p285 = scmp.ne.s32.totalorder %s280, %s282
    %p286 = scmp.eq.s32.totalorder %s36, 0
    %p287 = por %p285, %p286
    %p288 = scmp.ne.s32.totalorder %s280, %s282
    %p289 = scmp.eq.s32.totalorder %s41, 1
    %p290 = por %p288, %p289
    %p291 = scmp.ne.s32.totalorder %s282, %s283
    %p292 = scmp.eq.s32.totalorder %s41, 0
    %p293 = por %p291, %p292
    %p294 = scmp.ne.s32.totalorder %s282, %s283
    %p295 = scmp.eq.s32.totalorder %s42, 1
    %p296 = por %p294, %p295
    %p298 = scmp.ne.s32.totalorder %s283, %s297
    %p299 = scmp.eq.s32.totalorder %s42, 0
    %p300 = por %p298, %p299
    %s302 = sadd.s32 %s301, 1
    %p305 = scmp.eq.s32.totalorder %s36, 1
    %p306 = scmp.ne.s32.totalorder %s301, %s303
    %p307 = scmp.eq.s32.totalorder %s36, 0
    %p308 = por %p306, %p307
    %p309 = scmp.ne.s32.totalorder %s301, %s303
    %p310 = scmp.eq.s32.totalorder %s41, 1
    %p311 = por %p309, %p310
    %p312 = scmp.ne.s32.totalorder %s303, %s304
    %p313 = scmp.eq.s32.totalorder %s41, 0
    %p314 = por %p312, %p313
    %p315 = scmp.ne.s32.totalorder %s303, %s304
    %p316 = scmp.eq.s32.totalorder %s42, 1
    %p317 = por %p315, %p316
    %p319 = scmp.ne.s32.totalorder %s304, %s318
    %p320 = scmp.eq.s32.totalorder %s42, 0
    %p321 = por %p319, %p320
    %s323 = sadd.s32 %s322, 1
    %p326 = scmp.eq.s32.totalorder %s36, 1
    %p327 = scmp.ne.s32.totalorder %s322, %s324
    %p328 = scmp.eq.s32.totalorder %s36, 0
    %p329 = por %p327, %p328
    %p330 = scmp.ne.s32.totalorder %s322, %s324
    %p331 = scmp.eq.s32.totalorder %s41, 1
    %p332 = por %p330, %p331
    %p333 = scmp.ne.s32.totalorder %s324, %s325
    %p334 = scmp.eq.s32.totalorder %s41, 0
    %p335 = por %p333, %p334
    %p336 = scmp.ne.s32.totalorder %s324, %s325
    %p337 = scmp.eq.s32.totalorder %s42, 1
    %p338 = por %p336, %p337
    %p340 = scmp.ne.s32.totalorder %s325, %s339
    %p341 = scmp.eq.s32.totalorder %s42, 0
    %p342 = por %p340, %p341
    %s344 = sadd.s32 %s343, 1
    %p347 = scmp.eq.s32.totalorder %s36, 1
    %p348 = scmp.ne.s32.totalorder %s343, %s345
    %p349 = scmp.eq.s32.totalorder %s36, 0
    %p350 = por %p348, %p349
    %p351 = scmp.ne.s32.totalorder %s343, %s345
    %p352 = scmp.eq.s32.totalorder %s41, 1
    %p353 = por %p351, %p352
    %p354 = scmp.ne.s32.totalorder %s345, %s346
    %p355 = scmp.eq.s32.totalorder %s41, 0
    %p356 = por %p354, %p355
    %p357 = scmp.ne.s32.totalorder %s345, %s346
    %p358 = scmp.eq.s32.totalorder %s42, 1
    %p359 = por %p357, %p358
    %p361 = scmp.ne.s32.totalorder %s346, %s360
    %p362 = scmp.eq.s32.totalorder %s42, 0
    %p363 = por %p361, %p362
    %s365 = sadd.s32 %s364, 1
    %p368 = scmp.eq.s32.totalorder %s36, 1
    %p369 = scmp.ne.s32.totalorder %s364, %s366
    %p370 = scmp.eq.s32.totalorder %s36, 0
    %p371 = por %p369, %p370
    %p372 = scmp.ne.s32.totalorder %s364, %s366
    %p373 = scmp.eq.s32.totalorder %s41, 1
    %p374 = por %p372, %p373
    %p375 = scmp.ne.s32.totalorder %s366, %s367
    %p376 = scmp.eq.s32.totalorder %s41, 0
    %p377 = por %p375, %p376
    %p378 = scmp.ne.s32.totalorder %s366, %s367
    %p379 = scmp.eq.s32.totalorder %s42, 1
    %p380 = por %p378, %p379
    %p382 = scmp.ne.s32.totalorder %s367, %s381
    %p383 = scmp.eq.s32.totalorder %s42, 0
    %p384 = por %p382, %p383
    %s386 = sadd.s32 %s385, 1
    %p389 = scmp.eq.s32.totalorder %s36, 1
    %p390 = scmp.ne.s32.totalorder %s385, %s387
    %p391 = scmp.eq.s32.totalorder %s36, 0
    %p392 = por %p390, %p391
    %p393 = scmp.ne.s32.totalorder %s385, %s387
    %p394 = scmp.eq.s32.totalorder %s41, 1
    %p395 = por %p393, %p394
    %p396 = scmp.ne.s32.totalorder %s387, %s388
    %p397 = scmp.eq.s32.totalorder %s41, 0
    %p398 = por %p396, %p397
    %p399 = scmp.ne.s32.totalorder %s387, %s388
    %p400 = scmp.eq.s32.totalorder %s42, 1
    %p401 = por %p399, %p400
    %p403 = scmp.ne.s32.totalorder %s388, %s402
    %p404 = scmp.eq.s32.totalorder %s42, 0
    %p405 = por %p403, %p404
    %s407 = sadd.s32 %s406, 1
    %p410 = scmp.eq.s32.totalorder %s36, 1
    %p411 = scmp.ne.s32.totalorder %s406, %s408
    %p412 = scmp.eq.s32.totalorder %s36, 0
    %p413 = por %p411, %p412
    %p414 = scmp.ne.s32.totalorder %s406, %s408
    %p415 = scmp.eq.s32.totalorder %s41, 1
    %p416 = por %p414, %p415
    %p417 = scmp.ne.s32.totalorder %s408, %s409
    %p418 = scmp.eq.s32.totalorder %s41, 0
    %p419 = por %p417, %p418
    %p420 = scmp.ne.s32.totalorder %s408, %s409
    %p421 = scmp.eq.s32.totalorder %s42, 1
    %p422 = por %p420, %p421
    %p424 = scmp.ne.s32.totalorder %s409, %s423
    %p425 = scmp.eq.s32.totalorder %s42, 0
    %p426 = por %p424, %p425
    %s428 = sadd.s32 %s427, 1
    %p431 = scmp.eq.s32.totalorder %s36, 1
    %p432 = scmp.ne.s32.totalorder %s427, %s429
    %p433 = scmp.eq.s32.totalorder %s36, 0
    %p434 = por %p432, %p433
    %p435 = scmp.ne.s32.totalorder %s427, %s429
    %p436 = scmp.eq.s32.totalorder %s41, 1
    %p437 = por %p435, %p436
    %p438 = scmp.ne.s32.totalorder %s429, %s430
    %p439 = scmp.eq.s32.totalorder %s41, 0
    %p440 = por %p438, %p439
    %p441 = scmp.ne.s32.totalorder %s429, %s430
    %p442 = scmp.eq.s32.totalorder %s42, 1
    %p443 = por %p441, %p442
    %p445 = scmp.ne.s32.totalorder %s430, %s444
    %p446 = scmp.eq.s32.totalorder %s42, 0
    %p447 = por %p445, %p446
    %s449 = sadd.s32 %s448, 1
    %p452 = scmp.eq.s32.totalorder %s36, 1
    %p453 = scmp.ne.s32.totalorder %s448, %s450
    %p454 = scmp.eq.s32.totalorder %s36, 0
    %p455 = por %p453, %p454
    %p456 = scmp.ne.s32.totalorder %s448, %s450
    %p457 = scmp.eq.s32.totalorder %s41, 1
    %p458 = por %p456, %p457
    %p459 = scmp.ne.s32.totalorder %s450, %s451
    %p460 = scmp.eq.s32.totalorder %s41, 0
    %p461 = por %p459, %p460
    %p462 = scmp.ne.s32.totalorder %s450, %s451
    %p463 = scmp.eq.s32.totalorder %s42, 1
    %p464 = por %p462, %p463
    %p466 = scmp.ne.s32.totalorder %s451, %s465
    %p467 = scmp.eq.s32.totalorder %s42, 0
    %p468 = por %p466, %p467
    %s470 = sadd.s32 %s469, 1
    %p473 = scmp.eq.s32.totalorder %s36, 1
    %p474 = scmp.ne.s32.totalorder %s469, %s471
    %p475 = scmp.eq.s32.totalorder %s36, 0
    %p476 = por %p474, %p475
    %p477 = scmp.ne.s32.totalorder %s469, %s471
    %p478 = scmp.eq.s32.totalorder %s41, 1
    %p479 = por %p477, %p478
    %p480 = scmp.ne.s32.totalorder %s471, %s472
    %p481 = scmp.eq.s32.totalorder %s41, 0
    %p482 = por %p480, %p481
    %p483 = scmp.ne.s32.totalorder %s471, %s472
    %p484 = scmp.eq.s32.totalorder %s42, 1
    %p485 = por %p483, %p484
    %p487 = scmp.ne.s32.totalorder %s472, %s486
    %p488 = scmp.eq.s32.totalorder %s42, 0
    %p489 = por %p487, %p488
    %s490 = ssub.s32 %s36, %s43
    %p491 = scmp.eq.s32.totalorder %s490, 0
    %s493 = sadd.s32 %s492, 1
    %s494 = scalar_select %p491, %s492, %s493
    %p497 = pneg %p491
    %p498 = scmp.eq.s32.totalorder %s36, 1
    %p499 = por %p497, %p498
    %p500 = scmp.ne.s32.totalorder %s492, %s495
    %p501 = scmp.eq.s32.totalorder %s36, 0
    %p502 = por %p500, %p501
    %p503 = scmp.ne.s32.totalorder %s492, %s495
    %p504 = scmp.eq.s32.totalorder %s41, 1
    %p505 = por %p503, %p504
    %p506 = scmp.ne.s32.totalorder %s495, %s496
    %p507 = scmp.eq.s32.totalorder %s41, 0
    %p508 = por %p506, %p507
    %p509 = scmp.ne.s32.totalorder %s495, %s496
    %p510 = scmp.eq.s32.totalorder %s42, 1
    %p511 = por %p509, %p510
    %p513 = scmp.ne.s32.totalorder %s496, %s512
    %p514 = scmp.eq.s32.totalorder %s42, 0
    %p515 = por %p513, %p514
    %p516 = scmp.le.s32.totalorder 1, %s36
    %p517 = scmp.lt.s32.totalorder %s36, 3
    %p518 = pnand %p516, %p517
    %p519 = pneg %p518
    // Predicated region
    $region9: #{roberta_forward.1} parent=5 // pred_check
      _
    $region10: #{roberta_forward.1} parent=5 // pred_check_branch
      %521 = sbr.rel (%p518) target = $region12
    $region11: #{roberta_forward.1} parent=5 // pred_region
      %s522 = ssub.s32 %s36, 1
      // Predicated region
      $region13: #{roberta_forward.1} parent=11 // pred_check
        %p523 = pneg %p83
      $region14: #{roberta_forward.1} parent=11 // pred_check_branch
        %525 = sbr.rel (%p523) target = $region16
      $region15: #{roberta_forward.1} parent=11 // pred_region
        _
      $region16: #{roberta_forward.1} parent=11 // pred_fallthru
        _
      // Predicated region
      $region17: #{roberta_forward.1} parent=11 // pred_check
        %p526 = pneg %p104
      $region18: #{roberta_forward.1} parent=11 // pred_check_branch
        %528 = sbr.rel (%p526) target = $region20
      $region19: #{roberta_forward.1} parent=11 // pred_region
        _
      $region20: #{roberta_forward.1} parent=11 // pred_fallthru
        _
      // Predicated region
      $region21: #{roberta_forward.1} parent=11 // pred_check
        %p529 = pneg %p125
      $region22: #{roberta_forward.1} parent=11 // pred_check_branch
        %531 = sbr.rel (%p529) target = $region24
      $region23: #{roberta_forward.1} parent=11 // pred_region
        _
      $region24: #{roberta_forward.1} parent=11 // pred_fallthru
        _
      // Predicated region
      $region25: #{roberta_forward.1} parent=11 // pred_check
        %p532 = pneg %p146
      $region26: #{roberta_forward.1} parent=11 // pred_check_branch
        %534 = sbr.rel (%p532) target = $region28
      $region27: #{roberta_forward.1} parent=11 // pred_region
        _
      $region28: #{roberta_forward.1} parent=11 // pred_fallthru
        _
      // Predicated region
      $region29: #{roberta_forward.1} parent=11 // pred_check
        %p535 = pneg %p167
      $region30: #{roberta_forward.1} parent=11 // pred_check_branch
        %537 = sbr.rel (%p535) target = $region32
      $region31: #{roberta_forward.1} parent=11 // pred_region
        _
      $region32: #{roberta_forward.1} parent=11 // pred_fallthru
        _
      // Predicated region
      $region33: #{roberta_forward.1} parent=11 // pred_check
        %p538 = pneg %p188
      $region34: #{roberta_forward.1} parent=11 // pred_check_branch
        %540 = sbr.rel (%p538) target = $region36
      $region35: #{roberta_forward.1} parent=11 // pred_region
        _
      $region36: #{roberta_forward.1} parent=11 // pred_fallthru
        _
      // Predicated region
      $region37: #{roberta_forward.1} parent=11 // pred_check
        %p541 = pneg %p209
      $region38: #{roberta_forward.1} parent=11 // pred_check_branch
        %543 = sbr.rel (%p541) target = $region40
      $region39: #{roberta_forward.1} parent=11 // pred_region
        _
      $region40: #{roberta_forward.1} parent=11 // pred_fallthru
        _
      // Predicated region
      $region41: #{roberta_forward.1} parent=11 // pred_check
        %p544 = pneg %p230
      $region42: #{roberta_forward.1} parent=11 // pred_check_branch
        %546 = sbr.rel (%p544) target = $region44
      $region43: #{roberta_forward.1} parent=11 // pred_region
        _
      $region44: #{roberta_forward.1} parent=11 // pred_fallthru
        _
      // Predicated region
      $region45: #{roberta_forward.1} parent=11 // pred_check
        %p547 = pneg %p251
      $region46: #{roberta_forward.1} parent=11 // pred_check_branch
        %549 = sbr.rel (%p547) target = $region48
      $region47: #{roberta_forward.1} parent=11 // pred_region
        _
      $region48: #{roberta_forward.1} parent=11 // pred_fallthru
        _
      // Predicated region
      $region49: #{roberta_forward.1} parent=11 // pred_check
        %p550 = pneg %p272
      $region50: #{roberta_forward.1} parent=11 // pred_check_branch
        %552 = sbr.rel (%p550) target = $region52
      $region51: #{roberta_forward.1} parent=11 // pred_region
        _
      $region52: #{roberta_forward.1} parent=11 // pred_fallthru
        _
      // Predicated region
      $region53: #{roberta_forward.1} parent=11 // pred_check
        %p553 = pneg %p293
      $region54: #{roberta_forward.1} parent=11 // pred_check_branch
        %555 = sbr.rel (%p553) target = $region56
      $region55: #{roberta_forward.1} parent=11 // pred_region
        _
      $region56: #{roberta_forward.1} parent=11 // pred_fallthru
        _
      // Predicated region
      $region57: #{roberta_forward.1} parent=11 // pred_check
        %p556 = pneg %p314
      $region58: #{roberta_forward.1} parent=11 // pred_check_branch
        %558 = sbr.rel (%p556) target = $region60
      $region59: #{roberta_forward.1} parent=11 // pred_region
        _
      $region60: #{roberta_forward.1} parent=11 // pred_fallthru
        _
      // Predicated region
      $region61: #{roberta_forward.1} parent=11 // pred_check
        %p559 = pneg %p335
      $region62: #{roberta_forward.1} parent=11 // pred_check_branch
        %561 = sbr.rel (%p559) target = $region64
      $region63: #{roberta_forward.1} parent=11 // pred_region
        _
      $region64: #{roberta_forward.1} parent=11 // pred_fallthru
        _
      // Predicated region
      $region65: #{roberta_forward.1} parent=11 // pred_check
        %p562 = pneg %p356
      $region66: #{roberta_forward.1} parent=11 // pred_check_branch
        %564 = sbr.rel (%p562) target = $region68
      $region67: #{roberta_forward.1} parent=11 // pred_region
        _
      $region68: #{roberta_forward.1} parent=11 // pred_fallthru
        _
      // Predicated region
      $region69: #{roberta_forward.1} parent=11 // pred_check
        %p565 = pneg %p377
      $region70: #{roberta_forward.1} parent=11 // pred_check_branch
        %567 = sbr.rel (%p565) target = $region72
      $region71: #{roberta_forward.1} parent=11 // pred_region
        _
      $region72: #{roberta_forward.1} parent=11 // pred_fallthru
        _
      // Predicated region
      $region73: #{roberta_forward.1} parent=11 // pred_check
        %p568 = pneg %p398
      $region74: #{roberta_forward.1} parent=11 // pred_check_branch
        %570 = sbr.rel (%p568) target = $region76
      $region75: #{roberta_forward.1} parent=11 // pred_region
        _
      $region76: #{roberta_forward.1} parent=11 // pred_fallthru
        _
      // Predicated region
      $region77: #{roberta_forward.1} parent=11 // pred_check
        %p571 = pneg %p419
      $region78: #{roberta_forward.1} parent=11 // pred_check_branch
        %573 = sbr.rel (%p571) target = $region80
      $region79: #{roberta_forward.1} parent=11 // pred_region
        _
      $region80: #{roberta_forward.1} parent=11 // pred_fallthru
        _
      // Predicated region
      $region81: #{roberta_forward.1} parent=11 // pred_check
        %p574 = pneg %p440
      $region82: #{roberta_forward.1} parent=11 // pred_check_branch
        %576 = sbr.rel (%p574) target = $region84
      $region83: #{roberta_forward.1} parent=11 // pred_region
        _
      $region84: #{roberta_forward.1} parent=11 // pred_fallthru
        _
      // Predicated region
      $region85: #{roberta_forward.1} parent=11 // pred_check
        %p577 = pneg %p461
      $region86: #{roberta_forward.1} parent=11 // pred_check_branch
        %579 = sbr.rel (%p577) target = $region88
      $region87: #{roberta_forward.1} parent=11 // pred_region
        _
      $region88: #{roberta_forward.1} parent=11 // pred_fallthru
        _
      // Predicated region
      $region89: #{roberta_forward.1} parent=11 // pred_check
        %p580 = pneg %p482
      $region90: #{roberta_forward.1} parent=11 // pred_check_branch
        %582 = sbr.rel (%p580) target = $region92
      $region91: #{roberta_forward.1} parent=11 // pred_region
        _
      $region92: #{roberta_forward.1} parent=11 // pred_fallthru
        _
    $region12: #{roberta_forward.1} parent=5 // pred_fallthru
      _
    %p583 = scmp.lt.s32.totalorder %s36, 2
    // Predicated region
    $region93: #{roberta_forward.1} parent=5 // pred_check
      %p584 = pneg %p583
    $region94: #{roberta_forward.1} parent=5 // pred_check_branch
      %586 = sbr.rel (%p584) target = $region96
    $region95: #{roberta_forward.1} parent=5 // pred_region
      // Predicated region
      $region97: #{roberta_forward.1} parent=95 // pred_check
        %p587 = pneg %p56
      $region98: #{roberta_forward.1} parent=95 // pred_check_branch
        %589 = sbr.rel (%p587) target = $region100
      $region99: #{roberta_forward.1} parent=95 // pred_region
        %p590 = scmp.lt.s32.totalorder %s36, 1
        %s591 = scalar_select %p590, %s36, 1
        %s592 = scalar_lea.vmem %s1, %s591
      $region100: #{roberta_forward.1} parent=95 // pred_fallthru
        _
    $region96: #{roberta_forward.1} parent=5 // pred_fallthru
      _
    %p593 = scmp.le.s32.totalorder 1, %s36
    %p594 = scmp.lt.s32.totalorder %s36, 3
    %p595 = pnand %p593, %p594
    %p596 = pneg %p595
    // Predicated region
    $region101: #{roberta_forward.1} parent=5 // pred_check
      _
    $region102: #{roberta_forward.1} parent=5 // pred_check_branch
      %598 = sbr.rel (%p595) target = $region104
    $region103: #{roberta_forward.1} parent=5 // pred_region
      %s599 = ssub.s32 %s36, 1
      %p600 = scmp.lt.s32.totalorder %s41, 1
      %s601 = scalar_select %p600, %s41, 1
      %s602 = scalar_lea.vmem %s1, %s601
      %p603 = pneg %p62
      %p604 = pneg %p59
      %p605 = pneg %p83
      %p606 = pneg %p80
      %p607 = pneg %p104
      %p608 = pneg %p101
      %p609 = pneg %p125
      %p610 = pneg %p122
      %p611 = pneg %p146
      %p612 = pneg %p143
      %p613 = pneg %p167
      %p614 = pneg %p164
      %p615 = pneg %p188
      %p616 = pneg %p185
      %p617 = pneg %p209
      %p618 = pneg %p206
      %p619 = pneg %p230
      %p620 = pneg %p227
      %p621 = pneg %p251
      %p622 = pneg %p248
      %p623 = pneg %p272
      %p624 = pneg %p269
      %p625 = pneg %p293
      %p626 = pneg %p290
      %p627 = pneg %p314
      %p628 = pneg %p311
      %p629 = pneg %p335
      %p630 = pneg %p332
      %p631 = pneg %p356
      %p632 = pneg %p353
      %p633 = pneg %p377
      %p634 = pneg %p374
      %p635 = pneg %p398
      %p636 = pneg %p395
      %p637 = pneg %p419
      %p638 = pneg %p416
      %p639 = pneg %p440
      %p640 = pneg %p437
      %p641 = pneg %p461
      %p642 = pneg %p458
      %p643 = pneg %p482
      %p644 = pneg %p479
      %p645 = pneg %p508
      %p646 = pneg %p505
      %p647 = scmp.lt.s32.totalorder %s41, 1
      %s648 = scalar_select %p647, %s41, 1
      %s649 = scalar_lea.vmem %s22, %s648
      %p650 = scmp.lt.s32.totalorder %s41, 1
      %s651 = scalar_select %p650, %s41, 1
      %s652 = scalar_lea.vmem %s1, %s651
      %p653 = scmp.lt.s32.totalorder %s41, 1
      %s654 = scalar_select %p653, %s41, 1
      %s655 = scalar_lea.vmem %s22, %s654
      %s657 = smul.u32 %s41, 128
      %s658 = sld [smem:[#allocation4 + %s657]]
      %p659 = scmp.ne.s32.totalorder %s658, 1
      %s660 = scalar_select %p659, 1, 0
      %s661 = smul.u32 %s660, %s660
      %s662 = sadd.s32 %s661, 1
      %s663 = scalar_lea.vmem %s2, %s658
      %v664 = vld [vmem:[%s663] sm:$0x1]
      %s665 = scalar_lea.vmem %s3, %s662
      %v666 = vld [vmem:[%s665] sm:$0x1]
      %v667 = vadd.f32 %v664, %v666
      %vm668 = vcmask 253952
      %669 = vst.msk [vmem:[#allocation2] sm:$0x1] %vm668, %v667
      %s670 = sadd.s32 %s657, 1
      %s671 = sld [smem:[#allocation4 + %s670]]
      %p672 = scmp.ne.s32.totalorder %s671, 1
      %s673 = scalar_select %p672, 1, 0
      %s674 = sadd.s32 %s660, %s673
      %s675 = smul.u32 %s674, %s673
      %s676 = sadd.s32 %s675, 1
      %s677 = scalar_lea.vmem %s2, %s671
      %v678 = vld [vmem:[%s677] sm:$0x1]
      %s679 = scalar_lea.vmem %s3, %s676
      %v680 = vld [vmem:[%s679] sm:$0x1]
      %v681 = vadd.f32 %v678, %v680
      %682 = vst.msk [vmem:[#allocation2 + $0x1] sm:$0x1] %vm668, %v681
      %s683 = sadd.s32 %s657, 2
      %s684 = sld [smem:[#allocation4 + %s683]]
      %p685 = scmp.ne.s32.totalorder %s684, 1
      %s686 = scalar_select %p685, 1, 0
      %s687 = sadd.s32 %s674, %s686
      %s688 = smul.u32 %s687, %s686
      %s689 = sadd.s32 %s688, 1
      %s690 = scalar_lea.vmem %s2, %s684
      %v691 = vld [vmem:[%s690] sm:$0x1]
      %s692 = scalar_lea.vmem %s3, %s689
      %v693 = vld [vmem:[%s692] sm:$0x1]
      %v694 = vadd.f32 %v691, %v693
      %695 = vst.msk [vmem:[#allocation2 + $0x2] sm:$0x1] %vm668, %v694
      %s696 = sadd.s32 %s657, 3
      %s697 = sld [smem:[#allocation4 + %s696]]
      %p698 = scmp.ne.s32.totalorder %s697, 1
      %s699 = scalar_select %p698, 1, 0
      %s700 = sadd.s32 %s687, %s699
      %s701 = smul.u32 %s700, %s699
      %s702 = sadd.s32 %s701, 1
      %s703 = scalar_lea.vmem %s2, %s697
      %v704 = vld [vmem:[%s703] sm:$0x1]
      %s705 = scalar_lea.vmem %s3, %s702
      %v706 = vld [vmem:[%s705] sm:$0x1]
      %v707 = vadd.f32 %v704, %v706
      %708 = vst.msk [vmem:[#allocation2 + $0x3] sm:$0x1] %vm668, %v707
      %s709 = sadd.s32 %s657, 4
      %s710 = sld [smem:[#allocation4 + %s709]]
      %p711 = scmp.ne.s32.totalorder %s710, 1
      %s712 = scalar_select %p711, 1, 0
      %s713 = sadd.s32 %s700, %s712
      %s714 = smul.u32 %s713, %s712
      %s715 = sadd.s32 %s714, 1
      %s716 = scalar_lea.vmem %s2, %s710
      %v717 = vld [vmem:[%s716] sm:$0x1]
      %s718 = scalar_lea.vmem %s3, %s715
      %v719 = vld [vmem:[%s718] sm:$0x1]
      %v720 = vadd.f32 %v717, %v719
      %721 = vst.msk [vmem:[#allocation2 + $0x4] sm:$0x1] %vm668, %v720
      %s722 = sadd.s32 %s657, 5
      %s723 = sld [smem:[#allocation4 + %s722]]
      %p724 = scmp.ne.s32.totalorder %s723, 1
      %s725 = scalar_select %p724, 1, 0
      %s726 = sadd.s32 %s713, %s725
      %s727 = smul.u32 %s726, %s725
      %s728 = sadd.s32 %s727, 1
      %s729 = scalar_lea.vmem %s2, %s723
      %v730 = vld [vmem:[%s729] sm:$0x1]
      %s731 = scalar_lea.vmem %s3, %s728
      %v732 = vld [vmem:[%s731] sm:$0x1]
      %v733 = vadd.f32 %v730, %v732
      %734 = vst.msk [vmem:[#allocation2 + $0x5] sm:$0x1] %vm668, %v733
      %s735 = sadd.s32 %s657, 6
      %s736 = sld [smem:[#allocation4 + %s735]]
      %p737 = scmp.ne.s32.totalorder %s736, 1
      %s738 = scalar_select %p737, 1, 0
      %s739 = sadd.s32 %s726, %s738
      %s740 = smul.u32 %s739, %s738
      %s741 = sadd.s32 %s740, 1
      %s742 = scalar_lea.vmem %s2, %s736
      %v743 = vld [vmem:[%s742] sm:$0x1]
      %s744 = scalar_lea.vmem %s3, %s741
      %v745 = vld [vmem:[%s744] sm:$0x1]
      %v746 = vadd.f32 %v743, %v745
      %747 = vst.msk [vmem:[#allocation2 + $0x6] sm:$0x1] %vm668, %v746
      %s748 = sadd.s32 %s657, 7
      %s749 = sld [smem:[#allocation4 + %s748]]
      %p750 = scmp.ne.s32.totalorder %s749, 1
      %s751 = scalar_select %p750, 1, 0
      %s752 = sadd.s32 %s739, %s751
      %s753 = smul.u32 %s752, %s751
      %s754 = sadd.s32 %s753, 1
      %s755 = scalar_lea.vmem %s2, %s749
      %v756 = vld [vmem:[%s755] sm:$0x1]
      %s757 = scalar_lea.vmem %s3, %s754
      %v758 = vld [vmem:[%s757] sm:$0x1]
      %v759 = vadd.f32 %v756, %v758
      %760 = vst.msk [vmem:[#allocation2 + $0x7] sm:$0x1] %vm668, %v759
      %v761 = vld [vmem:[#allocation2] sm:$0xff]
      %v762 = vld [vmem:[%s4] sm:$0x1]
      %v763 = vld [vmem:[%s5] sm:$0x1]
      %vm764 = vcmask 261120
      %v765 = vsel %vm764, %v761, 0.0
      %766 = vadd.xlane.f32.xlu0 %v765
      %v767 = vpop.xlane.xlu0 %766
      %v768 = vrcp.pop 32.0
      %v769 = vmul.f32 %v767, %v768
      %v770 = vsub.f32 %v761, %v769
      %v771 = vmul.f32 %v770, %v770
      %v772 = vsel %vm764, %v771, 0.0
      %773 = vadd.xlane.f32.xlu0 %v772
      %v774 = vpop.xlane.xlu0 %773
      %v775 = vmul.f32 %v774, %v768
      %v776 = vadd.f32 %v775, 1e-05
      %v777 = vrsqrt.pop %v776
      %v778 = vmul.f32 %v770, %v777
      %v780 = vlaneseq
      %v781 = vshrl.u32 %v780, 7
      %v782 = vsub.s32 0, %v781
      %v783 = vrot.slane %v762, %v782
      %v785 = vmul.f32 %v778, %v783
      %v787 = vlaneseq
      %v788 = vshrl.u32 %v787, 7
      %v789 = vsub.s32 0, %v788
      %v790 = vrot.slane %v763, %v789
      %v792 = vadd.f32 %v785, %v790
      %v793 = vld [vmem:[%s652] sm:$0x1]
      %v794 = vcvt.s32.f32 %v793
      %v795 = vsub.f32 1.0, %v794
      %v796 = vmul.f32 %v795, -1e+09
      %v797 = vpack.c.bf16 %v792, %v792
      %v798 = vld [vmem:[%s6] sm:$0xf]
      %v799 = vld [vmem:[%s6 + $0x4] sm:$0xf]
      %v800 = vld [vmem:[%s6 + $0x8] sm:$0xf]
      %v801 = vld [vmem:[%s6 + $0xc] sm:$0xf]
      %v802 = vld [vmem:[%s7] sm:$0x1]
      %v804 = vlaneseq
      %v805 = vshrl.u32 %v804, 7
      %v806 = vsub.s32 0, %v805
      %v807 = vrot.slane %v802, %v806
      %v813 = vunpack.c.l.b16 %v798
      %v814 = vunpack.c.l.b16 %v799
      %v815 = vunpack.c.l.b16 %v800
      %v816 = vunpack.c.l.b16 %v801
      %v817 = vpack.c.b16 %v814, %v813
      %v818 = vpack.c.b16 %v816, %v815
      %v822 = vsel %vm764, %v797, 0
      %824 = vmatprep.subr.bf16.mxu0 0
      %825 = vmatpush1.bf16.msra.mxu0 %v817
      %826 = vmatprep.subr.bf16.mxu0 0
      %827 = vmatpush1.bf16.msra.mxu0 %v818
      %828 = vmatprep.subr.bf16.mxu0 0
      %829 = vmatpush1.bf16.msra.mxu0 0
      %830 = vmatprep.subr.bf16.mxu0 0
      %831 = vmatpush1.bf16.msra.mxu0 0
      %832 = vmatprep.subr.bf16.mxu0 0
      %833 = vmatpush1.bf16.msra.mxu0 0
      %834 = vmatprep.subr.bf16.mxu0 0
      %835 = vmatpush1.bf16.msra.mxu0 0
      %836 = vmatprep.subr.bf16.mxu0 0
      %837 = vmatpush1.bf16.msra.mxu0 0
      %838 = vmatprep.subr.bf16.mxu0 0
      %839 = vmatpush1.bf16.msra.mxu0 0
      %840 = vmatprep.subr.bf16.mxu0 0
      %841 = vmatpush1.bf16.msra.mxu0 0
      %842 = vmatprep.subr.bf16.mxu0 0
      %843 = vmatpush1.bf16.msra.mxu0 0
      %844 = vmatprep.subr.bf16.mxu0 0
      %845 = vmatpush1.bf16.msra.mxu0 0
      %846 = vmatprep.subr.bf16.mxu0 0
      %847 = vmatpush1.bf16.msra.mxu0 0
      %848 = vmatprep.subr.bf16.mxu0 0
      %849 = vmatpush1.bf16.msra.mxu0 0
      %850 = vmatprep.subr.bf16.mxu0 0
      %851 = vmatpush1.bf16.msra.mxu0 0
      %852 = vmatprep.subr.bf16.mxu0 0
      %853 = vmatpush1.bf16.msra.mxu0 0
      %854 = vmatprep.subr.bf16.mxu0 0
      %855 = vmatpush1.bf16.msra.mxu0 0
      %856 = vmatprep.mubr.bf16.mxu0 0
      %857 = vmatmul.mubr.bf16.gmra.mrb[0].mxu0 %v822
      %v858 = vpop.f32.mrb[0].mxu0
      %v859 = vadd.f32 %v807, %v858
      %v860 = vpop.f32.mrb[0].mxu0
      %v861 = vpop.f32.mrb[0].mxu0
      %v862 = vpop.f32.mrb[0].mxu0
      %863 = vdwg.mxu0
      %s864 = scalar_lea.vmem %s6, 32
      %v865 = vld [vmem:[%s864] sm:$0xf]
      %v866 = vld [vmem:[%s864 + $0x4] sm:$0xf]
      %v867 = vld [vmem:[%s864 + $0x8] sm:$0xf]
      %v868 = vld [vmem:[%s864 + $0xc] sm:$0xf]
      %s869 = scalar_lea.vmem %s7, 2
      %v870 = vld [vmem:[%s869] sm:$0x1]
      %v872 = vlaneseq
      %v873 = vshrl.u32 %v872, 7
      %v874 = vsub.s32 0, %v873
      %v875 = vrot.slane %v870, %v874
      %v881 = vunpack.c.l.b16 %v865
      %v882 = vunpack.c.l.b16 %v866
      %v883 = vunpack.c.l.b16 %v867
      %v884 = vunpack.c.l.b16 %v868
      %v885 = vpack.c.b16 %v882, %v881
      %v886 = vpack.c.b16 %v884, %v883
      %889 = vmatprep.subr.bf16.mxu0 0
      %890 = vmatpush1.bf16.msra.mxu0 %v885
      %891 = vmatprep.subr.bf16.mxu0 0
      %892 = vmatpush1.bf16.msra.mxu0 %v886
      %893 = vmatprep.subr.bf16.mxu0 0
      %894 = vmatpush1.bf16.msra.mxu0 0
      %895 = vmatprep.subr.bf16.mxu0 0
      %896 = vmatpush1.bf16.msra.mxu0 0
      %897 = vmatprep.subr.bf16.mxu0 0
      %898 = vmatpush1.bf16.msra.mxu0 0
      %899 = vmatprep.subr.bf16.mxu0 0
      %900 = vmatpush1.bf16.msra.mxu0 0
      %901 = vmatprep.subr.bf16.mxu0 0
      %902 = vmatpush1.bf16.msra.mxu0 0
      %903 = vmatprep.subr.bf16.mxu0 0
      %904 = vmatpush1.bf16.msra.mxu0 0
      %905 = vmatprep.subr.bf16.mxu0 0
      %906 = vmatpush1.bf16.msra.mxu0 0
      %907 = vmatprep.subr.bf16.mxu0 0
      %908 = vmatpush1.bf16.msra.mxu0 0
      %909 = vmatprep.subr.bf16.mxu0 0
      %910 = vmatpush1.bf16.msra.mxu0 0
      %911 = vmatprep.subr.bf16.mxu0 0
      %912 = vmatpush1.bf16.msra.mxu0 0
      %913 = vmatprep.subr.bf16.mxu0 0
      %914 = vmatpush1.bf16.msra.mxu0 0
      %915 = vmatprep.subr.bf16.mxu0 0
      %916 = vmatpush1.bf16.msra.mxu0 0
      %917 = vmatprep.subr.bf16.mxu0 0
      %918 = vmatpush1.bf16.msra.mxu0 0
      %919 = vmatprep.subr.bf16.mxu0 0
      %920 = vmatpush1.bf16.msra.mxu0 0
      %921 = vmatprep.mubr.bf16.mxu0 0
      %922 = vmatmul.mubr.bf16.gmra.mrb[0].mxu0 %v822
      %v923 = vpop.f32.mrb[0].mxu0
      %v924 = vadd.f32 %v875, %v923
      %v925 = vpop.f32.mrb[0].mxu0
      %v926 = vpop.f32.mrb[0].mxu0
      %v927 = vpop.f32.mrb[0].mxu0
      %928 = vdwg.mxu0
      %s929 = scalar_lea.vmem %s6, 64
      %v930 = vld [vmem:[%s929] sm:$0xf]
      %v931 = vld [vmem:[%s929 + $0x4] sm:$0xf]
      %v932 = vld [vmem:[%s929 + $0x8] sm:$0xf]
      %v933 = vld [vmem:[%s929 + $0xc] sm:$0xf]
      %s934 = scalar_lea.vmem %s7, 4
      %v935 = vld [vmem:[%s934] sm:$0x1]
      %v937 = vlaneseq
      %v938 = vshrl.u32 %v937, 7
      %v939 = vsub.s32 0, %v938
      %v940 = vrot.slane %v935, %v939
      %v946 = vunpack.c.l.b16 %v930
      %v947 = vunpack.c.l.b16 %v931
      %v948 = vunpack.c.l.b16 %v932
      %v949 = vunpack.c.l.b16 %v933
      %v950 = vpack.c.b16 %v947, %v946
      %v951 = vpack.c.b16 %v949, %v948
      %954 = vmatprep.subr.bf16.mxu0 0
      %955 = vmatpush1.bf16.msra.mxu0 %v950
      %956 = vmatprep.subr.bf16.mxu0 0
      %957 = vmatpush1.bf16.msra.mxu0 %v951
      %958 = vmatprep.subr.bf16.mxu0 0
      %959 = vmatpush1.bf16.msra.mxu0 0
      %960 = vmatprep.subr.bf16.mxu0 0
      %961 = vmatpush1.bf16.msra.mxu0 0
      %962 = vmatprep.subr.bf16.mxu0 0
      %963 = vmatpush1.bf16.msra.mxu0 0
      %964 = vmatprep.subr.bf16.mxu0 0
      %965 = vmatpush1.bf16.msra.mxu0 0
      %966 = vmatprep.subr.bf16.mxu0 0
      %967 = vmatpush1.bf16.msra.mxu0 0
      %968 = vmatprep.subr.bf16.mxu0 0
      %969 = vmatpush1.bf16.msra.mxu0 0
      %970 = vmatprep.subr.bf16.mxu0 0
      %971 = vmatpush1.bf16.msra.mxu0 0
      %972 = vmatprep.subr.bf16.mxu0 0
      %973 = vmatpush1.bf16.msra.mxu0 0
      %974 = vmatprep.subr.bf16.mxu0 0
      %975 = vmatpush1.bf16.msra.mxu0 0
      %976 = vmatprep.subr.bf16.mxu0 0
      %977 = vmatpush1.bf16.msra.mxu0 0
      %978 = vmatprep.subr.bf16.mxu0 0
      %979 = vmatpush1.bf16.msra.mxu0 0
      %980 = vmatprep.subr.bf16.mxu0 0
      %981 = vmatpush1.bf16.msra.mxu0 0
      %982 = vmatprep.subr.bf16.mxu0 0
      %983 = vmatpush1.bf16.msra.mxu0 0
      %984 = vmatprep.subr.bf16.mxu0 0
      %985 = vmatpush1.bf16.msra.mxu0 0
      %986 = vmatprep.mubr.bf16.mxu0 0
      %987 = vmatmul.mubr.bf16.gmra.mrb[0].mxu0 %v822
      %v988 = vpop.f32.mrb[0].mxu0
      %v989 = vadd.f32 %v940, %v988
      %v990 = vpop.f32.mrb[0].mxu0
      %v991 = vpop.f32.mrb[0].mxu0
      %v992 = vpop.f32.mrb[0].mxu0
      %993 = vdwg.mxu0
      %v994 = vpack.c.bf16 %v859, %v859
      %v995 = vpack.c.bf16 %v924, %v924
      %v997 = vlaneseq
      %v998 = vshrl.u32 %v997, 7
      %v999 = vsub.s32 0, %v998
      %v1000 = vrot.slane %v796, %v999
      %vm1002 = vcmask 130048
      %v1004 = vsel %vm1002, %v994, 0
      %v1007 = vsel %vm1002, %v995, 0
      %1009 = vmatprep.subr.bf16.mxu0 0
      %1010 = vmatpush1.bf16.xpose.msra.mxu0 %v1007
      %1011 = vmatprep.subr.bf16.mxu0 0
      %1012 = vmatpush1.bf16.xpose.msra.mxu0 0
      %1013 = vmatprep.subr.bf16.mxu0 0
      %1014 = vmatpush1.bf16.xpose.msra.mxu0 0
      %1015 = vmatprep.subr.bf16.mxu0 0
      %1016 = vmatpush1.bf16.xpose.msra.mxu0 0
      %1017 = vmatprep.subr.bf16.mxu0 0
      %1018 = vmatpush1.bf16.xpose.msra.mxu0 0
      %1019 = vmatprep.subr.bf16.mxu0 0
      %1020 = vmatpush1.bf16.xpose.msra.mxu0 0
      %1021 = vmatprep.subr.bf16.mxu0 0
      %1022 = vmatpush1.bf16.xpose.msra.mxu0 0
      %1023 = vmatprep.subr.bf16.mxu0 0
      %1024 = vmatpush1.bf16.xpose.msra.mxu0 0
      %1025 = vmatprep.subr.bf16.mxu0 0
      %1026 = vmatpush1.bf16.xpose.msra.mxu0 0
      %1027 = vmatprep.subr.bf16.mxu0 0
      %1028 = vmatpush1.bf16.xpose.msra.mxu0 0
      %1029 = vmatprep.subr.bf16.mxu0 0
      %1030 = vmatpush1.bf16.xpose.msra.mxu0 0
      %1031 = vmatprep.subr.bf16.mxu0 0
      %1032 = vmatpush1.bf16.xpose.msra.mxu0 0
      %1033 = vmatprep.subr.bf16.mxu0 0
      %1034 = vmatpush1.bf16.xpose.msra.mxu0 0
      %1035 = vmatprep.subr.bf16.mxu0 0
      %1036 = vmatpush1.bf16.xpose.msra.mxu0 0
      %1037 = vmatprep.subr.bf16.mxu0 0
      %1038 = vmatpush1.bf16.xpose.msra.mxu0 0
      %1039 = vmatprep.subr.bf16.mxu0 0
      %1040 = vmatpush1.bf16.xpose.msra.mxu0 0
      %1041 = vmatprep.mubr.bf16.mxu0 0
      %1042 = vmatmul.mubr.bf16.gmra.mrb[0].mxu0 %v1004
      %v1043 = vpop.f32.mrb[0].mxu0
      %v1044 = vadd.f32 %v1000, %v1043
      %v1045 = vpop.f32.mrb[0].mxu0
      %v1046 = vpop.f32.mrb[0].mxu0
      %v1047 = vpop.f32.mrb[0].mxu0
      %1048 = vdwg.mxu0
      %vm1049 = vcmask 64512
      %v1050 = vsel %vm1049, %v1044, -inf
      %1051 = vmax.xlane.f32.xlu0 %v1050
      %v1052 = vpop.xlane.xlu0 %1051
      %v1053 = vsub.f32 %v1044, %v1052
      %v1054 = vmul.f32 %v1053, 1.442695
      %v1055 = vpow.pop %v1054
      %v1056 = vsel %vm1049, %v1055, 0.0
      %1057 = vadd.xlane.f32.xlu0 %v1056
      %v1058 = vpop.xlane.xlu0 %1057
      %v1059 = vrcp.pop %v1058
      %v1060 = vmul.f32 %v1055, %v1059
      %v1061 = vpack.c.bf16 %v1060, %v1060
      %v1062 = vpack.c.bf16 %v989, %v989
      %v1064 = vsel %vm1049, %v1061, 0
      %vm1066 = vcmask 1043456
      %v1068 = vsel %vm1066, %v1062, 0
      %1070 = vmatprep.subr.bf16.mxu0 0
      %1071 = vmatpush1.bf16.msra.mxu0 %v1068
      %1072 = vmatprep.subr.bf16.mxu0 0
      %1073 = vmatpush1.bf16.msra.mxu0 0
      %1074 = vmatprep.subr.bf16.mxu0 0
      %1075 = vmatpush1.bf16.msra.mxu0 0
      %1076 = vmatprep.subr.bf16.mxu0 0
      %1077 = vmatpush1.bf16.msra.mxu0 0
      %1078 = vmatprep.subr.bf16.mxu0 0
      %1079 = vmatpush1.bf16.msra.mxu0 0
      %1080 = vmatprep.subr.bf16.mxu0 0
      %1081 = vmatpush1.bf16.msra.mxu0 0
      %1082 = vmatprep.subr.bf16.mxu0 0
      %1083 = vmatpush1.bf16.msra.mxu0 0
      %1084 = vmatprep.subr.bf16.mxu0 0
      %1085 = vmatpush1.bf16.msra.mxu0 0
      %1086 = vmatprep.subr.bf16.mxu0 0
      %1087 = vmatpush1.bf16.msra.mxu0 0
      %1088 = vmatprep.subr.bf16.mxu0 0
      %1089 = vmatpush1.bf16.msra.mxu0 0
      %1090 = vmatprep.subr.bf16.mxu0 0
      %1091 = vmatpush1.bf16.msra.mxu0 0
      %1092 = vmatprep.subr.bf16.mxu0 0
      %1093 = vmatpush1.bf16.msra.mxu0 0
      %1094 = vmatprep.subr.bf16.mxu0 0
      %1095 = vmatpush1.bf16.msra.mxu0 0
      %1096 = vmatprep.subr.bf16.mxu0 0
      %1097 = vmatpush1.bf16.msra.mxu0 0
      %1098 = vmatprep.subr.bf16.mxu0 0
      %1099 = vmatpush1.bf16.msra.mxu0 0
      %1100 = vmatprep.subr.bf16.mxu0 0
      %1101 = vmatpush1.bf16.msra.mxu0 0
      %1102 = vmatprep.mubr.bf16.mxu0 0
      %1103 = vmatmul.mubr.bf16.gmra.mrb[0].mxu0 %v1064
      %v1104 = vpop.f32.mrb[0].mxu0
      %v1105 = vadd.f32 0.0, %v1104
      %v1106 = vpop.f32.mrb[0].mxu0
      %v1107 = vpop.f32.mrb[0].mxu0
      %v1108 = vpop.f32.mrb[0].mxu0
      %1109 = vdwg.mxu0
      %s1110 = scalar_lea.vmem %s6, 16
      %v1111 = vld [vmem:[%s1110] sm:$0xf]
      %v1112 = vld [vmem:[%s1110 + $0x4] sm:$0xf]
      %v1113 = vld [vmem:[%s1110 + $0x8] sm:$0xf]
      %v1114 = vld [vmem:[%s1110 + $0xc] sm:$0xf]
      %s1115 = scalar_lea.vmem %s7, 1
      %v1116 = vld [vmem:[%s1115] sm:$0x1]
      %v1118 = vlaneseq
      %v1119 = vshrl.u32 %v1118, 7
      %v1120 = vsub.s32 0, %v1119
      %v1121 = vrot.slane %v1116, %v1120
      %v1127 = vunpack.c.l.b16 %v1111
      %v1128 = vunpack.c.l.b16 %v1112
      %v1129 = vunpack.c.l.b16 %v1113
      %v1130 = vunpack.c.l.b16 %v1114
      %v1131 = vpack.c.b16 %v1128, %v1127
      %v1132 = vpack.c.b16 %v1130, %v1129
      %1135 = vmatprep.subr.bf16.mxu0 0
      %1136 = vmatpush1.bf16.msra.mxu0 %v1131
      %1137 = vmatprep.subr.bf16.mxu0 0
      %1138 = vmatpush1.bf16.msra.mxu0 %v1132
      %1139 = vmatprep.subr.bf16.mxu0 0
      %1140 = vmatpush1.bf16.msra.mxu0 0
      %1141 = vmatprep.subr.bf16.mxu0 0
      %1142 = vmatpush1.bf16.msra.mxu0 0
      %1143 = vmatprep.subr.bf16.mxu0 0
      %1144 = vmatpush1.bf16.msra.mxu0 0
      %1145 = vmatprep.subr.bf16.mxu0 0
      %1146 = vmatpush1.bf16.msra.mxu0 0
      %1147 = vmatprep.subr.bf16.mxu0 0
      %1148 = vmatpush1.bf16.msra.mxu0 0
      %1149 = vmatprep.subr.bf16.mxu0 0
      %1150 = vmatpush1.bf16.msra.mxu0 0
      %1151 = vmatprep.subr.bf16.mxu0 0
      %1152 = vmatpush1.bf16.msra.mxu0 0
      %1153 = vmatprep.subr.bf16.mxu0 0
      %1154 = vmatpush1.bf16.msra.mxu0 0
      %1155 = vmatprep.subr.bf16.mxu0 0
      %1156 = vmatpush1.bf16.msra.mxu0 0
      %1157 = vmatprep.subr.bf16.mxu0 0
      %1158 = vmatpush1.bf16.msra.mxu0 0
      %1159 = vmatprep.subr.bf16.mxu0 0
      %1160 = vmatpush1.bf16.msra.mxu0 0
      %1161 = vmatprep.subr.bf16.mxu0 0
      %1162 = vmatpush1.bf16.msra.mxu0 0
      %1163 = vmatprep.subr.bf16.mxu0 0
      %1164 = vmatpush1.bf16.msra.mxu0 0
      %1165 = vmatprep.subr.bf16.mxu0 0
      %1166 = vmatpush1.bf16.msra.mxu0 0
      %1167 = vmatprep.mubr.bf16.mxu0 0
      %1168 = vmatmul.mubr.bf16.gmra.mrb[0].mxu0 %v822
      %v1169 = vpop.f32.mrb[0].mxu0
      %v1170 = vadd.f32 %v1121, %v1169
      %v1171 = vpop.f32.mrb[0].mxu0
      %v1172 = vpop.f32.mrb[0].mxu0
      %v1173 = vpop.f32.mrb[0].mxu0
      %1174 = vdwg.mxu0
      %s1175 = scalar_lea.vmem %s6, 48
      %v1176 = vld [vmem:[%s1175] sm:$0xf]
      %v1177 = vld [vmem:[%s1175 + $0x4] sm:$0xf]
      %v1178 = vld [vmem:[%s1175 + $0x8] sm:$0xf]
      %v1179 = vld [vmem:[%s1175 + $0xc] sm:$0xf]
      %s1180 = scalar_lea.vmem %s7, 3
      %v1181 = vld [vmem:[%s1180] sm:$0x1]
      %v1183 = vlaneseq
      %v1184 = vshrl.u32 %v1183, 7
      %v1185 = vsub.s32 0, %v1184
      %v1186 = vrot.slane %v1181, %v1185
      %v1192 = vunpack.c.l.b16 %v1176
      %v1193 = vunpack.c.l.b16 %v1177
      %v1194 = vunpack.c.l.b16 %v1178
      %v1195 = vunpack.c.l.b16 %v1179
      %v1196 = vpack.c.b16 %v1193, %v1192
      %v1197 = vpack.c.b16 %v1195, %v1194
      %1200 = vmatprep.subr.bf16.mxu0 0
      %1201 = vmatpush1.bf16.msra.mxu0 %v1196
      %1202 = vmatprep.subr.bf16.mxu0 0
      %1203 = vmatpush1.bf16.msra.mxu0 %v1197
      %1204 = vmatprep.subr.bf16.mxu0 0
      %1205 = vmatpush1.bf16.msra.mxu0 0
      %1206 = vmatprep.subr.bf16.mxu0 0
      %1207 = vmatpush1.bf16.msra.mxu0 0
      %1208 = vmatprep.subr.bf16.mxu0 0
      %1209 = vmatpush1.bf16.msra.mxu0 0
      %1210 = vmatprep.subr.bf16.mxu0 0
      %1211 = vmatpush1.bf16.msra.mxu0 0
      %1212 = vmatprep.subr.bf16.mxu0 0
      %1213 = vmatpush1.bf16.msra.mxu0 0
      %1214 = vmatprep.subr.bf16.mxu0 0
      %1215 = vmatpush1.bf16.msra.mxu0 0
      %1216 = vmatprep.subr.bf16.mxu0 0
      %1217 = vmatpush1.bf16.msra.mxu0 0
      %1218 = vmatprep.subr.bf16.mxu0 0
      %1219 = vmatpush1.bf16.msra.mxu0 0
      %1220 = vmatprep.subr.bf16.mxu0 0
      %1221 = vmatpush1.bf16.msra.mxu0 0
      %1222 = vmatprep.subr.bf16.mxu0 0
      %1223 = vmatpush1.bf16.msra.mxu0 0
      %1224 = vmatprep.subr.bf16.mxu0 0
      %1225 = vmatpush1.bf16.msra.mxu0 0
      %1226 = vmatprep.subr.bf16.mxu0 0
      %1227 = vmatpush1.bf16.msra.mxu0 0
      %1228 = vmatprep.subr.bf16.mxu0 0
      %1229 = vmatpush1.bf16.msra.mxu0 0
      %1230 = vmatprep.subr.bf16.mxu0 0
      %1231 = vmatpush1.bf16.msra.mxu0 0
      %1232 = vmatprep.mubr.bf16.mxu0 0
      %1233 = vmatmul.mubr.bf16.gmra.mrb[0].mxu0 %v822
      %v1234 = vpop.f32.mrb[0].mxu0
      %v1235 = vadd.f32 %v1186, %v1234
      %v1236 = vpop.f32.mrb[0].mxu0
      %v1237 = vpop.f32.mrb[0].mxu0
      %v1238 = vpop.f32.mrb[0].mxu0
      %1239 = vdwg.mxu0
      %s1240 = scalar_lea.vmem %s6, 80
      %v1241 = vld [vmem:[%s1240] sm:$0xf]
      %v1242 = vld [vmem:[%s1240 + $0x4] sm:$0xf]
      %v1243 = vld [vmem:[%s1240 + $0x8] sm:$0xf]
      %v1244 = vld [vmem:[%s1240 + $0xc] sm:$0xf]
      %s1245 = scalar_lea.vmem %s7, 5
      %v1246 = vld [vmem:[%s1245] sm:$0x1]
      %v1248 = vlaneseq
      %v1249 = vshrl.u32 %v1248, 7
      %v1250 = vsub.s32 0, %v1249
      %v1251 = vrot.slane %v1246, %v1250
      %v1257 = vunpack.c.l.b16 %v1241
      %v1258 = vunpack.c.l.b16 %v1242
      %v1259 = vunpack.c.l.b16 %v1243
      %v1260 = vunpack.c.l.b16 %v1244
      %v1261 = vpack.c.b16 %v1258, %v1257
      %v1262 = vpack.c.b16 %v1260, %v1259
      %1265 = vmatprep.subr.bf16.mxu0 0
      %1266 = vmatpush1.bf16.msra.mxu0 %v1261
      %1267 = vmatprep.subr.bf16.mxu0 0
      %1268 = vmatpush1.bf16.msra.mxu0 %v1262
      %1269 = vmatprep.subr.bf16.mxu0 0
      %1270 = vmatpush1.bf16.msra.mxu0 0
      %1271 = vmatprep.subr.bf16.mxu0 0
      %1272 = vmatpush1.bf16.msra.mxu0 0
      %1273 = vmatprep.subr.bf16.mxu0 0
      %1274 = vmatpush1.bf16.msra.mxu0 0
      %1275 = vmatprep.subr.bf16.mxu0 0
      %1276 = vmatpush1.bf16.msra.mxu0 0
      %1277 = vmatprep.subr.bf16.mxu0 0
      %1278 = vmatpush1.bf16.msra.mxu0 0
      %1279 = vmatprep.subr.bf16.mxu0 0
      %1280 = vmatpush1.bf16.msra.mxu0 0
      %1281 = vmatprep.subr.bf16.mxu0 0
      %1282 = vmatpush1.bf16.msra.mxu0 0
      %1283 = vmatprep.subr.bf16.mxu0 0
      %1284 = vmatpush1.bf16.msra.mxu0 0
      %1285 = vmatprep.subr.bf16.mxu0 0
      %1286 = vmatpush1.bf16.msra.mxu0 0
      %1287 = vmatprep.subr.bf16.mxu0 0
      %1288 = vmatpush1.bf16.msra.mxu0 0
      %1289 = vmatprep.subr.bf16.mxu0 0
      %1290 = vmatpush1.bf16.msra.mxu0 0
      %1291 = vmatprep.subr.bf16.mxu0 0
      %1292 = vmatpush1.bf16.msra.mxu0 0
      %1293 = vmatprep.subr.bf16.mxu0 0
      %1294 = vmatpush1.bf16.msra.mxu0 0
      %1295 = vmatprep.subr.bf16.mxu0 0
      %1296 = vmatpush1.bf16.msra.mxu0 0
      %1297 = vmatprep.mubr.bf16.mxu0 0
      %1298 = vmatmul.mubr.bf16.gmra.mrb[0].mxu0 %v822
      %v1299 = vpop.f32.mrb[0].mxu0
      %v1300 = vadd.f32 %v1251, %v1299
      %v1301 = vpop.f32.mrb[0].mxu0
      %v1302 = vpop.f32.mrb[0].mxu0
      %v1303 = vpop.f32.mrb[0].mxu0
      %1304 = vdwg.mxu0
      %v1305 = vpack.c.bf16 %v1170, %v1170
      %v1306 = vpack.c.bf16 %v1235, %v1235
      %v1308 = vsel %vm1002, %v1305, 0
      %v1311 = vsel %vm1002, %v1306, 0
      %1313 = vmatprep.subr.bf16.mxu0 0
      %1314 = vmatpush1.bf16.xpose.msra.mxu0 %v1311
      %1315 = vmatprep.subr.bf16.mxu0 0
      %1316 = vmatpush1.bf16.xpose.msra.mxu0 0
      %1317 = vmatprep.subr.bf16.mxu0 0
      %1318 = vmatpush1.bf16.xpose.msra.mxu0 0
      %1319 = vmatprep.subr.bf16.mxu0 0
      %1320 = vmatpush1.bf16.xpose.msra.mxu0 0
      %1321 = vmatprep.subr.bf16.mxu0 0
      %1322 = vmatpush1.bf16.xpose.msra.mxu0 0
      %1323 = vmatprep.subr.bf16.mxu0 0
      %1324 = vmatpush1.bf16.xpose.msra.mxu0 0
      %1325 = vmatprep.subr.bf16.mxu0 0
      %1326 = vmatpush1.bf16.xpose.msra.mxu0 0
      %1327 = vmatprep.subr.bf16.mxu0 0
      %1328 = vmatpush1.bf16.xpose.msra.mxu0 0
      %1329 = vmatprep.subr.bf16.mxu0 0
      %1330 = vmatpush1.bf16.xpose.msra.mxu0 0
      %1331 = vmatprep.subr.bf16.mxu0 0
      %1332 = vmatpush1.bf16.xpose.msra.mxu0 0
      %1333 = vmatprep.subr.bf16.mxu0 0
      %1334 = vmatpush1.bf16.xpose.msra.mxu0 0
      %1335 = vmatprep.subr.bf16.mxu0 0
      %1336 = vmatpush1.bf16.xpose.msra.mxu0 0
      %1337 = vmatprep.subr.bf16.mxu0 0
      %1338 = vmatpush1.bf16.xpose.msra.mxu0 0
      %1339 = vmatprep.subr.bf16.mxu0 0
      %1340 = vmatpush1.bf16.xpose.msra.mxu0 0
      %1341 = vmatprep.subr.bf16.mxu0 0
      %1342 = vmatpush1.bf16.xpose.msra.mxu0 0
      %1343 = vmatprep.subr.bf16.mxu0 0
      %1344 = vmatpush1.bf16.xpose.msra.mxu0 0
      %1345 = vmatprep.mubr.bf16.mxu0 0
      %1346 = vmatmul.mubr.bf16.gmra.mrb[0].mxu0 %v1308
      %v1347 = vpop.f32.mrb[0].mxu0
      %v1348 = vadd.f32 %v1000, %v1347
      %v1349 = vpop.f32.mrb[0].mxu0
      %v1350 = vpop.f32.mrb[0].mxu0
      %v1351 = vpop.f32.mrb[0].mxu0
      %1352 = vdwg.mxu0
      %v1353 = vsel %vm1049, %v1348, -inf
      %1354 = vmax.xlane.f32.xlu0 %v1353
      %v1355 = vpop.xlane.xlu0 %1354
      %v1356 = vsub.f32 %v1348, %v1355
      %v1357 = vmul.f32 %v1356, 1.442695
      %v1358 = vpow.pop %v1357
      %v1359 = vsel %vm1049, %v1358, 0.0
      %1360 = vadd.xlane.f32.xlu0 %v1359
      %v1361 = vpop.xlane.xlu0 %1360
      %v1362 = vrcp.pop %v1361
      %v1363 = vmul.f32 %v1358, %v1362
      %v1364 = vpack.c.bf16 %v1363, %v1363
      %v1365 = vpack.c.bf16 %v1300, %v1300
      %v1367 = vsel %vm1049, %v1364, 0
      %v1370 = vsel %vm1066, %v1365, 0
      %1372 = vmatprep.subr.bf16.mxu0 0
      %1373 = vmatpush1.bf16.msra.mxu0 %v1370
      %1374 = vmatprep.subr.bf16.mxu0 0
      %1375 = vmatpush1.bf16.msra.mxu0 0
      %1376 = vmatprep.subr.bf16.mxu0 0
      %1377 = vmatpush1.bf16.msra.mxu0 0
      %1378 = vmatprep.subr.bf16.mxu0 0
      %1379 = vmatpush1.bf16.msra.mxu0 0
      %1380 = vmatprep.subr.bf16.mxu0 0
      %1381 = vmatpush1.bf16.msra.mxu0 0
      %1382 = vmatprep.subr.bf16.mxu0 0
      %1383 = vmatpush1.bf16.msra.mxu0 0
      %1384 = vmatprep.subr.bf16.mxu0 0
      %1385 = vmatpush1.bf16.msra.mxu0 0
      %1386 = vmatprep.subr.bf16.mxu0 0
      %1387 = vmatpush1.bf16.msra.mxu0 0
      %1388 = vmatprep.subr.bf16.mxu0 0
      %1389 = vmatpush1.bf16.msra.mxu0 0
      %1390 = vmatprep.subr.bf16.mxu0 0
      %1391 = vmatpush1.bf16.msra.mxu0 0
      %1392 = vmatprep.subr.bf16.mxu0 0
      %1393 = vmatpush1.bf16.msra.mxu0 0
      %1394 = vmatprep.subr.bf16.mxu0 0
      %1395 = vmatpush1.bf16.msra.mxu0 0
      %1396 = vmatprep.subr.bf16.mxu0 0
      %1397 = vmatpush1.bf16.msra.mxu0 0
      %1398 = vmatprep.subr.bf16.mxu0 0
      %1399 = vmatpush1.bf16.msra.mxu0 0
      %1400 = vmatprep.subr.bf16.mxu0 0
      %1401 = vmatpush1.bf16.msra.mxu0 0
      %1402 = vmatprep.subr.bf16.mxu0 0
      %1403 = vmatpush1.bf16.msra.mxu0 0
      %1404 = vmatprep.mubr.bf16.mxu0 0
      %1405 = vmatmul.mubr.bf16.gmra.mrb[0].mxu0 %v1367
      %v1406 = vpop.f32.mrb[0].mxu0
      %v1407 = vadd.f32 0.0, %v1406
      %v1408 = vpop.f32.mrb[0].mxu0
      %v1409 = vpop.f32.mrb[0].mxu0
      %v1410 = vpop.f32.mrb[0].mxu0
      %1411 = vdwg.mxu0
      %1413 = vrot.lane.b32.xlu0 %v1407, 16
      %v1414 = vpop.permute.xlu0 %1413
      %v1416 = vsel %vm1002, %v1105, %v1414
      %v1417 = vpack.c.bf16 %v1416, %v1416
      %v1418 = vld [vmem:[%s8] sm:$0xf]
      %v1419 = vld [vmem:[%s8 + $0x4] sm:$0xf]
      %v1420 = vld [vmem:[%s8 + $0x8] sm:$0xf]
      %v1421 = vld [vmem:[%s8 + $0xc] sm:$0xf]
      %v1422 = vld [vmem:[%s9] sm:$0x1]
      %v1424 = vlaneseq
      %v1425 = vshrl.u32 %v1424, 7
      %v1426 = vsub.s32 0, %v1425
      %v1427 = vrot.slane %v1422, %v1426
      %v1433 = vunpack.c.l.b16 %v1418
      %v1434 = vunpack.c.l.b16 %v1419
      %v1435 = vunpack.c.l.b16 %v1420
      %v1436 = vunpack.c.l.b16 %v1421
      %v1437 = vpack.c.b16 %v1434, %v1433
      %v1438 = vpack.c.b16 %v1436, %v1435
      %v1442 = vsel %vm764, %v1417, 0
      %1444 = vmatprep.subr.bf16.mxu0 0
      %1445 = vmatpush1.bf16.msra.mxu0 %v1437
      %1446 = vmatprep.subr.bf16.mxu0 0
      %1447 = vmatpush1.bf16.msra.mxu0 %v1438
      %1448 = vmatprep.subr.bf16.mxu0 0
      %1449 = vmatpush1.bf16.msra.mxu0 0
      %1450 = vmatprep.subr.bf16.mxu0 0
      %1451 = vmatpush1.bf16.msra.mxu0 0
      %1452 = vmatprep.subr.bf16.mxu0 0
      %1453 = vmatpush1.bf16.msra.mxu0 0
      %1454 = vmatprep.subr.bf16.mxu0 0
      %1455 = vmatpush1.bf16.msra.mxu0 0
      %1456 = vmatprep.subr.bf16.mxu0 0
      %1457 = vmatpush1.bf16.msra.mxu0 0
      %1458 = vmatprep.subr.bf16.mxu0 0
      %1459 = vmatpush1.bf16.msra.mxu0 0
      %1460 = vmatprep.subr.bf16.mxu0 0
      %1461 = vmatpush1.bf16.msra.mxu0 0
      %1462 = vmatprep.subr.bf16.mxu0 0
      %1463 = vmatpush1.bf16.msra.mxu0 0
      %1464 = vmatprep.subr.bf16.mxu0 0
      %1465 = vmatpush1.bf16.msra.mxu0 0
      %1466 = vmatprep.subr.bf16.mxu0 0
      %1467 = vmatpush1.bf16.msra.mxu0 0
      %1468 = vmatprep.subr.bf16.mxu0 0
      %1469 = vmatpush1.bf16.msra.mxu0 0
      %1470 = vmatprep.subr.bf16.mxu0 0
      %1471 = vmatpush1.bf16.msra.mxu0 0
      %1472 = vmatprep.subr.bf16.mxu0 0
      %1473 = vmatpush1.bf16.msra.mxu0 0
      %1474 = vmatprep.subr.bf16.mxu0 0
      %1475 = vmatpush1.bf16.msra.mxu0 0
      %1476 = vmatprep.mubr.bf16.mxu0 0
      %1477 = vmatmul.mubr.bf16.gmra.mrb[0].mxu0 %v1442
      %v1478 = vpop.f32.mrb[0].mxu0
      %v1479 = vadd.f32 %v1427, %v1478
      %v1480 = vpop.f32.mrb[0].mxu0
      %v1481 = vpop.f32.mrb[0].mxu0
      %v1482 = vpop.f32.mrb[0].mxu0
      %1483 = vdwg.mxu0
      %v1484 = vadd.f32 %v792, %v1479
      %v1485 = vld [vmem:[%s10] sm:$0x1]
      %v1486 = vld [vmem:[%s11] sm:$0x1]
      %v1487 = vsel %vm764, %v1484, 0.0
      %1488 = vadd.xlane.f32.xlu0 %v1487
      %v1489 = vpop.xlane.xlu0 %1488
      %v1490 = vmul.f32 %v1489, %v768
      %v1491 = vsub.f32 %v1484, %v1490
      %v1492 = vmul.f32 %v1491, %v1491
      %v1493 = vsel %vm764, %v1492, 0.0
      %1494 = vadd.xlane.f32.xlu0 %v1493
      %v1495 = vpop.xlane.xlu0 %1494
      %v1496 = vmul.f32 %v1495, %v768
      %v1497 = vadd.f32 %v1496, 1e-05
      %v1498 = vrsqrt.pop %v1497
      %v1499 = vmul.f32 %v1491, %v1498
      %v1501 = vlaneseq
      %v1502 = vshrl.u32 %v1501, 7
      %v1503 = vsub.s32 0, %v1502
      %v1504 = vrot.slane %v1485, %v1503
      %v1506 = vmul.f32 %v1499, %v1504
      %v1508 = vlaneseq
      %v1509 = vshrl.u32 %v1508, 7
      %v1510 = vsub.s32 0, %v1509
      %v1511 = vrot.slane %v1486, %v1510
      %v1513 = vadd.f32 %v1506, %v1511
      %v1514 = vpack.c.bf16 %v1513, %v1513
      %v1515 = vld [vmem:[%s12] sm:$0xf]
      %v1516 = vld [vmem:[%s12 + $0x4] sm:$0xf]
      %v1517 = vld [vmem:[%s12 + $0x8] sm:$0xf]
      %v1518 = vld [vmem:[%s12 + $0xc] sm:$0xf]
      %v1519 = vld [vmem:[%s13] sm:$0x1]
      %v1521 = vlaneseq
      %v1522 = vshrl.u32 %v1521, 7
      %v1523 = vsub.s32 0, %v1522
      %v1524 = vrot.slane %v1519, %v1523
      %v1530 = vunpack.c.l.b16 %v1515
      %v1531 = vunpack.c.l.b16 %v1516
      %v1532 = vunpack.c.l.b16 %v1517
      %v1533 = vunpack.c.l.b16 %v1518
      %v1534 = vpack.c.b16 %v1531, %v1530
      %v1535 = vpack.c.b16 %v1533, %v1532
      %v1539 = vsel %vm764, %v1514, 0
      %1541 = vmatprep.subr.bf16.mxu0 0
      %1542 = vmatpush1.bf16.msra.mxu0 %v1534
      %1543 = vmatprep.subr.bf16.mxu0 0
      %1544 = vmatpush1.bf16.msra.mxu0 %v1535
      %1545 = vmatprep.subr.bf16.mxu0 0
      %1546 = vmatpush1.bf16.msra.mxu0 0
      %1547 = vmatprep.subr.bf16.mxu0 0
      %1548 = vmatpush1.bf16.msra.mxu0 0
      %1549 = vmatprep.subr.bf16.mxu0 0
      %1550 = vmatpush1.bf16.msra.mxu0 0
      %1551 = vmatprep.subr.bf16.mxu0 0
      %1552 = vmatpush1.bf16.msra.mxu0 0
      %1553 = vmatprep.subr.bf16.mxu0 0
      %1554 = vmatpush1.bf16.msra.mxu0 0
      %1555 = vmatprep.subr.bf16.mxu0 0
      %1556 = vmatpush1.bf16.msra.mxu0 0
      %1557 = vmatprep.subr.bf16.mxu0 0
      %1558 = vmatpush1.bf16.msra.mxu0 0
      %1559 = vmatprep.subr.bf16.mxu0 0
      %1560 = vmatpush1.bf16.msra.mxu0 0
      %1561 = vmatprep.subr.bf16.mxu0 0
      %1562 = vmatpush1.bf16.msra.mxu0 0
      %1563 = vmatprep.subr.bf16.mxu0 0
      %1564 = vmatpush1.bf16.msra.mxu0 0
      %1565 = vmatprep.subr.bf16.mxu0 0
      %1566 = vmatpush1.bf16.msra.mxu0 0
      %1567 = vmatprep.subr.bf16.mxu0 0
      %1568 = vmatpush1.bf16.msra.mxu0 0
      %1569 = vmatprep.subr.bf16.mxu0 0
      %1570 = vmatpush1.bf16.msra.mxu0 0
      %1571 = vmatprep.subr.bf16.mxu0 0
      %1572 = vmatpush1.bf16.msra.mxu0 0
      %1573 = vmatprep.mubr.bf16.mxu0 0
      %1574 = vmatmul.mubr.bf16.gmra.mrb[0].mxu0 %v1539
      %v1575 = vpop.f32.mrb[0].mxu0
      %v1576 = vadd.f32 %v1524, %v1575
      %v1577 = vpop.f32.mrb[0].mxu0
      %v1578 = vpop.f32.mrb[0].mxu0
      %v1579 = vpop.f32.mrb[0].mxu0
      %1580 = vdwg.mxu0
      %v1581 = vmul.f32 %v1576, 0.5
      %v1582 = vmul.f32 %v1576, 0.044715
      %v1583 = vmul.f32 %v1582, %v1576
      %v1584 = vmul.f32 %v1583, %v1576
      %v1585 = vadd.f32 %v1576, %v1584
      %v1586 = vmul.f32 %v1585, 0.7978846
      %v1587 = vtanh.pop %v1586
      %v1588 = vadd.f32 %v1587, 1.0
      %v1589 = vmul.f32 %v1581, %v1588
      %v1590 = vpack.c.bf16 %v1589, %v1589
      %v1591 = vld [vmem:[%s14] sm:$0xf]
      %v1592 = vld [vmem:[%s14 + $0x4] sm:$0xf]
      %v1593 = vld [vmem:[%s14 + $0x8] sm:$0xf]
      %v1594 = vld [vmem:[%s14 + $0xc] sm:$0xf]
      %v1595 = vld [vmem:[%s14 + $0x10] sm:$0xf]
      %v1596 = vld [vmem:[%s14 + $0x14] sm:$0xf]
      %v1597 = vld [vmem:[%s14 + $0x18] sm:$0xf]
      %v1598 = vld [vmem:[%s14 + $0x1c] sm:$0xf]
      %v1599 = vld [vmem:[%s15] sm:$0x1]
      %v1601 = vlaneseq
      %v1602 = vshrl.u32 %v1601, 7
      %v1603 = vsub.s32 0, %v1602
      %v1604 = vrot.slane %v1599, %v1603
      %v1614 = vunpack.c.l.b16 %v1591
      %v1615 = vunpack.c.l.b16 %v1592
      %v1616 = vunpack.c.l.b16 %v1593
      %v1617 = vunpack.c.l.b16 %v1594
      %v1618 = vunpack.c.l.b16 %v1595
      %v1619 = vunpack.c.l.b16 %v1596
      %v1620 = vunpack.c.l.b16 %v1597
      %v1621 = vunpack.c.l.b16 %v1598
      %v1622 = vpack.c.b16 %v1615, %v1614
      %v1623 = vpack.c.b16 %v1617, %v1616
      %v1624 = vpack.c.b16 %v1619, %v1618
      %v1625 = vpack.c.b16 %v1621, %v1620
      %vm1630 = vcmask 523264
      %v1632 = vsel %vm1630, %v1590, 0
      %1634 = vmatprep.subr.bf16.mxu0 0
      %1635 = vmatpush1.bf16.msra.mxu0 %v1622
      %1636 = vmatprep.subr.bf16.mxu0 0
      %1637 = vmatpush1.bf16.msra.mxu0 %v1623
      %1638 = vmatprep.subr.bf16.mxu0 0
      %1639 = vmatpush1.bf16.msra.mxu0 %v1624
      %1640 = vmatprep.subr.bf16.mxu0 0
      %1641 = vmatpush1.bf16.msra.mxu0 %v1625
      %1642 = vmatprep.subr.bf16.mxu0 0
      %1643 = vmatpush1.bf16.msra.mxu0 0
      %1644 = vmatprep.subr.bf16.mxu0 0
      %1645 = vmatpush1.bf16.msra.mxu0 0
      %1646 = vmatprep.subr.bf16.mxu0 0
      %1647 = vmatpush1.bf16.msra.mxu0 0
      %1648 = vmatprep.subr.bf16.mxu0 0
      %1649 = vmatpush1.bf16.msra.mxu0 0
      %1650 = vmatprep.subr.bf16.mxu0 0
      %1651 = vmatpush1.bf16.msra.mxu0 0
      %1652 = vmatprep.subr.bf16.mxu0 0
      %1653 = vmatpush1.bf16.msra.mxu0 0
      %1654 = vmatprep.subr.bf16.mxu0 0
      %1655 = vmatpush1.bf16.msra.mxu0 0
      %1656 = vmatprep.subr.bf16.mxu0 0
      %1657 = vmatpush1.bf16.msra.mxu0 0
      %1658 = vmatprep.subr.bf16.mxu0 0
      %1659 = vmatpush1.bf16.msra.mxu0 0
      %1660 = vmatprep.subr.bf16.mxu0 0
      %1661 = vmatpush1.bf16.msra.mxu0 0
      %1662 = vmatprep.subr.bf16.mxu0 0
      %1663 = vmatpush1.bf16.msra.mxu0 0
      %1664 = vmatprep.subr.bf16.mxu0 0
      %1665 = vmatpush1.bf16.msra.mxu0 0
      %1666 = vmatprep.mubr.bf16.mxu0 0
      %1667 = vmatmul.mubr.bf16.gmra.mrb[0].mxu0 %v1632
      %v1668 = vpop.f32.mrb[0].mxu0
      %v1669 = vadd.f32 %v1604, %v1668
      %v1670 = vpop.f32.mrb[0].mxu0
      %v1671 = vpop.f32.mrb[0].mxu0
      %v1672 = vpop.f32.mrb[0].mxu0
      %1673 = vdwg.mxu0
      %v1674 = vadd.f32 %v1513, %v1669
      %v1675 = vld [vmem:[%s16] sm:$0x1]
      %v1676 = vld [vmem:[%s17] sm:$0x1]
      %v1677 = vsel %vm764, %v1674, 0.0
      %1678 = vadd.xlane.f32.xlu0 %v1677
      %v1679 = vpop.xlane.xlu0 %1678
      %v1680 = vmul.f32 %v1679, %v768
      %v1681 = vsub.f32 %v1674, %v1680
      %v1682 = vmul.f32 %v1681, %v1681
      %v1683 = vsel %vm764, %v1682, 0.0
      %1684 = vadd.xlane.f32.xlu0 %v1683
      %v1685 = vpop.xlane.xlu0 %1684
      %v1686 = vmul.f32 %v1685, %v768
      %v1687 = vadd.f32 %v1686, 1e-05
      %v1688 = vrsqrt.pop %v1687
      %v1689 = vmul.f32 %v1681, %v1688
      %v1691 = vlaneseq
      %v1692 = vshrl.u32 %v1691, 7
      %v1693 = vsub.s32 0, %v1692
      %v1694 = vrot.slane %v1675, %v1693
      %v1696 = vmul.f32 %v1689, %v1694
      %v1698 = vlaneseq
      %v1699 = vshrl.u32 %v1698, 7
      %v1700 = vsub.s32 0, %v1699
      %v1701 = vrot.slane %v1676, %v1700
      %v1703 = vadd.f32 %v1696, %v1701
      %v1704 = vpack.c.bf16 %v1703, %v1703
      %s1705 = scalar_lea.vmem %s6, 96
      %v1706 = vld [vmem:[%s1705] sm:$0xf]
      %v1707 = vld [vmem:[%s1705 + $0x4] sm:$0xf]
      %v1708 = vld [vmem:[%s1705 + $0x8] sm:$0xf]
      %v1709 = vld [vmem:[%s1705 + $0xc] sm:$0xf]
      %s1710 = scalar_lea.vmem %s7, 6
      %v1711 = vld [vmem:[%s1710] sm:$0x1]
      %v1713 = vlaneseq
      %v1714 = vshrl.u32 %v1713, 7
      %v1715 = vsub.s32 0, %v1714
      %v1716 = vrot.slane %v1711, %v1715
      %v1722 = vunpack.c.l.b16 %v1706
      %v1723 = vunpack.c.l.b16 %v1707
      %v1724 = vunpack.c.l.b16 %v1708
      %v1725 = vunpack.c.l.b16 %v1709
      %v1726 = vpack.c.b16 %v1723, %v1722
      %v1727 = vpack.c.b16 %v1725, %v1724
      %v1731 = vsel %vm764, %v1704, 0
      %1733 = vmatprep.subr.bf16.mxu0 0
      %1734 = vmatpush1.bf16.msra.mxu0 %v1726
      %1735 = vmatprep.subr.bf16.mxu0 0
      %1736 = vmatpush1.bf16.msra.mxu0 %v1727
      %1737 = vmatprep.subr.bf16.mxu0 0
      %1738 = vmatpush1.bf16.msra.mxu0 0
      %1739 = vmatprep.subr.bf16.mxu0 0
      %1740 = vmatpush1.bf16.msra.mxu0 0
      %1741 = vmatprep.subr.bf16.mxu0 0
      %1742 = vmatpush1.bf16.msra.mxu0 0
      %1743 = vmatprep.subr.bf16.mxu0 0
      %1744 = vmatpush1.bf16.msra.mxu0 0
      %1745 = vmatprep.subr.bf16.mxu0 0
      %1746 = vmatpush1.bf16.msra.mxu0 0
      %1747 = vmatprep.subr.bf16.mxu0 0
      %1748 = vmatpush1.bf16.msra.mxu0 0
      %1749 = vmatprep.subr.bf16.mxu0 0
      %1750 = vmatpush1.bf16.msra.mxu0 0
      %1751 = vmatprep.subr.bf16.mxu0 0
      %1752 = vmatpush1.bf16.msra.mxu0 0
      %1753 = vmatprep.subr.bf16.mxu0 0
      %1754 = vmatpush1.bf16.msra.mxu0 0
      %1755 = vmatprep.subr.bf16.mxu0 0
      %1756 = vmatpush1.bf16.msra.mxu0 0
      %1757 = vmatprep.subr.bf16.mxu0 0
      %1758 = vmatpush1.bf16.msra.mxu0 0
      %1759 = vmatprep.subr.bf16.mxu0 0
      %1760 = vmatpush1.bf16.msra.mxu0 0
      %1761 = vmatprep.subr.bf16.mxu0 0
      %1762 = vmatpush1.bf16.msra.mxu0 0
      %1763 = vmatprep.subr.bf16.mxu0 0
      %1764 = vmatpush1.bf16.msra.mxu0 0
      %1765 = vmatprep.mubr.bf16.mxu0 0
      %1766 = vmatmul.mubr.bf16.gmra.mrb[0].mxu0 %v1731
      %v1767 = vpop.f32.mrb[0].mxu0
      %v1768 = vadd.f32 %v1716, %v1767
      %v1769 = vpop.f32.mrb[0].mxu0
      %v1770 = vpop.f32.mrb[0].mxu0
      %v1771 = vpop.f32.mrb[0].mxu0
      %1772 = vdwg.mxu0
      %s1773 = scalar_lea.vmem %s6, 128
      %v1774 = vld [vmem:[%s1773] sm:$0xf]
      %v1775 = vld [vmem:[%s1773 + $0x4] sm:$0xf]
      %v1776 = vld [vmem:[%s1773 + $0x8] sm:$0xf]
      %v1777 = vld [vmem:[%s1773 + $0xc] sm:$0xf]
      %s1778 = scalar_lea.vmem %s7, 8
      %v1779 = vld [vmem:[%s1778] sm:$0x1]
      %v1781 = vlaneseq
      %v1782 = vshrl.u32 %v1781, 7
      %v1783 = vsub.s32 0, %v1782
      %v1784 = vrot.slane %v1779, %v1783
      %v1790 = vunpack.c.l.b16 %v1774
      %v1791 = vunpack.c.l.b16 %v1775
      %v1792 = vunpack.c.l.b16 %v1776
      %v1793 = vunpack.c.l.b16 %v1777
      %v1794 = vpack.c.b16 %v1791, %v1790
      %v1795 = vpack.c.b16 %v1793, %v1792
      %1798 = vmatprep.subr.bf16.mxu0 0
      %1799 = vmatpush1.bf16.msra.mxu0 %v1794
      %1800 = vmatprep.subr.bf16.mxu0 0
      %1801 = vmatpush1.bf16.msra.mxu0 %v1795
      %1802 = vmatprep.subr.bf16.mxu0 0
      %1803 = vmatpush1.bf16.msra.mxu0 0
      %1804 = vmatprep.subr.bf16.mxu0 0
      %1805 = vmatpush1.bf16.msra.mxu0 0
      %1806 = vmatprep.subr.bf16.mxu0 0
      %1807 = vmatpush1.bf16.msra.mxu0 0
      %1808 = vmatprep.subr.bf16.mxu0 0
      %1809 = vmatpush1.bf16.msra.mxu0 0
      %1810 = vmatprep.subr.bf16.mxu0 0
      %1811 = vmatpush1.bf16.msra.mxu0 0
      %1812 = vmatprep.subr.bf16.mxu0 0
      %1813 = vmatpush1.bf16.msra.mxu0 0
      %1814 = vmatprep.subr.bf16.mxu0 0
      %1815 = vmatpush1.bf16.msra.mxu0 0
      %1816 = vmatprep.subr.bf16.mxu0 0
      %1817 = vmatpush1.bf16.msra.mxu0 0
      %1818 = vmatprep.subr.bf16.mxu0 0
      %1819 = vmatpush1.bf16.msra.mxu0 0
      %1820 = vmatprep.subr.bf16.mxu0 0
      %1821 = vmatpush1.bf16.msra.mxu0 0
      %1822 = vmatprep.subr.bf16.mxu0 0
      %1823 = vmatpush1.bf16.msra.mxu0 0
      %1824 = vmatprep.subr.bf16.mxu0 0
      %1825 = vmatpush1.bf16.msra.mxu0 0
      %1826 = vmatprep.subr.bf16.mxu0 0
      %1827 = vmatpush1.bf16.msra.mxu0 0
      %1828 = vmatprep.subr.bf16.mxu0 0
      %1829 = vmatpush1.bf16.msra.mxu0 0
      %1830 = vmatprep.mubr.bf16.mxu0 0
      %1831 = vmatmul.mubr.bf16.gmra.mrb[0].mxu0 %v1731
      %v1832 = vpop.f32.mrb[0].mxu0
      %v1833 = vadd.f32 %v1784, %v1832
      %v1834 = vpop.f32.mrb[0].mxu0
      %v1835 = vpop.f32.mrb[0].mxu0
      %v1836 = vpop.f32.mrb[0].mxu0
      %1837 = vdwg.mxu0
      %s1838 = scalar_lea.vmem %s6, 160
      %v1839 = vld [vmem:[%s1838] sm:$0xf]
      %v1840 = vld [vmem:[%s1838 + $0x4] sm:$0xf]
      %v1841 = vld [vmem:[%s1838 + $0x8] sm:$0xf]
      %v1842 = vld [vmem:[%s1838 + $0xc] sm:$0xf]
      %s1843 = scalar_lea.vmem %s7, 10
      %v1844 = vld [vmem:[%s1843] sm:$0x1]
      %v1846 = vlaneseq
      %v1847 = vshrl.u32 %v1846, 7
      %v1848 = vsub.s32 0, %v1847
      %v1849 = vrot.slane %v1844, %v1848
      %v1855 = vunpack.c.l.b16 %v1839
      %v1856 = vunpack.c.l.b16 %v1840
      %v1857 = vunpack.c.l.b16 %v1841
      %v1858 = vunpack.c.l.b16 %v1842
      %v1859 = vpack.c.b16 %v1856, %v1855
      %v1860 = vpack.c.b16 %v1858, %v1857
      %1863 = vmatprep.subr.bf16.mxu0 0
      %1864 = vmatpush1.bf16.msra.mxu0 %v1859
      %1865 = vmatprep.subr.bf16.mxu0 0
      %1866 = vmatpush1.bf16.msra.mxu0 %v1860
      %1867 = vmatprep.subr.bf16.mxu0 0
      %1868 = vmatpush1.bf16.msra.mxu0 0
      %1869 = vmatprep.subr.bf16.mxu0 0
      %1870 = vmatpush1.bf16.msra.mxu0 0
      %1871 = vmatprep.subr.bf16.mxu0 0
      %1872 = vmatpush1.bf16.msra.mxu0 0
      %1873 = vmatprep.subr.bf16.mxu0 0
      %1874 = vmatpush1.bf16.msra.mxu0 0
      %1875 = vmatprep.subr.bf16.mxu0 0
      %1876 = vmatpush1.bf16.msra.mxu0 0
      %1877 = vmatprep.subr.bf16.mxu0 0
      %1878 = vmatpush1.bf16.msra.mxu0 0
      %1879 = vmatprep.subr.bf16.mxu0 0
      %1880 = vmatpush1.bf16.msra.mxu0 0
      %1881 = vmatprep.subr.bf16.mxu0 0
      %1882 = vmatpush1.bf16.msra.mxu0 0
      %1883 = vmatprep.subr.bf16.mxu0 0
      %1884 = vmatpush1.bf16.msra.mxu0 0
      %1885 = vmatprep.subr.bf16.mxu0 0
      %1886 = vmatpush1.bf16.msra.mxu0 0
      %1887 = vmatprep.subr.bf16.mxu0 0
      %1888 = vmatpush1.bf16.msra.mxu0 0
      %1889 = vmatprep.subr.bf16.mxu0 0
      %1890 = vmatpush1.bf16.msra.mxu0 0
      %1891 = vmatprep.subr.bf16.mxu0 0
      %1892 = vmatpush1.bf16.msra.mxu0 0
      %1893 = vmatprep.subr.bf16.mxu0 0
      %1894 = vmatpush1.bf16.msra.mxu0 0
      %1895 = vmatprep.mubr.bf16.mxu0 0
      %1896 = vmatmul.mubr.bf16.gmra.mrb[0].mxu0 %v1731
      %v1897 = vpop.f32.mrb[0].mxu0
      %v1898 = vadd.f32 %v1849, %v1897
      %v1899 = vpop.f32.mrb[0].mxu0
      %v1900 = vpop.f32.mrb[0].mxu0
      %v1901 = vpop.f32.mrb[0].mxu0
      %1902 = vdwg.mxu0
      %v1903 = vpack.c.bf16 %v1768, %v1768
      %v1904 = vpack.c.bf16 %v1833, %v1833
      %v1906 = vsel %vm1002, %v1903, 0
      %v1909 = vsel %vm1002, %v1904, 0
      %1911 = vmatprep.subr.bf16.mxu0 0
      %1912 = vmatpush1.bf16.xpose.msra.mxu0 %v1909
      %1913 = vmatprep.subr.bf16.mxu0 0
      %1914 = vmatpush1.bf16.xpose.msra.mxu0 0
      %1915 = vmatprep.subr.bf16.mxu0 0
      %1916 = vmatpush1.bf16.xpose.msra.mxu0 0
      %1917 = vmatprep.subr.bf16.mxu0 0
      %1918 = vmatpush1.bf16.xpose.msra.mxu0 0
      %1919 = vmatprep.subr.bf16.mxu0 0
      %1920 = vmatpush1.bf16.xpose.msra.mxu0 0
      %1921 = vmatprep.subr.bf16.mxu0 0
      %1922 = vmatpush1.bf16.xpose.msra.mxu0 0
      %1923 = vmatprep.subr.bf16.mxu0 0
      %1924 = vmatpush1.bf16.xpose.msra.mxu0 0
      %1925 = vmatprep.subr.bf16.mxu0 0
      %1926 = vmatpush1.bf16.xpose.msra.mxu0 0
      %1927 = vmatprep.subr.bf16.mxu0 0
      %1928 = vmatpush1.bf16.xpose.msra.mxu0 0
      %1929 = vmatprep.subr.bf16.mxu0 0
      %1930 = vmatpush1.bf16.xpose.msra.mxu0 0
      %1931 = vmatprep.subr.bf16.mxu0 0
      %1932 = vmatpush1.bf16.xpose.msra.mxu0 0
      %1933 = vmatprep.subr.bf16.mxu0 0
      %1934 = vmatpush1.bf16.xpose.msra.mxu0 0
      %1935 = vmatprep.subr.bf16.mxu0 0
      %1936 = vmatpush1.bf16.xpose.msra.mxu0 0
      %1937 = vmatprep.subr.bf16.mxu0 0
      %1938 = vmatpush1.bf16.xpose.msra.mxu0 0
      %1939 = vmatprep.subr.bf16.mxu0 0
      %1940 = vmatpush1.bf16.xpose.msra.mxu0 0
      %1941 = vmatprep.subr.bf16.mxu0 0
      %1942 = vmatpush1.bf16.xpose.msra.mxu0 0
      %1943 = vmatprep.mubr.bf16.mxu0 0
      %1944 = vmatmul.mubr.bf16.gmra.mrb[0].mxu0 %v1906
      %v1945 = vpop.f32.mrb[0].mxu0
      %v1946 = vadd.f32 %v1000, %v1945
      %v1947 = vpop.f32.mrb[0].mxu0
      %v1948 = vpop.f32.mrb[0].mxu0
      %v1949 = vpop.f32.mrb[0].mxu0
      %1950 = vdwg.mxu0
      %v1951 = vsel %vm1049, %v1946, -inf
      %1952 = vmax.xlane.f32.xlu0 %v1951
      %v1953 = vpop.xlane.xlu0 %1952
      %v1954 = vsub.f32 %v1946, %v1953
      %v1955 = vmul.f32 %v1954, 1.442695
      %v1956 = vpow.pop %v1955
      %v1957 = vsel %vm1049, %v1956, 0.0
      %1958 = vadd.xlane.f32.xlu0 %v1957
      %v1959 = vpop.xlane.xlu0 %1958
      %v1960 = vrcp.pop %v1959
      %v1961 = vmul.f32 %v1956, %v1960
      %v1962 = vpack.c.bf16 %v1961, %v1961
      %v1963 = vpack.c.bf16 %v1898, %v1898
      %v1965 = vsel %vm1049, %v1962, 0
      %v1968 = vsel %vm1066, %v1963, 0
      %1970 = vmatprep.subr.bf16.mxu0 0
      %1971 = vmatpush1.bf16.msra.mxu0 %v1968
      %1972 = vmatprep.subr.bf16.mxu0 0
      %1973 = vmatpush1.bf16.msra.mxu0 0
      %1974 = vmatprep.subr.bf16.mxu0 0
      %1975 = vmatpush1.bf16.msra.mxu0 0
      %1976 = vmatprep.subr.bf16.mxu0 0
      %1977 = vmatpush1.bf16.msra.mxu0 0
      %1978 = vmatprep.subr.bf16.mxu0 0
      %1979 = vmatpush1.bf16.msra.mxu0 0
      %1980 = vmatprep.subr.bf16.mxu0 0
      %1981 = vmatpush1.bf16.msra.mxu0 0
      %1982 = vmatprep.subr.bf16.mxu0 0
      %1983 = vmatpush1.bf16.msra.mxu0 0
      %1984 = vmatprep.subr.bf16.mxu0 0
      %1985 = vmatpush1.bf16.msra.mxu0 0
      %1986 = vmatprep.subr.bf16.mxu0 0
      %1987 = vmatpush1.bf16.msra.mxu0 0
      %1988 = vmatprep.subr.bf16.mxu0 0
      %1989 = vmatpush1.bf16.msra.mxu0 0
      %1990 = vmatprep.subr.bf16.mxu0 0
      %1991 = vmatpush1.bf16.msra.mxu0 0
      %1992 = vmatprep.subr.bf16.mxu0 0
      %1993 = vmatpush1.bf16.msra.mxu0 0
      %1994 = vmatprep.subr.bf16.mxu0 0
      %1995 = vmatpush1.bf16.msra.mxu0 0
      %1996 = vmatprep.subr.bf16.mxu0 0
      %1997 = vmatpush1.bf16.msra.mxu0 0
      %1998 = vmatprep.subr.bf16.mxu0 0
      %1999 = vmatpush1.bf16.msra.mxu0 0
      %2000 = vmatprep.subr.bf16.mxu0 0
      %2001 = vmatpush1.bf16.msra.mxu0 0
      %2002 = vmatprep.mubr.bf16.mxu0 0
      %2003 = vmatmul.mubr.bf16.gmra.mrb[0].mxu0 %v1965
      %v2004 = vpop.f32.mrb[0].mxu0
      %v2005 = vadd.f32 0.0, %v2004
      %v2006 = vpop.f32.mrb[0].mxu0
      %v2007 = vpop.f32.mrb[0].mxu0
      %v2008 = vpop.f32.mrb[0].mxu0
      %2009 = vdwg.mxu0
      %s2010 = scalar_lea.vmem %s6, 112
      %v2011 = vld [vmem:[%s2010] sm:$0xf]
      %v2012 = vld [vmem:[%s2010 + $0x4] sm:$0xf]
      %v2013 = vld [vmem:[%s2010 + $0x8] sm:$0xf]
      %v2014 = vld [vmem:[%s2010 + $0xc] sm:$0xf]
      %s2015 = scalar_lea.vmem %s7, 7
      %v2016 = vld [vmem:[%s2015] sm:$0x1]
      %v2018 = vlaneseq
      %v2019 = vshrl.u32 %v2018, 7
      %v2020 = vsub.s32 0, %v2019
      %v2021 = vrot.slane %v2016, %v2020
      %v2027 = vunpack.c.l.b16 %v2011
      %v2028 = vunpack.c.l.b16 %v2012
      %v2029 = vunpack.c.l.b16 %v2013
      %v2030 = vunpack.c.l.b16 %v2014
      %v2031 = vpack.c.b16 %v2028, %v2027
      %v2032 = vpack.c.b16 %v2030, %v2029
      %2035 = vmatprep.subr.bf16.mxu0 0
      %2036 = vmatpush1.bf16.msra.mxu0 %v2031
      %2037 = vmatprep.subr.bf16.mxu0 0
      %2038 = vmatpush1.bf16.msra.mxu0 %v2032
      %2039 = vmatprep.subr.bf16.mxu0 0
      %2040 = vmatpush1.bf16.msra.mxu0 0
      %2041 = vmatprep.subr.bf16.mxu0 0
      %2042 = vmatpush1.bf16.msra.mxu0 0
      %2043 = vmatprep.subr.bf16.mxu0 0
      %2044 = vmatpush1.bf16.msra.mxu0 0
      %2045 = vmatprep.subr.bf16.mxu0 0
      %2046 = vmatpush1.bf16.msra.mxu0 0
      %2047 = vmatprep.subr.bf16.mxu0 0
      %2048 = vmatpush1.bf16.msra.mxu0 0
      %2049 = vmatprep.subr.bf16.mxu0 0
      %2050 = vmatpush1.bf16.msra.mxu0 0
      %2051 = vmatprep.subr.bf16.mxu0 0
      %2052 = vmatpush1.bf16.msra.mxu0 0
      %2053 = vmatprep.subr.bf16.mxu0 0
      %2054 = vmatpush1.bf16.msra.mxu0 0
      %2055 = vmatprep.subr.bf16.mxu0 0
      %2056 = vmatpush1.bf16.msra.mxu0 0
      %2057 = vmatprep.subr.bf16.mxu0 0
      %2058 = vmatpush1.bf16.msra.mxu0 0
      %2059 = vmatprep.subr.bf16.mxu0 0
      %2060 = vmatpush1.bf16.msra.mxu0 0
      %2061 = vmatprep.subr.bf16.mxu0 0
      %2062 = vmatpush1.bf16.msra.mxu0 0
      %2063 = vmatprep.subr.bf16.mxu0 0
      %2064 = vmatpush1.bf16.msra.mxu0 0
      %2065 = vmatprep.subr.bf16.mxu0 0
      %2066 = vmatpush1.bf16.msra.mxu0 0
      %2067 = vmatprep.mubr.bf16.mxu0 0
      %2068 = vmatmul.mubr.bf16.gmra.mrb[0].mxu0 %v1731
      %v2069 = vpop.f32.mrb[0].mxu0
      %v2070 = vadd.f32 %v2021, %v2069
      %v2071 = vpop.f32.mrb[0].mxu0
      %v2072 = vpop.f32.mrb[0].mxu0
      %v2073 = vpop.f32.mrb[0].mxu0
      %2074 = vdwg.mxu0
      %s2075 = scalar_lea.vmem %s6, 144
      %v2076 = vld [vmem:[%s2075] sm:$0xf]
      %v2077 = vld [vmem:[%s2075 + $0x4] sm:$0xf]
      %v2078 = vld [vmem:[%s2075 + $0x8] sm:$0xf]
      %v2079 = vld [vmem:[%s2075 + $0xc] sm:$0xf]
      %s2080 = scalar_lea.vmem %s7, 9
      %v2081 = vld [vmem:[%s2080] sm:$0x1]
      %v2083 = vlaneseq
      %v2084 = vshrl.u32 %v2083, 7
      %v2085 = vsub.s32 0, %v2084
      %v2086 = vrot.slane %v2081, %v2085
      %v2092 = vunpack.c.l.b16 %v2076
      %v2093 = vunpack.c.l.b16 %v2077
      %v2094 = vunpack.c.l.b16 %v2078
      %v2095 = vunpack.c.l.b16 %v2079
      %v2096 = vpack.c.b16 %v2093, %v2092
      %v2097 = vpack.c.b16 %v2095, %v2094
      %2100 = vmatprep.subr.bf16.mxu0 0
      %2101 = vmatpush1.bf16.msra.mxu0 %v2096
      %2102 = vmatprep.subr.bf16.mxu0 0
      %2103 = vmatpush1.bf16.msra.mxu0 %v2097
      %2104 = vmatprep.subr.bf16.mxu0 0
      %2105 = vmatpush1.bf16.msra.mxu0 0
      %2106 = vmatprep.subr.bf16.mxu0 0
      %2107 = vmatpush1.bf16.msra.mxu0 0
      %2108 = vmatprep.subr.bf16.mxu0 0
      %2109 = vmatpush1.bf16.msra.mxu0 0
      %2110 = vmatprep.subr.bf16.mxu0 0
      %2111 = vmatpush1.bf16.msra.mxu0 0
      %2112 = vmatprep.subr.bf16.mxu0 0
      %2113 = vmatpush1.bf16.msra.mxu0 0
      %2114 = vmatprep.subr.bf16.mxu0 0
      %2115 = vmatpush1.bf16.msra.mxu0 0
      %2116 = vmatprep.subr.bf16.mxu0 0
      %2117 = vmatpush1.bf16.msra.mxu0 0
      %2118 = vmatprep.subr.bf16.mxu0 0
      %2119 = vmatpush1.bf16.msra.mxu0 0
      %2120 = vmatprep.subr.bf16.mxu0 0
      %2121 = vmatpush1.bf16.msra.mxu0 0
      %2122 = vmatprep.subr.bf16.mxu0 0
      %2123 = vmatpush1.bf16.msra.mxu0 0
      %2124 = vmatprep.subr.bf16.mxu0 0
      %2125 = vmatpush1.bf16.msra.mxu0 0
      %2126 = vmatprep.subr.bf16.mxu0 0
      %2127 = vmatpush1.bf16.msra.mxu0 0
      %2128 = vmatprep.subr.bf16.mxu0 0
      %2129 = vmatpush1.bf16.msra.mxu0 0
      %2130 = vmatprep.subr.bf16.mxu0 0
      %2131 = vmatpush1.bf16.msra.mxu0 0
      %2132 = vmatprep.mubr.bf16.mxu0 0
      %2133 = vmatmul.mubr.bf16.gmra.mrb[0].mxu0 %v1731
      %v2134 = vpop.f32.mrb[0].mxu0
      %v2135 = vadd.f32 %v2086, %v2134
      %v2136 = vpop.f32.mrb[0].mxu0
      %v2137 = vpop.f32.mrb[0].mxu0
      %v2138 = vpop.f32.mrb[0].mxu0
      %2139 = vdwg.mxu0
      %s2140 = scalar_lea.vmem %s6, 176
      %v2141 = vld [vmem:[%s2140] sm:$0xf]
      %v2142 = vld [vmem:[%s2140 + $0x4] sm:$0xf]
      %v2143 = vld [vmem:[%s2140 + $0x8] sm:$0xf]
      %v2144 = vld [vmem:[%s2140 + $0xc] sm:$0xf]
      %s2145 = scalar_lea.vmem %s7, 11
      %v2146 = vld [vmem:[%s2145] sm:$0x1]
      %v2148 = vlaneseq
      %v2149 = vshrl.u32 %v2148, 7
      %v2150 = vsub.s32 0, %v2149
      %v2151 = vrot.slane %v2146, %v2150
      %v2157 = vunpack.c.l.b16 %v2141
      %v2158 = vunpack.c.l.b16 %v2142
      %v2159 = vunpack.c.l.b16 %v2143
      %v2160 = vunpack.c.l.b16 %v2144
      %v2161 = vpack.c.b16 %v2158, %v2157
      %v2162 = vpack.c.b16 %v2160, %v2159
      %2165 = vmatprep.subr.bf16.mxu0 0
      %2166 = vmatpush1.bf16.msra.mxu0 %v2161
      %2167 = vmatprep.subr.bf16.mxu0 0
      %2168 = vmatpush1.bf16.msra.mxu0 %v2162
      %2169 = vmatprep.subr.bf16.mxu0 0
      %2170 = vmatpush1.bf16.msra.mxu0 0
      %2171 = vmatprep.subr.bf16.mxu0 0
      %2172 = vmatpush1.bf16.msra.mxu0 0
      %2173 = vmatprep.subr.bf16.mxu0 0
      %2174 = vmatpush1.bf16.msra.mxu0 0
      %2175 = vmatprep.subr.bf16.mxu0 0
      %2176 = vmatpush1.bf16.msra.mxu0 0
      %2177 = vmatprep.subr.bf16.mxu0 0
      %2178 = vmatpush1.bf16.msra.mxu0 0
      %2179 = vmatprep.subr.bf16.mxu0 0
      %2180 = vmatpush1.bf16.msra.mxu0 0
      %2181 = vmatprep.subr.bf16.mxu0 0
      %2182 = vmatpush1.bf16.msra.mxu0 0
      %2183 = vmatprep.subr.bf16.mxu0 0
      %2184 = vmatpush1.bf16.msra.mxu0 0
      %2185 = vmatprep.subr.bf16.mxu0 0
      %2186 = vmatpush1.bf16.msra.mxu0 0
      %2187 = vmatprep.subr.bf16.mxu0 0
      %2188 = vmatpush1.bf16.msra.mxu0 0
      %2189 = vmatprep.subr.bf16.mxu0 0
      %2190 = vmatpush1.bf16.msra.mxu0 0
      %2191 = vmatprep.subr.bf16.mxu0 0
      %2192 = vmatpush1.bf16.msra.mxu0 0
      %2193 = vmatprep.subr.bf16.mxu0 0
      %2194 = vmatpush1.bf16.msra.mxu0 0
      %2195 = vmatprep.subr.bf16.mxu0 0
      %2196 = vmatpush1.bf16.msra.mxu0 0
      %2197 = vmatprep.mubr.bf16.mxu0 0
      %2198 = vmatmul.mubr.bf16.gmra.mrb[0].mxu0 %v1731
      %v2199 = vpop.f32.mrb[0].mxu0
      %v2200 = vadd.f32 %v2151, %v2199
      %v2201 = vpop.f32.mrb[0].mxu0
      %v2202 = vpop.f32.mrb[0].mxu0
      %v2203 = vpop.f32.mrb[0].mxu0
      %2204 = vdwg.mxu0
      %v2205 = vpack.c.bf16 %v2070, %v2070
      %v2206 = vpack.c.bf16 %v2135, %v2135
      %v2208 = vsel %vm1002, %v2205, 0
      %v2211 = vsel %vm1002, %v2206, 0
      %2213 = vmatprep.subr.bf16.mxu0 0
      %2214 = vmatpush1.bf16.xpose.msra.mxu0 %v2211
      %2215 = vmatprep.subr.bf16.mxu0 0
      %2216 = vmatpush1.bf16.xpose.msra.mxu0 0
      %2217 = vmatprep.subr.bf16.mxu0 0
      %2218 = vmatpush1.bf16.xpose.msra.mxu0 0
      %2219 = vmatprep.subr.bf16.mxu0 0
      %2220 = vmatpush1.bf16.xpose.msra.mxu0 0
      %2221 = vmatprep.subr.bf16.mxu0 0
      %2222 = vmatpush1.bf16.xpose.msra.mxu0 0
      %2223 = vmatprep.subr.bf16.mxu0 0
      %2224 = vmatpush1.bf16.xpose.msra.mxu0 0
      %2225 = vmatprep.subr.bf16.mxu0 0
      %2226 = vmatpush1.bf16.xpose.msra.mxu0 0
      %2227 = vmatprep.subr.bf16.mxu0 0
      %2228 = vmatpush1.bf16.xpose.msra.mxu0 0
      %2229 = vmatprep.subr.bf16.mxu0 0
      %2230 = vmatpush1.bf16.xpose.msra.mxu0 0
      %2231 = vmatprep.subr.bf16.mxu0 0
      %2232 = vmatpush1.bf16.xpose.msra.mxu0 0
      %2233 = vmatprep.subr.bf16.mxu0 0
      %2234 = vmatpush1.bf16.xpose.msra.mxu0 0
      %2235 = vmatprep.subr.bf16.mxu0 0
      %2236 = vmatpush1.bf16.xpose.msra.mxu0 0
      %2237 = vmatprep.subr.bf16.mxu0 0
      %2238 = vmatpush1.bf16.xpose.msra.mxu0 0
      %2239 = vmatprep.subr.bf16.mxu0 0
      %2240 = vmatpush1.bf16.xpose.msra.mxu0 0
      %2241 = vmatprep.subr.bf16.mxu0 0
      %2242 = vmatpush1.bf16.xpose.msra.mxu0 0
      %2243 = vmatprep.subr.bf16.mxu0 0
      %2244 = vmatpush1.bf16.xpose.msra.mxu0 0
      %2245 = vmatprep.mubr.bf16.mxu0 0
      %2246 = vmatmul.mubr.bf16.gmra.mrb[0].mxu0 %v2208
      %v2247 = vpop.f32.mrb[0].mxu0
      %v2248 = vadd.f32 %v1000, %v2247
      %v2249 = vpop.f32.mrb[0].mxu0
      %v2250 = vpop.f32.mrb[0].mxu0
      %v2251 = vpop.f32.mrb[0].mxu0
      %2252 = vdwg.mxu0
      %v2253 = vsel %vm1049, %v2248, -inf
      %2254 = vmax.xlane.f32.xlu0 %v2253
      %v2255 = vpop.xlane.xlu0 %2254
      %v2256 = vsub.f32 %v2248, %v2255
      %v2257 = vmul.f32 %v2256, 1.442695
      %v2258 = vpow.pop %v2257
      %v2259 = vsel %vm1049, %v2258, 0.0
      %2260 = vadd.xlane.f32.xlu0 %v2259
      %v2261 = vpop.xlane.xlu0 %2260
      %v2262 = vrcp.pop %v2261
      %v2263 = vmul.f32 %v2258, %v2262
      %v2264 = vpack.c.bf16 %v2263, %v2263
      %v2265 = vpack.c.bf16 %v2200, %v2200
      %v2267 = vsel %vm1049, %v2264, 0
      %v2270 = vsel %vm1066, %v2265, 0
      %2272 = vmatprep.subr.bf16.mxu0 0
      %2273 = vmatpush1.bf16.msra.mxu0 %v2270
      %2274 = vmatprep.subr.bf16.mxu0 0
      %2275 = vmatpush1.bf16.msra.mxu0 0
      %2276 = vmatprep.subr.bf16.mxu0 0
      %2277 = vmatpush1.bf16.msra.mxu0 0
      %2278 = vmatprep.subr.bf16.mxu0 0
      %2279 = vmatpush1.bf16.msra.mxu0 0
      %2280 = vmatprep.subr.bf16.mxu0 0
      %2281 = vmatpush1.bf16.msra.mxu0 0
      %2282 = vmatprep.subr.bf16.mxu0 0
      %2283 = vmatpush1.bf16.msra.mxu0 0
      %2284 = vmatprep.subr.bf16.mxu0 0
      %2285 = vmatpush1.bf16.msra.mxu0 0
      %2286 = vmatprep.subr.bf16.mxu0 0
      %2287 = vmatpush1.bf16.msra.mxu0 0
      %2288 = vmatprep.subr.bf16.mxu0 0
      %2289 = vmatpush1.bf16.msra.mxu0 0
      %2290 = vmatprep.subr.bf16.mxu0 0
      %2291 = vmatpush1.bf16.msra.mxu0 0
      %2292 = vmatprep.subr.bf16.mxu0 0
      %2293 = vmatpush1.bf16.msra.mxu0 0
      %2294 = vmatprep.subr.bf16.mxu0 0
      %2295 = vmatpush1.bf16.msra.mxu0 0
      %2296 = vmatprep.subr.bf16.mxu0 0
      %2297 = vmatpush1.bf16.msra.mxu0 0
      %2298 = vmatprep.subr.bf16.mxu0 0
      %2299 = vmatpush1.bf16.msra.mxu0 0
      %2300 = vmatprep.subr.bf16.mxu0 0
      %2301 = vmatpush1.bf16.msra.mxu0 0
      %2302 = vmatprep.subr.bf16.mxu0 0
      %2303 = vmatpush1.bf16.msra.mxu0 0
      %2304 = vmatprep.mubr.bf16.mxu0 0
      %2305 = vmatmul.mubr.bf16.gmra.mrb[0].mxu0 %v2267
      %v2306 = vpop.f32.mrb[0].mxu0
      %v2307 = vadd.f32 0.0, %v2306
      %v2308 = vpop.f32.mrb[0].mxu0
      %v2309 = vpop.f32.mrb[0].mxu0
      %v2310 = vpop.f32.mrb[0].mxu0
      %2311 = vdwg.mxu0
      %2313 = vrot.lane.b32.xlu0 %v2307, 16
      %v2314 = vpop.permute.xlu0 %2313
      %v2316 = vsel %vm1002, %v2005, %v2314
      %v2317 = vpack.c.bf16 %v2316, %v2316
      %s2318 = scalar_lea.vmem %s8, 16
      %v2319 = vld [vmem:[%s2318] sm:$0xf]
      %v2320 = vld [vmem:[%s2318 + $0x4] sm:$0xf]
      %v2321 = vld [vmem:[%s2318 + $0x8] sm:$0xf]
      %v2322 = vld [vmem:[%s2318 + $0xc] sm:$0xf]
      %s2323 = scalar_lea.vmem %s9, 1
      %v2324 = vld [vmem:[%s2323] sm:$0x1]
      %v2326 = vlaneseq
      %v2327 = vshrl.u32 %v2326, 7
      %v2328 = vsub.s32 0, %v2327
      %v2329 = vrot.slane %v2324, %v2328
      %v2335 = vunpack.c.l.b16 %v2319
      %v2336 = vunpack.c.l.b16 %v2320
      %v2337 = vunpack.c.l.b16 %v2321
      %v2338 = vunpack.c.l.b16 %v2322
      %v2339 = vpack.c.b16 %v2336, %v2335
      %v2340 = vpack.c.b16 %v2338, %v2337
      %v2344 = vsel %vm764, %v2317, 0
      %2346 = vmatprep.subr.bf16.mxu0 0
      %2347 = vmatpush1.bf16.msra.mxu0 %v2339
      %2348 = vmatprep.subr.bf16.mxu0 0
      %2349 = vmatpush1.bf16.msra.mxu0 %v2340
      %2350 = vmatprep.subr.bf16.mxu0 0
      %2351 = vmatpush1.bf16.msra.mxu0 0
      %2352 = vmatprep.subr.bf16.mxu0 0
      %2353 = vmatpush1.bf16.msra.mxu0 0
      %2354 = vmatprep.subr.bf16.mxu0 0
      %2355 = vmatpush1.bf16.msra.mxu0 0
      %2356 = vmatprep.subr.bf16.mxu0 0
      %2357 = vmatpush1.bf16.msra.mxu0 0
      %2358 = vmatprep.subr.bf16.mxu0 0
      %2359 = vmatpush1.bf16.msra.mxu0 0
      %2360 = vmatprep.subr.bf16.mxu0 0
      %2361 = vmatpush1.bf16.msra.mxu0 0
      %2362 = vmatprep.subr.bf16.mxu0 0
      %2363 = vmatpush1.bf16.msra.mxu0 0
      %2364 = vmatprep.subr.bf16.mxu0 0
      %2365 = vmatpush1.bf16.msra.mxu0 0
      %2366 = vmatprep.subr.bf16.mxu0 0
      %2367 = vmatpush1.bf16.msra.mxu0 0
      %2368 = vmatprep.subr.bf16.mxu0 0
      %2369 = vmatpush1.bf16.msra.mxu0 0
      %2370 = vmatprep.subr.bf16.mxu0 0
      %2371 = vmatpush1.bf16.msra.mxu0 0
      %2372 = vmatprep.subr.bf16.mxu0 0
      %2373 = vmatpush1.bf16.msra.mxu0 0
      %2374 = vmatprep.subr.bf16.mxu0 0
      %2375 = vmatpush1.bf16.msra.mxu0 0
      %2376 = vmatprep.subr.bf16.mxu0 0
      %2377 = vmatpush1.bf16.msra.mxu0 0
      %2378 = vmatprep.mubr.bf16.mxu0 0
      %2379 = vmatmul.mubr.bf16.gmra.mrb[0].mxu0 %v2344
      %v2380 = vpop.f32.mrb[0].mxu0
      %v2381 = vadd.f32 %v2329, %v2380
      %v2382 = vpop.f32.mrb[0].mxu0
      %v2383 = vpop.f32.mrb[0].mxu0
      %v2384 = vpop.f32.mrb[0].mxu0
      %2385 = vdwg.mxu0
      %v2386 = vadd.f32 %v1703, %v2381
      %s2387 = scalar_lea.vmem %s10, 1
      %v2388 = vld [vmem:[%s2387] sm:$0x1]
      %s2389 = scalar_lea.vmem %s11, 1
      %v2390 = vld [vmem:[%s2389] sm:$0x1]
      %v2391 = vsel %vm764, %v2386, 0.0
      %2392 = vadd.xlane.f32.xlu0 %v2391
      %v2393 = vpop.xlane.xlu0 %2392
      %v2394 = vmul.f32 %v2393, %v768
      %v2395 = vsub.f32 %v2386, %v2394
      %v2396 = vmul.f32 %v2395, %v2395
      %v2397 = vsel %vm764, %v2396, 0.0
      %2398 = vadd.xlane.f32.xlu0 %v2397
      %v2399 = vpop.xlane.xlu0 %2398
      %v2400 = vmul.f32 %v2399, %v768
      %v2401 = vadd.f32 %v2400, 1e-05
      %v2402 = vrsqrt.pop %v2401
      %v2403 = vmul.f32 %v2395, %v2402
      %v2405 = vlaneseq
      %v2406 = vshrl.u32 %v2405, 7
      %v2407 = vsub.s32 0, %v2406
      %v2408 = vrot.slane %v2388, %v2407
      %v2410 = vmul.f32 %v2403, %v2408
      %v2412 = vlaneseq
      %v2413 = vshrl.u32 %v2412, 7
      %v2414 = vsub.s32 0, %v2413
      %v2415 = vrot.slane %v2390, %v2414
      %v2417 = vadd.f32 %v2410, %v2415
      %v2418 = vpack.c.bf16 %v2417, %v2417
      %s2419 = scalar_lea.vmem %s12, 16
      %v2420 = vld [vmem:[%s2419] sm:$0xf]
      %v2421 = vld [vmem:[%s2419 + $0x4] sm:$0xf]
      %v2422 = vld [vmem:[%s2419 + $0x8] sm:$0xf]
      %v2423 = vld [vmem:[%s2419 + $0xc] sm:$0xf]
      %s2424 = scalar_lea.vmem %s13, 1
      %v2425 = vld [vmem:[%s2424] sm:$0x1]
      %v2427 = vlaneseq
      %v2428 = vshrl.u32 %v2427, 7
      %v2429 = vsub.s32 0, %v2428
      %v2430 = vrot.slane %v2425, %v2429
      %v2436 = vunpack.c.l.b16 %v2420
      %v2437 = vunpack.c.l.b16 %v2421
      %v2438 = vunpack.c.l.b16 %v2422
      %v2439 = vunpack.c.l.b16 %v2423
      %v2440 = vpack.c.b16 %v2437, %v2436
      %v2441 = vpack.c.b16 %v2439, %v2438
      %v2445 = vsel %vm764, %v2418, 0
      %2447 = vmatprep.subr.bf16.mxu0 0
      %2448 = vmatpush1.bf16.msra.mxu0 %v2440
      %2449 = vmatprep.subr.bf16.mxu0 0
      %2450 = vmatpush1.bf16.msra.mxu0 %v2441
      %2451 = vmatprep.subr.bf16.mxu0 0
      %2452 = vmatpush1.bf16.msra.mxu0 0
      %2453 = vmatprep.subr.bf16.mxu0 0
      %2454 = vmatpush1.bf16.msra.mxu0 0
      %2455 = vmatprep.subr.bf16.mxu0 0
      %2456 = vmatpush1.bf16.msra.mxu0 0
      %2457 = vmatprep.subr.bf16.mxu0 0
      %2458 = vmatpush1.bf16.msra.mxu0 0
      %2459 = vmatprep.subr.bf16.mxu0 0
      %2460 = vmatpush1.bf16.msra.mxu0 0
      %2461 = vmatprep.subr.bf16.mxu0 0
      %2462 = vmatpush1.bf16.msra.mxu0 0
      %2463 = vmatprep.subr.bf16.mxu0 0
      %2464 = vmatpush1.bf16.msra.mxu0 0
      %2465 = vmatprep.subr.bf16.mxu0 0
      %2466 = vmatpush1.bf16.msra.mxu0 0
      %2467 = vmatprep.subr.bf16.mxu0 0
      %2468 = vmatpush1.bf16.msra.mxu0 0
      %2469 = vmatprep.subr.bf16.mxu0 0
      %2470 = vmatpush1.bf16.msra.mxu0 0
      %2471 = vmatprep.subr.bf16.mxu0 0
      %2472 = vmatpush1.bf16.msra.mxu0 0
      %2473 = vmatprep.subr.bf16.mxu0 0
      %2474 = vmatpush1.bf16.msra.mxu0 0
      %2475 = vmatprep.subr.bf16.mxu0 0
      %2476 = vmatpush1.bf16.msra.mxu0 0
      %2477 = vmatprep.subr.bf16.mxu0 0
      %2478 = vmatpush1.bf16.msra.mxu0 0
      %2479 = vmatprep.mubr.bf16.mxu0 0
      %2480 = vmatmul.mubr.bf16.gmra.mrb[0].mxu0 %v2445
      %v2481 = vpop.f32.mrb[0].mxu0
      %v2482 = vadd.f32 %v2430, %v2481
      %v2483 = vpop.f32.mrb[0].mxu0
      %v2484 = vpop.f32.mrb[0].mxu0
      %v2485 = vpop.f32.mrb[0].mxu0
      %2486 = vdwg.mxu0
      %v2487 = vmul.f32 %v2482, 0.5
      %v2488 = vmul.f32 %v2482, 0.044715
      %v2489 = vmul.f32 %v2488, %v2482
      %v2490 = vmul.f32 %v2489, %v2482
      %v2491 = vadd.f32 %v2482, %v2490
      %v2492 = vmul.f32 %v2491, 0.7978846
      %v2493 = vtanh.pop %v2492
      %v2494 = vadd.f32 %v2493, 1.0
      %v2495 = vmul.f32 %v2487, %v2494
      %v2496 = vpack.c.bf16 %v2495, %v2495
      %s2497 = scalar_lea.vmem %s14, 32
      %v2498 = vld [vmem:[%s2497] sm:$0xf]
      %v2499 = vld [vmem:[%s2497 + $0x4] sm:$0xf]
      %v2500 = vld [vmem:[%s2497 + $0x8] sm:$0xf]
      %v2501 = vld [vmem:[%s2497 + $0xc] sm:$0xf]
      %v2502 = vld [vmem:[%s2497 + $0x10] sm:$0xf]
      %v2503 = vld [vmem:[%s2497 + $0x14] sm:$0xf]
      %v2504 = vld [vmem:[%s2497 + $0x18] sm:$0xf]
      %v2505 = vld [vmem:[%s2497 + $0x1c] sm:$0xf]
      %s2506 = scalar_lea.vmem %s15, 1
      %v2507 = vld [vmem:[%s2506] sm:$0x1]
      %v2509 = vlaneseq
      %v2510 = vshrl.u32 %v2509, 7
      %v2511 = vsub.s32 0, %v2510
      %v2512 = vrot.slane %v2507, %v2511
      %v2522 = vunpack.c.l.b16 %v2498
      %v2523 = vunpack.c.l.b16 %v2499
      %v2524 = vunpack.c.l.b16 %v2500
      %v2525 = vunpack.c.l.b16 %v2501
      %v2526 = vunpack.c.l.b16 %v2502
      %v2527 = vunpack.c.l.b16 %v2503
      %v2528 = vunpack.c.l.b16 %v2504
      %v2529 = vunpack.c.l.b16 %v2505
      %v2530 = vpack.c.b16 %v2523, %v2522
      %v2531 = vpack.c.b16 %v2525, %v2524
      %v2532 = vpack.c.b16 %v2527, %v2526
      %v2533 = vpack.c.b16 %v2529, %v2528
      %v2539 = vsel %vm1630, %v2496, 0
      %2541 = vmatprep.subr.bf16.mxu0 0
      %2542 = vmatpush1.bf16.msra.mxu0 %v2530
      %2543 = vmatprep.subr.bf16.mxu0 0
      %2544 = vmatpush1.bf16.msra.mxu0 %v2531
      %2545 = vmatprep.subr.bf16.mxu0 0
      %2546 = vmatpush1.bf16.msra.mxu0 %v2532
      %2547 = vmatprep.subr.bf16.mxu0 0
      %2548 = vmatpush1.bf16.msra.mxu0 %v2533
      %2549 = vmatprep.subr.bf16.mxu0 0
      %2550 = vmatpush1.bf16.msra.mxu0 0
      %2551 = vmatprep.subr.bf16.mxu0 0
      %2552 = vmatpush1.bf16.msra.mxu0 0
      %2553 = vmatprep.subr.bf16.mxu0 0
      %2554 = vmatpush1.bf16.msra.mxu0 0
      %2555 = vmatprep.subr.bf16.mxu0 0
      %2556 = vmatpush1.bf16.msra.mxu0 0
      %2557 = vmatprep.subr.bf16.mxu0 0
      %2558 = vmatpush1.bf16.msra.mxu0 0
      %2559 = vmatprep.subr.bf16.mxu0 0
      %2560 = vmatpush1.bf16.msra.mxu0 0
      %2561 = vmatprep.subr.bf16.mxu0 0
      %2562 = vmatpush1.bf16.msra.mxu0 0
      %2563 = vmatprep.subr.bf16.mxu0 0
      %2564 = vmatpush1.bf16.msra.mxu0 0
      %2565 = vmatprep.subr.bf16.mxu0 0
      %2566 = vmatpush1.bf16.msra.mxu0 0
      %2567 = vmatprep.subr.bf16.mxu0 0
      %2568 = vmatpush1.bf16.msra.mxu0 0
      %2569 = vmatprep.subr.bf16.mxu0 0
      %2570 = vmatpush1.bf16.msra.mxu0 0
      %2571 = vmatprep.subr.bf16.mxu0 0
      %2572 = vmatpush1.bf16.msra.mxu0 0
      %2573 = vmatprep.mubr.bf16.mxu0 0
      %2574 = vmatmul.mubr.bf16.gmra.mrb[0].mxu0 %v2539
      %v2575 = vpop.f32.mrb[0].mxu0
      %v2576 = vadd.f32 %v2512, %v2575
      %v2577 = vpop.f32.mrb[0].mxu0
      %v2578 = vpop.f32.mrb[0].mxu0
      %v2579 = vpop.f32.mrb[0].mxu0
      %2580 = vdwg.mxu0
      %v2581 = vadd.f32 %v2417, %v2576
      %s2582 = scalar_lea.vmem %s16, 1
      %v2583 = vld [vmem:[%s2582] sm:$0x1]
      %s2584 = scalar_lea.vmem %s17, 1
      %v2585 = vld [vmem:[%s2584] sm:$0x1]
      %v2586 = vsel %vm764, %v2581, 0.0
      %2587 = vadd.xlane.f32.xlu0 %v2586
      %v2588 = vpop.xlane.xlu0 %2587
      %v2589 = vmul.f32 %v2588, %v768
      %v2590 = vsub.f32 %v2581, %v2589
      %v2591 = vmul.f32 %v2590, %v2590
      %v2592 = vsel %vm764, %v2591, 0.0
      %2593 = vadd.xlane.f32.xlu0 %v2592
      %v2594 = vpop.xlane.xlu0 %2593
      %v2595 = vmul.f32 %v2594, %v768
      %v2596 = vadd.f32 %v2595, 1e-05
      %v2597 = vrsqrt.pop %v2596
      %v2598 = vmul.f32 %v2590, %v2597
      %v2600 = vlaneseq
      %v2601 = vshrl.u32 %v2600, 7
      %v2602 = vsub.s32 0, %v2601
      %v2603 = vrot.slane %v2583, %v2602
      %v2605 = vmul.f32 %v2598, %v2603
      %v2607 = vlaneseq
      %v2608 = vshrl.u32 %v2607, 7
      %v2609 = vsub.s32 0, %v2608
      %v2610 = vrot.slane %v2585, %v2609
      %v2612 = vadd.f32 %v2605, %v2610
      %v2613 = vpack.c.bf16 %v2612, %v2612
      %v2614 = vld [vmem:[%s18] sm:$0xf]
      %v2615 = vld [vmem:[%s18 + $0x4] sm:$0xf]
      %v2616 = vld [vmem:[%s18 + $0x8] sm:$0xf]
      %v2617 = vld [vmem:[%s18 + $0xc] sm:$0xf]
      %v2618 = vld [vmem:[%s19] sm:$0x1]
      %v2623 = vunpack.c.l.b16 %v2614
      %v2624 = vunpack.c.l.b16 %v2615
      %v2625 = vunpack.c.l.b16 %v2616
      %v2626 = vunpack.c.l.b16 %v2617
      %v2627 = vpack.c.b16 %v2624, %v2623
      %v2628 = vpack.c.b16 %v2626, %v2625
      %v2632 = vsel %vm764, %v2613, 0
      %2634 = vmatprep.subr.bf16.mxu0 0
      %2635 = vmatpush1.bf16.msra.mxu0 %v2627
      %2636 = vmatprep.subr.bf16.mxu0 0
      %2637 = vmatpush1.bf16.msra.mxu0 %v2628
      %2638 = vmatprep.subr.bf16.mxu0 0
      %2639 = vmatpush1.bf16.msra.mxu0 0
      %2640 = vmatprep.subr.bf16.mxu0 0
      %2641 = vmatpush1.bf16.msra.mxu0 0
      %2642 = vmatprep.subr.bf16.mxu0 0
      %2643 = vmatpush1.bf16.msra.mxu0 0
      %2644 = vmatprep.subr.bf16.mxu0 0
      %2645 = vmatpush1.bf16.msra.mxu0 0
      %2646 = vmatprep.subr.bf16.mxu0 0
      %2647 = vmatpush1.bf16.msra.mxu0 0
      %2648 = vmatprep.subr.bf16.mxu0 0
      %2649 = vmatpush1.bf16.msra.mxu0 0
      %2650 = vmatprep.subr.bf16.mxu0 0
      %2651 = vmatpush1.bf16.msra.mxu0 0
      %2652 = vmatprep.subr.bf16.mxu0 0
      %2653 = vmatpush1.bf16.msra.mxu0 0
      %2654 = vmatprep.subr.bf16.mxu0 0
      %2655 = vmatpush1.bf16.msra.mxu0 0
      %2656 = vmatprep.subr.bf16.mxu0 0
      %2657 = vmatpush1.bf16.msra.mxu0 0
      %2658 = vmatprep.subr.bf16.mxu0 0
      %2659 = vmatpush1.bf16.msra.mxu0 0
      %2660 = vmatprep.subr.bf16.mxu0 0
      %2661 = vmatpush1.bf16.msra.mxu0 0
      %2662 = vmatprep.subr.bf16.mxu0 0
      %2663 = vmatpush1.bf16.msra.mxu0 0
      %2664 = vmatprep.subr.bf16.mxu0 0
      %2665 = vmatpush1.bf16.msra.mxu0 0
      %2666 = vmatprep.mubr.bf16.mxu0 0
      %2667 = vmatmul.mubr.bf16.gmra.mrb[0].mxu0 %v2632
      %v2668 = vpop.f32.mrb[0].mxu0
      %v2669 = vadd.f32 %v2618, %v2668
      %v2670 = vpop.f32.mrb[0].mxu0
      %v2671 = vpop.f32.mrb[0].mxu0
      %v2672 = vpop.f32.mrb[0].mxu0
      %2673 = vdwg.mxu0
      %v2674 = vtanh.pop %v2669
      %v2675 = vld [vmem:[%s20] sm:$0x1]
      %v2676 = vmul.f32 %v2674, %v2675
      %v2677 = vsel %vm668, %v2676, 0.0
      %2678 = vadd.xlane.f32.xlu0 %v2677
      %v2679 = vpop.xlane.xlu0 %2678
      %v2680 = vld [vmem:[#allocation5] sm:$0x1]
      %v2681 = vadd.f32 %v2679, %v2680
      %vm2682 = vcmask 0
      %2683 = vst.msk [vmem:[%s655] sm:$0x1] %vm2682, %v2681
      %p2684 = scmp.lt.s32.totalorder %s41, 1
      %s2685 = scalar_select %p2684, %s41, 1
      %s2686 = scalar_lea.vmem %s22, %s2685
      // Predicated region
      $region105: #{roberta_forward.1} parent=103 // pred_check
        %p2687 = pneg %p505
      $region106: #{roberta_forward.1} parent=103 // pred_check_branch
        %2689 = sbr.rel (%p2687) target = $region108
      $region107: #{roberta_forward.1} parent=103 // pred_region
        _
      $region108: #{roberta_forward.1} parent=103 // pred_fallthru
        _
    $region104: #{roberta_forward.1} parent=5 // pred_fallthru
      _
    %p2690 = scmp.le.s32.totalorder 2, %s36
    // Predicated region
    $region109: #{roberta_forward.1} parent=5 // pred_check
      %p2691 = pneg %p2690
    $region110: #{roberta_forward.1} parent=5 // pred_check_branch
      %2693 = sbr.rel (%p2691) target = $region112
    $region111: #{roberta_forward.1} parent=5 // pred_region
      %s2694 = ssub.s32 %s36, 2
      // Predicated region
      $region113: #{roberta_forward.1} parent=111 // pred_check
        %p2695 = pneg %p511
      $region114: #{roberta_forward.1} parent=111 // pred_check_branch
        %2697 = sbr.rel (%p2695) target = $region116
      $region115: #{roberta_forward.1} parent=111 // pred_region
        %p2698 = scmp.lt.s32.totalorder %s42, 1
        %s2699 = scalar_select %p2698, %s42, 1
        %s2700 = scalar_lea.vmem %s22, %s2699
      $region116: #{roberta_forward.1} parent=111 // pred_fallthru
        _
    $region112: #{roberta_forward.1} parent=5 // pred_fallthru
      _
  $region6: #{roberta_forward.1} parent=0 // loop_footer
    %s40 = sadd.s32 1, %s36
  $region7: #{roberta_forward.1} parent=0 // loop_footer_branch
    %35 = sbr.rel target = $region3
  $region8: #{roberta_forward.1} parent=0 // loop_exit
    _

</llo_original>
